<compile_context>
chip_gen: v7x
topology: tpu7x:2x2x1
jax: 0.10.0
libtpu: 0.0.40
codegen_flags: <defaults>
</compile_context>

<pallas_src>
import functools

import jax
import jax.numpy as jnp
import numpy as np
from jax.experimental import pallas as pl
from jax.experimental.pallas import tpu as pltpu


def _round_up(x, m):
    return ((x + m - 1) // m) * m


def _pick_row_tile(ho, wo, tc, cap=32):
    """Output rows per grid step.

    Bounds the f32 accumulator (th*wo, tc) to <= ~32 vregs (128 KiB) so the tile stays
    MXU-bound instead of spill-bound, and prefers th | ho so no tail rows are wasted.
    """
    max_th = max(1, (32 * 1024) // max(wo * tc, 1))
    max_th = max(1, min(max_th, cap, ho))
    best = 1
    for t in range(max_th, 0, -1):
        if ho % t == 0:
            best = t
            break
    if best * 2 >= max_th:
        return best            # divisor close to the cap -> no tail padding at all
    return max_th              # tail rows padded (sliced off in the wrapper)


def _conv_bn_relu_kernel(x_ref, w_ref, shift_ref, o_ref, *, kh, kw, stride, th, wo):
    # x_ref:     (Hp, Wp, Cin_pad)    bf16 - one batch's padded image (VMEM resident)
    # w_ref:     (kh*kw, Cin_pad, tc) bf16 - conv taps with BN scale folded in, one Cout tile
    # shift_ref: (1, tc)              f32  - BN shift for this Cout tile
    # o_ref:     (th, Wo, tc)         one output (row-tile x Cout-tile) block
    rt = pl.program_id(2)
    tc = o_ref.shape[-1]
    cin = x_ref.shape[-1]
    r0 = rt * (th * stride)

    # One matmul per conv tap with M = th*Wo (row-batched) into one f32 accumulator;
    # pure accumulation chain, no interleaved VPU work.
    acc = jnp.zeros((th * wo, tc), jnp.float32)
    for dh in range(kh):
        for dw in range(kw):
            if stride == 1:
                a = x_ref[pl.ds(r0 + dh, th), pl.ds(dw, wo), :]
            else:
                # TODO(synk): stride > 1 relies on strided-slice lowering; only the
                # stride == 1 path is exercised/tuned here.
                a = x_ref[pl.ds(r0 + dh, th, stride), pl.ds(dw, wo, stride), :]
            acc = acc + jnp.dot(a.reshape(th * wo, cin), w_ref[dh * kw + dw],
                                preferred_element_type=jnp.float32)
    # TODO(synk): for small-Cin stem layers, folding the kw taps into the contraction dim
    # (K = kw*Cin_pad) would cut the number of tiny-K matmuls by kw.

    # Epilogue once per tile (shift broadcast hoisted out of any loop), one contiguous store.
    y = jnp.maximum(acc + shift_ref[...], 0.0)
    o_ref[...] = y.reshape(th, wo, tc).astype(o_ref.dtype)


def basic_conv2d(x_nchw, weight, gamma, beta, running_mean, running_var,
                 *, stride=1, padding=1, eps=1e-3, row_tile_cap=32):
    """BasicConv2d forward. x_nchw: (N, Cin, H, W); weight: (Cout, Cin, kh, kw)."""
    N, Cin, H, W = x_nchw.shape
    Cout, Cin_w, kh, kw = weight.shape
    assert Cin == Cin_w

    Ho = (H + 2 * padding - kh) // stride + 1
    Wo = (W + 2 * padding - kw) // stride + 1

    # ---- tiling / padding geometry ---------------------------------------------------
    Cin_pad = max(16, _round_up(Cin, 16))          # bf16 sublane packing
    tc = 128 if Cout <= 128 else 256               # Cout tile; 256 fills v6e/v7x MXU columns
    Cout_pad = _round_up(Cout, tc)
    n_ct = Cout_pad // tc

    th = _pick_row_tile(Ho, Wo, tc, cap=row_tile_cap)
    n_rt = -(-Ho // th)                            # cdiv
    Ho_pad = n_rt * th

    # Padded input extents; extra bottom rows so a (padded) last row-tile stays in bounds.
    Hp = max(H + 2 * padding, (Ho_pad - 1) * stride + kh)
    Wp = max(W + 2 * padding, (Wo - 1) * stride + kw)

    # ---- glue: NCHW -> padded NHWC, bf16, channel-pad ----------------------------------
    # TODO(synk): these transpose/pad passes are wrapper-side HBM traffic required only
    # because the module interface is NCHW; an NHWC-native network would skip them.
    x_nhwc = jnp.transpose(x_nchw, (0, 2, 3, 1)).astype(jnp.bfloat16)
    xp = jnp.pad(x_nhwc,
                 ((0, 0),
                  (padding, Hp - H - padding),
                  (padding, Wp - W - padding),
                  (0, Cin_pad - Cin)))

    # ---- fold BN (inference mode, running stats) into weight scale + shift -------------
    # TODO(synk): training-mode BN (batch statistics) would need a cross-tile reduction
    # pass; only inference-mode BN is implemented here.
    inv_std = gamma.astype(jnp.float32) / jnp.sqrt(running_var.astype(jnp.float32) + eps)
    shift = beta.astype(jnp.float32) - running_mean.astype(jnp.float32) * inv_std
    w_taps = jnp.transpose(weight, (2, 3, 1, 0)).astype(jnp.float32) * inv_std  # (kh,kw,Cin,Cout)
    w_taps = w_taps.reshape(kh * kw, Cin, Cout)
    w_taps = jnp.pad(w_taps, ((0, 0), (0, Cin_pad - Cin), (0, Cout_pad - Cout)))
    w_taps = w_taps.astype(jnp.bfloat16)
    shift = jnp.pad(shift, (0, Cout_pad - Cout)).reshape(1, Cout_pad)

    out_dtype = x_nchw.dtype

    # ---- VMEM budget: actual demand + headroom (never the whole 64 MiB on v7x) ---------
    in_block = Hp * Wp * Cin_pad * 2
    w_bytes = kh * kw * Cin_pad * tc * 2
    out_block = th * Wo * tc * jnp.dtype(out_dtype).itemsize
    acc_bytes = th * Wo * tc * 4
    demand = 2 * in_block + 2 * w_bytes + 2 * out_block + 3 * acc_bytes + 2 * tc * 4
    vmem_limit = int(min(48 * 1024 * 1024, max(16 * 1024 * 1024, demand + 8 * 1024 * 1024)))

    kernel = functools.partial(_conv_bn_relu_kernel,
                               kh=kh, kw=kw, stride=stride, th=th, wo=Wo)

    # ---- hot path: fused conv taps + BN shift + ReLU ------------------------------------
    out = pl.pallas_call(
        kernel,
        out_shape=jax.ShapeDtypeStruct((N, Ho_pad, Wo, Cout_pad), out_dtype),
        grid_spec=pltpu.PrefetchScalarGridSpec(
            num_scalar_prefetch=0,
            grid=(N, n_ct, n_rt),
            in_specs=[
                # Whole padded image of batch n stays VMEM resident across (ct, rt).
                # TODO(synk): for very large feature maps (v7x: 64 MiB VMEM) switch to
                # H-banded input blocks carrying a (th*stride + kh - 1)-row halo.
                pl.BlockSpec((None, Hp, Wp, Cin_pad), lambda n, ct, rt: (n, 0, 0, 0)),
                pl.BlockSpec((kh * kw, Cin_pad, tc), lambda n, ct, rt: (0, 0, ct)),
                pl.BlockSpec((1, tc), lambda n, ct, rt: (0, ct)),
            ],
            out_specs=pl.BlockSpec((None, th, Wo, tc), lambda n, ct, rt: (n, rt, 0, ct)),
        ),
        compiler_params=pltpu.CompilerParams(
            # Only N is megacore-sharded so the resident image is not duplicated per core.
            dimension_semantics=("parallel", "arbitrary", "arbitrary"),
            vmem_limit_bytes=vmem_limit),
    )(xp, w_taps, shift)

    out = out[:, :Ho, :, :Cout]                     # drop row / channel padding
    return jnp.transpose(out, (0, 3, 1, 2))         # NHWC -> NCHW


def _reference(x_nchw, weight, gamma, beta, mean, var, *, stride, padding, eps):
    y = jax.lax.conv_general_dilated(
        x_nchw, weight, window_strides=(stride, stride),
        padding=[(padding, padding), (padding, padding)],
        dimension_numbers=("NCHW", "OIHW", "NCHW"))
    inv = gamma / jnp.sqrt(var + eps)
    y = y * inv[None, :, None, None] + (beta - mean * inv)[None, :, None, None]
    return jnp.maximum(y, 0.0)


if __name__ == "__main__":
    key = jax.random.PRNGKey(0)
    k_x, k_w, k_g, k_b, k_m, k_v = jax.random.split(key, 6)

    N, Cin, H, W = 2, 4, 16, 16
    Cout, kh, kw = 8, 3, 3
    stride, padding = 1, 1

    x = jax.random.normal(k_x, (N, Cin, H, W), dtype=jnp.float32)
    fan_in = Cin * kh * kw
    weight = jax.random.normal(k_w, (Cout, Cin, kh, kw), dtype=jnp.float32) / np.sqrt(fan_in)
    gamma = jax.random.uniform(k_g, (Cout,), jnp.float32, 0.5, 1.5)
    beta = 0.1 * jax.random.normal(k_b, (Cout,), jnp.float32)
    running_mean = 0.1 * jax.random.normal(k_m, (Cout,), jnp.float32)
    running_var = jax.random.uniform(k_v, (Cout,), jnp.float32, 0.5, 1.5)

    out = basic_conv2d(x, weight, gamma, beta, running_mean, running_var,
                       stride=stride, padding=padding, eps=1e-3)
    out = jax.block_until_ready(out)

    ref = _reference(x, weight, gamma, beta, running_mean, running_var,
                     stride=stride, padding=padding, eps=1e-3)
    ref = jax.block_until_ready(ref)

    assert out.shape == (N, Cout, H, W), out.shape
    # bf16 activations/weights with f32 accumulation => loosened tolerance vs f32 reference.
    np.testing.assert_allclose(np.asarray(out), np.asarray(ref), rtol=5e-2, atol=5e-2)
    print("KERNEL_OK")
</pallas_src>

<mosaic_0001>
module attributes {stable_mosaic.version = 11 : i64} {
  func.func @_conv_bn_relu_kernel(%arg0: i32, %arg1: i32, %arg2: i32, %arg3: memref<1x18x18x16xbf16, #tpu.memory_space<vmem>>, %arg4: memref<9x16x128xbf16, #tpu.memory_space<vmem>>, %arg5: memref<1x128xf32, #tpu.memory_space<vmem>>, %arg6: memref<1x16x16x128xf32, #tpu.memory_space<vmem>>) attributes {dimension_semantics = [#tpu.dimension_semantics<parallel>, #tpu.dimension_semantics<arbitrary>, #tpu.dimension_semantics<arbitrary>], iteration_bounds = array<i64: 2, 1, 1>, scalar_prefetch = 0 : i64, scratch_operands = 0 : i64, tpu.core_type = #tpu.core_type<tc>, window_params = [{transform_indices = @transform_0, window_bounds = array<i64: 1, 18, 18, 16>}, {transform_indices = @transform_1, window_bounds = array<i64: 9, 16, 128>}, {transform_indices = @transform_2, window_bounds = array<i64: 1, 128>}, {transform_indices = @transform_3, window_bounds = array<i64: 1, 16, 16, 128>}]} {
    %c16_i32 = arith.constant 16 : i32
    %0 = arith.muli %arg2, %c16_i32 : i32
    %cst = arith.constant 0.000000e+00 : f32
    %1 = vector.broadcast %cst : f32 to vector<256x128xf32>
    %c0_i32 = arith.constant 0 : i32
    %2 = arith.addi %0, %c0_i32 : i32
    %c0 = arith.constant 0 : index
    %3 = arith.index_cast %2 : i32 to index
    %c0_0 = arith.constant 0 : index
    %c0_1 = arith.constant 0 : index
    %4 = vector.load %arg3[%c0, %3, %c0_0, %c0_1] : memref<1x18x18x16xbf16, #tpu.memory_space<vmem>>, vector<1x16x16x16xbf16>
    %5 = vector.shape_cast %4 : vector<1x16x16x16xbf16> to vector<16x16x16xbf16>
    %6 = vector.shape_cast %5 : vector<16x16x16xbf16> to vector<256x16xbf16>
    %c0_2 = arith.constant 0 : index
    %c0_3 = arith.constant 0 : index
    %c0_4 = arith.constant 0 : index
    %7 = vector.load %arg4[%c0_2, %c0_3, %c0_4] : memref<9x16x128xbf16, #tpu.memory_space<vmem>>, vector<1x16x128xbf16>
    %8 = vector.shape_cast %7 : vector<1x16x128xbf16> to vector<16x128xbf16>
    %cst_5 = arith.constant dense<0.000000e+00> : vector<256x128xf32>
    %9 = tpu.matmul %6, %8, %cst_5 {dimension_numbers = #tpu.dot_dimension_numbers<[1], [0], [0], [1], [0, 0, 1, 1], [], []>} : vector<256x16xbf16>, vector<16x128xbf16>, vector<256x128xf32> -> vector<256x128xf32>
    %10 = arith.addf %1, %9 : vector<256x128xf32>
    %c0_i32_6 = arith.constant 0 : i32
    %11 = arith.addi %0, %c0_i32_6 : i32
    %c0_7 = arith.constant 0 : index
    %12 = arith.index_cast %11 : i32 to index
    %c1 = arith.constant 1 : index
    %c0_8 = arith.constant 0 : index
    %13 = vector.load %arg3[%c0_7, %12, %c1, %c0_8] : memref<1x18x18x16xbf16, #tpu.memory_space<vmem>>, vector<1x16x16x16xbf16>
    %14 = vector.shape_cast %13 : vector<1x16x16x16xbf16> to vector<16x16x16xbf16>
    %15 = vector.shape_cast %14 : vector<16x16x16xbf16> to vector<256x16xbf16>
    %c1_9 = arith.constant 1 : index
    %c0_10 = arith.constant 0 : index
    %c0_11 = arith.constant 0 : index
    %16 = vector.load %arg4[%c1_9, %c0_10, %c0_11] : memref<9x16x128xbf16, #tpu.memory_space<vmem>>, vector<1x16x128xbf16>
    %17 = vector.shape_cast %16 : vector<1x16x128xbf16> to vector<16x128xbf16>
    %cst_12 = arith.constant dense<0.000000e+00> : vector<256x128xf32>
    %18 = tpu.matmul %15, %17, %cst_12 {dimension_numbers = #tpu.dot_dimension_numbers<[1], [0], [0], [1], [0, 0, 1, 1], [], []>} : vector<256x16xbf16>, vector<16x128xbf16>, vector<256x128xf32> -> vector<256x128xf32>
    %19 = arith.addf %10, %18 : vector<256x128xf32>
    %c0_i32_13 = arith.constant 0 : i32
    %20 = arith.addi %0, %c0_i32_13 : i32
    %c0_14 = arith.constant 0 : index
    %21 = arith.index_cast %20 : i32 to index
    %c2 = arith.constant 2 : index
    %c0_15 = arith.constant 0 : index
    %22 = vector.load %arg3[%c0_14, %21, %c2, %c0_15] : memref<1x18x18x16xbf16, #tpu.memory_space<vmem>>, vector<1x16x16x16xbf16>
    %23 = vector.shape_cast %22 : vector<1x16x16x16xbf16> to vector<16x16x16xbf16>
    %24 = vector.shape_cast %23 : vector<16x16x16xbf16> to vector<256x16xbf16>
    %c2_16 = arith.constant 2 : index
    %c0_17 = arith.constant 0 : index
    %c0_18 = arith.constant 0 : index
    %25 = vector.load %arg4[%c2_16, %c0_17, %c0_18] : memref<9x16x128xbf16, #tpu.memory_space<vmem>>, vector<1x16x128xbf16>
    %26 = vector.shape_cast %25 : vector<1x16x128xbf16> to vector<16x128xbf16>
    %cst_19 = arith.constant dense<0.000000e+00> : vector<256x128xf32>
    %27 = tpu.matmul %24, %26, %cst_19 {dimension_numbers = #tpu.dot_dimension_numbers<[1], [0], [0], [1], [0, 0, 1, 1], [], []>} : vector<256x16xbf16>, vector<16x128xbf16>, vector<256x128xf32> -> vector<256x128xf32>
    %28 = arith.addf %19, %27 : vector<256x128xf32>
    %c1_i32 = arith.constant 1 : i32
    %29 = arith.addi %0, %c1_i32 : i32
    %c0_20 = arith.constant 0 : index
    %30 = arith.index_cast %29 : i32 to index
    %c0_21 = arith.constant 0 : index
    %c0_22 = arith.constant 0 : index
    %31 = vector.load %arg3[%c0_20, %30, %c0_21, %c0_22] : memref<1x18x18x16xbf16, #tpu.memory_space<vmem>>, vector<1x16x16x16xbf16>
    %32 = vector.shape_cast %31 : vector<1x16x16x16xbf16> to vector<16x16x16xbf16>
    %33 = vector.shape_cast %32 : vector<16x16x16xbf16> to vector<256x16xbf16>
    %c3 = arith.constant 3 : index
    %c0_23 = arith.constant 0 : index
    %c0_24 = arith.constant 0 : index
    %34 = vector.load %arg4[%c3, %c0_23, %c0_24] : memref<9x16x128xbf16, #tpu.memory_space<vmem>>, vector<1x16x128xbf16>
    %35 = vector.shape_cast %34 : vector<1x16x128xbf16> to vector<16x128xbf16>
    %cst_25 = arith.constant dense<0.000000e+00> : vector<256x128xf32>
    %36 = tpu.matmul %33, %35, %cst_25 {dimension_numbers = #tpu.dot_dimension_numbers<[1], [0], [0], [1], [0, 0, 1, 1], [], []>} : vector<256x16xbf16>, vector<16x128xbf16>, vector<256x128xf32> -> vector<256x128xf32>
    %37 = arith.addf %28, %36 : vector<256x128xf32>
    %c1_i32_26 = arith.constant 1 : i32
    %38 = arith.addi %0, %c1_i32_26 : i32
    %c0_27 = arith.constant 0 : index
    %39 = arith.index_cast %38 : i32 to index
    %c1_28 = arith.constant 1 : index
    %c0_29 = arith.constant 0 : index
    %40 = vector.load %arg3[%c0_27, %39, %c1_28, %c0_29] : memref<1x18x18x16xbf16, #tpu.memory_space<vmem>>, vector<1x16x16x16xbf16>
    %41 = vector.shape_cast %40 : vector<1x16x16x16xbf16> to vector<16x16x16xbf16>
    %42 = vector.shape_cast %41 : vector<16x16x16xbf16> to vector<256x16xbf16>
    %c4 = arith.constant 4 : index
    %c0_30 = arith.constant 0 : index
    %c0_31 = arith.constant 0 : index
    %43 = vector.load %arg4[%c4, %c0_30, %c0_31] : memref<9x16x128xbf16, #tpu.memory_space<vmem>>, vector<1x16x128xbf16>
    %44 = vector.shape_cast %43 : vector<1x16x128xbf16> to vector<16x128xbf16>
    %cst_32 = arith.constant dense<0.000000e+00> : vector<256x128xf32>
    %45 = tpu.matmul %42, %44, %cst_32 {dimension_numbers = #tpu.dot_dimension_numbers<[1], [0], [0], [1], [0, 0, 1, 1], [], []>} : vector<256x16xbf16>, vector<16x128xbf16>, vector<256x128xf32> -> vector<256x128xf32>
    %46 = arith.addf %37, %45 : vector<256x128xf32>
    %c1_i32_33 = arith.constant 1 : i32
    %47 = arith.addi %0, %c1_i32_33 : i32
    %c0_34 = arith.constant 0 : index
    %48 = arith.index_cast %47 : i32 to index
    %c2_35 = arith.constant 2 : index
    %c0_36 = arith.constant 0 : index
    %49 = vector.load %arg3[%c0_34, %48, %c2_35, %c0_36] : memref<1x18x18x16xbf16, #tpu.memory_space<vmem>>, vector<1x16x16x16xbf16>
    %50 = vector.shape_cast %49 : vector<1x16x16x16xbf16> to vector<16x16x16xbf16>
    %51 = vector.shape_cast %50 : vector<16x16x16xbf16> to vector<256x16xbf16>
    %c5 = arith.constant 5 : index
    %c0_37 = arith.constant 0 : index
    %c0_38 = arith.constant 0 : index
    %52 = vector.load %arg4[%c5, %c0_37, %c0_38] : memref<9x16x128xbf16, #tpu.memory_space<vmem>>, vector<1x16x128xbf16>
    %53 = vector.shape_cast %52 : vector<1x16x128xbf16> to vector<16x128xbf16>
    %cst_39 = arith.constant dense<0.000000e+00> : vector<256x128xf32>
    %54 = tpu.matmul %51, %53, %cst_39 {dimension_numbers = #tpu.dot_dimension_numbers<[1], [0], [0], [1], [0, 0, 1, 1], [], []>} : vector<256x16xbf16>, vector<16x128xbf16>, vector<256x128xf32> -> vector<256x128xf32>
    %55 = arith.addf %46, %54 : vector<256x128xf32>
    %c2_i32 = arith.constant 2 : i32
    %56 = arith.addi %0, %c2_i32 : i32
    %c0_40 = arith.constant 0 : index
    %57 = arith.index_cast %56 : i32 to index
    %c0_41 = arith.constant 0 : index
    %c0_42 = arith.constant 0 : index
    %58 = vector.load %arg3[%c0_40, %57, %c0_41, %c0_42] : memref<1x18x18x16xbf16, #tpu.memory_space<vmem>>, vector<1x16x16x16xbf16>
    %59 = vector.shape_cast %58 : vector<1x16x16x16xbf16> to vector<16x16x16xbf16>
    %60 = vector.shape_cast %59 : vector<16x16x16xbf16> to vector<256x16xbf16>
    %c6 = arith.constant 6 : index
    %c0_43 = arith.constant 0 : index
    %c0_44 = arith.constant 0 : index
    %61 = vector.load %arg4[%c6, %c0_43, %c0_44] : memref<9x16x128xbf16, #tpu.memory_space<vmem>>, vector<1x16x128xbf16>
    %62 = vector.shape_cast %61 : vector<1x16x128xbf16> to vector<16x128xbf16>
    %cst_45 = arith.constant dense<0.000000e+00> : vector<256x128xf32>
    %63 = tpu.matmul %60, %62, %cst_45 {dimension_numbers = #tpu.dot_dimension_numbers<[1], [0], [0], [1], [0, 0, 1, 1], [], []>} : vector<256x16xbf16>, vector<16x128xbf16>, vector<256x128xf32> -> vector<256x128xf32>
    %64 = arith.addf %55, %63 : vector<256x128xf32>
    %c2_i32_46 = arith.constant 2 : i32
    %65 = arith.addi %0, %c2_i32_46 : i32
    %c0_47 = arith.constant 0 : index
    %66 = arith.index_cast %65 : i32 to index
    %c1_48 = arith.constant 1 : index
    %c0_49 = arith.constant 0 : index
    %67 = vector.load %arg3[%c0_47, %66, %c1_48, %c0_49] : memref<1x18x18x16xbf16, #tpu.memory_space<vmem>>, vector<1x16x16x16xbf16>
    %68 = vector.shape_cast %67 : vector<1x16x16x16xbf16> to vector<16x16x16xbf16>
    %69 = vector.shape_cast %68 : vector<16x16x16xbf16> to vector<256x16xbf16>
    %c7 = arith.constant 7 : index
    %c0_50 = arith.constant 0 : index
    %c0_51 = arith.constant 0 : index
    %70 = vector.load %arg4[%c7, %c0_50, %c0_51] : memref<9x16x128xbf16, #tpu.memory_space<vmem>>, vector<1x16x128xbf16>
    %71 = vector.shape_cast %70 : vector<1x16x128xbf16> to vector<16x128xbf16>
    %cst_52 = arith.constant dense<0.000000e+00> : vector<256x128xf32>
    %72 = tpu.matmul %69, %71, %cst_52 {dimension_numbers = #tpu.dot_dimension_numbers<[1], [0], [0], [1], [0, 0, 1, 1], [], []>} : vector<256x16xbf16>, vector<16x128xbf16>, vector<256x128xf32> -> vector<256x128xf32>
    %73 = arith.addf %64, %72 : vector<256x128xf32>
    %c2_i32_53 = arith.constant 2 : i32
    %74 = arith.addi %0, %c2_i32_53 : i32
    %c0_54 = arith.constant 0 : index
    %75 = arith.index_cast %74 : i32 to index
    %c2_55 = arith.constant 2 : index
    %c0_56 = arith.constant 0 : index
    %76 = vector.load %arg3[%c0_54, %75, %c2_55, %c0_56] : memref<1x18x18x16xbf16, #tpu.memory_space<vmem>>, vector<1x16x16x16xbf16>
    %77 = vector.shape_cast %76 : vector<1x16x16x16xbf16> to vector<16x16x16xbf16>
    %78 = vector.shape_cast %77 : vector<16x16x16xbf16> to vector<256x16xbf16>
    %c8 = arith.constant 8 : index
    %c0_57 = arith.constant 0 : index
    %c0_58 = arith.constant 0 : index
    %79 = vector.load %arg4[%c8, %c0_57, %c0_58] : memref<9x16x128xbf16, #tpu.memory_space<vmem>>, vector<1x16x128xbf16>
    %80 = vector.shape_cast %79 : vector<1x16x128xbf16> to vector<16x128xbf16>
    %cst_59 = arith.constant dense<0.000000e+00> : vector<256x128xf32>
    %81 = tpu.matmul %78, %80, %cst_59 {dimension_numbers = #tpu.dot_dimension_numbers<[1], [0], [0], [1], [0, 0, 1, 1], [], []>} : vector<256x16xbf16>, vector<16x128xbf16>, vector<256x128xf32> -> vector<256x128xf32>
    %82 = arith.addf %73, %81 : vector<256x128xf32>
    %c0_60 = arith.constant 0 : index
    %c0_61 = arith.constant 0 : index
    %83 = vector.load %arg5[%c0_60, %c0_61] : memref<1x128xf32, #tpu.memory_space<vmem>>, vector<1x128xf32>
    %84 = vector.broadcast %83 : vector<1x128xf32> to vector<256x128xf32>
    %85 = arith.addf %82, %84 : vector<256x128xf32>
    %cst_62 = arith.constant 0.000000e+00 : f32
    %86 = vector.broadcast %cst_62 : f32 to vector<256x128xf32>
    %87 = arith.maximumf %85, %86 : vector<256x128xf32>
    %88 = vector.shape_cast %87 : vector<256x128xf32> to vector<16x16x128xf32>
    %c0_63 = arith.constant 0 : index
    %c0_64 = arith.constant 0 : index
    %c0_65 = arith.constant 0 : index
    %c0_66 = arith.constant 0 : index
    %89 = vector.load %arg6[%c0_63, %c0_64, %c0_65, %c0_66] : memref<1x16x16x128xf32, #tpu.memory_space<vmem>>, vector<1x16x16x128xf32>
    %90 = vector.shape_cast %89 : vector<1x16x16x128xf32> to vector<16x16x128xf32>
    %91 = vector.shape_cast %88 : vector<16x16x128xf32> to vector<1x16x16x128xf32>
    tpu.vector_store %arg6[%c0_63, %c0_64, %c0_65, %c0_66], %91 {strides = array<i32>} : memref<1x16x16x128xf32, #tpu.memory_space<vmem>>, vector<1x16x16x128xf32>,
    return
  }
  func.func @transform_0(%arg0: i32, %arg1: i32, %arg2: i32) -> (i32, i32, i32, i32) {
    %c0_i32 = arith.constant 0 : i32
    %c0_i32_0 = arith.constant 0 : i32
    %c0_i32_1 = arith.constant 0 : i32
    %c0_i32_2 = arith.constant 0 : i32
    return %arg0, %c0_i32, %c0_i32_0, %c0_i32_1 : i32, i32, i32, i32
  }
  func.func @transform_1(%arg0: i32, %arg1: i32, %arg2: i32) -> (i32, i32, i32) {
    %c0_i32 = arith.constant 0 : i32
    %c0_i32_0 = arith.constant 0 : i32
    %c0_i32_1 = arith.constant 0 : i32
    return %c0_i32, %c0_i32_0, %arg1 : i32, i32, i32
  }
  func.func @transform_2(%arg0: i32, %arg1: i32, %arg2: i32) -> (i32, i32) {
    %c0_i32 = arith.constant 0 : i32
    %c0_i32_0 = arith.constant 0 : i32
    return %c0_i32, %arg1 : i32, i32
  }
  func.func @transform_3(%arg0: i32, %arg1: i32, %arg2: i32) -> (i32, i32, i32, i32) {
    %c0_i32 = arith.constant 0 : i32
    %c0_i32_0 = arith.constant 0 : i32
    return %arg0, %arg2, %c0_i32, %arg1 : i32, i32, i32, i32
  }
}

</mosaic_0001>

<llo_original>
// kernel: tpu_custom_call.1
$region0: #{tpu_custom_call.1}
  #allocation0 [shape = 'u32[]', space=smem, size = 0x4, offset = 0x4, fixed_abs, tag = 'smem constant byte address 0x4 - core index']
  #allocation1 [shape = 'u32[144,128]{1,0:T(1,128)}', space=vmem, size = 0x12000, scoped, tag = 'internal scratch']
  %s0 = inlined_call_operand.vmem [shape: bf16[2,18,18,16], index: 0, kind: input, shape index: {}]
  %s1 = inlined_call_operand.vmem [shape: bf16[9,16,128], index: 1, kind: input, shape index: {}]
  %s2 = inlined_call_operand.vmem [shape: f32[1,128], index: 2, kind: input, shape index: {}]
  %s3 = inlined_call_operand.hbm [shape: f32[2,16,16,128], index: 3, kind: output, shape index: {}]
  %s4 = sld [smem:[#allocation0]]
  $region45: #{tpu_custom_call.1} parent=0
    _
  %s6 = ssub.s32 1, %s4
  %s7 = scalar_select 0, %s6, %s4
  $region1: #{tpu_custom_call.1} parent=0
    #allocation2 [shape = 'u8[262144]{0}', space=vmem, size = 0x40000, scoped, tag = 'output window, operand 0']
    #allocation3 [shape = 's32[2]{0}', space=sflag, size = 0x8, scoped, tag = 'scoped memory for tpu_custom_call.1']
    %8 = vsyncpa [#allocation3], 0
    %s9 = scalar_lea.sflag [#allocation3], 1
    %10 = vsyncpa %s9, 0
    loop: start=0, step=1, limit=4
    $region2: #{tpu_custom_call.1} parent=1 // loop_pre_header
      _
    $region3: #{tpu_custom_call.1} parent=1 // loop_header
      %s12 = sphi 0, %s16
      %p13 = scmp.ge.s32.totalorder %s12, 4
      %s19 = sphi 0, %s38
      %s20 = sphi 0, %s34
      %s21 = sphi 0, %s30
      %s22 = sphi 0, %s19
      %s23 = sphi 0, %s20
      %s24 = sphi 0, %s21
      %s25 = sphi 0, %s22
      %s26 = sphi 0, %s23
      %s27 = sphi 0, %s24
      %s41 = sphi 0, %s43
      %s44 = sphi 0, %s41
      %s45 = sphi 0, %s44
      %s61 = sphi 0, %s45
      %s67 = sphi 0, %s69
      %s70 = sphi 0, %s67
      %s71 = sphi 0, %s70
      %s87 = sphi 0, %s71
      %s93 = sphi 0, %s95
      %s96 = sphi 0, %s93
      %s97 = sphi 0, %s96
      %s113 = sphi 0, %s97
      %s123 = sphi 0, %s125
      %s126 = sphi 0, %s123
      %s127 = sphi 0, %s126
      %s143 = sphi 0, %s127
    $region4: #{tpu_custom_call.1} parent=1 // loop_header_branch
      %15 = sbr.rel (%p13) target = $region8
    $region5: #{tpu_custom_call.1} parent=1 // loop_body
      %s17 = ssub.s32 %s12, 1
      %s18 = ssub.s32 %s12, 2
      %s28 = sadd.s32 1, %s21
      %p29 = scmp.ge.s32.totalorder %s28, 1
      %s30 = scalar_select %p29, 0, %s28
      %s31 = sadd.s32 1, %s20
      %s32 = scalar_select %p29, %s31, %s20
      %p33 = scmp.ge.s32.totalorder %s32, 1
      %s34 = scalar_select %p33, 0, %s32
      %s35 = sadd.s32 1, %s19
      %s36 = scalar_select %p33, %s35, %s19
      %p37 = scmp.ge.s32.totalorder %s36, 2
      %s38 = scalar_select %p37, 0, %s36
      %s39 = ssub.s32 %s19, %s38
      %p40 = scmp.eq.s32.totalorder %s39, 0
      %s42 = sadd.s32 %s41, 1
      %s43 = scalar_select %p40, %s41, %s42
      %p46 = pneg %p40
      %p47 = scmp.eq.s32.totalorder %s12, 1
      %p48 = por %p46, %p47
      %p49 = scmp.ne.s32.totalorder %s41, %s44
      %p50 = scmp.eq.s32.totalorder %s12, 0
      %p51 = por %p49, %p50
      %p52 = scmp.ne.s32.totalorder %s41, %s44
      %p53 = scmp.eq.s32.totalorder %s17, 1
      %p54 = por %p52, %p53
      %p55 = scmp.ne.s32.totalorder %s44, %s45
      %p56 = scmp.eq.s32.totalorder %s17, 0
      %p57 = por %p55, %p56
      %p58 = scmp.ne.s32.totalorder %s44, %s45
      %p59 = scmp.eq.s32.totalorder %s18, 1
      %p60 = por %p58, %p59
      %p62 = scmp.ne.s32.totalorder %s45, %s61
      %p63 = scmp.eq.s32.totalorder %s18, 0
      %p64 = por %p62, %p63
      %s65 = ssub.s32 %s20, %s34
      %p66 = scmp.eq.s32.totalorder %s65, 0
      %s68 = sadd.s32 %s67, 1
      %s69 = scalar_select %p66, %s67, %s68
      %p72 = pneg %p66
      %p73 = scmp.eq.s32.totalorder %s12, 1
      %p74 = por %p72, %p73
      %p75 = scmp.ne.s32.totalorder %s67, %s70
      %p76 = scmp.eq.s32.totalorder %s12, 0
      %p77 = por %p75, %p76
      %p78 = scmp.ne.s32.totalorder %s67, %s70
      %p79 = scmp.eq.s32.totalorder %s17, 1
      %p80 = por %p78, %p79
      %p81 = scmp.ne.s32.totalorder %s70, %s71
      %p82 = scmp.eq.s32.totalorder %s17, 0
      %p83 = por %p81, %p82
      %p84 = scmp.ne.s32.totalorder %s70, %s71
      %p85 = scmp.eq.s32.totalorder %s18, 1
      %p86 = por %p84, %p85
      %p88 = scmp.ne.s32.totalorder %s71, %s87
      %p89 = scmp.eq.s32.totalorder %s18, 0
      %p90 = por %p88, %p89
      %s91 = ssub.s32 %s20, %s34
      %p92 = scmp.eq.s32.totalorder %s91, 0
      %s94 = sadd.s32 %s93, 1
      %s95 = scalar_select %p92, %s93, %s94
      %p98 = pneg %p92
      %p99 = scmp.eq.s32.totalorder %s12, 1
      %p100 = por %p98, %p99
      %p101 = scmp.ne.s32.totalorder %s93, %s96
      %p102 = scmp.eq.s32.totalorder %s12, 0
      %p103 = por %p101, %p102
      %p104 = scmp.ne.s32.totalorder %s93, %s96
      %p105 = scmp.eq.s32.totalorder %s17, 1
      %p106 = por %p104, %p105
      %p107 = scmp.ne.s32.totalorder %s96, %s97
      %p108 = scmp.eq.s32.totalorder %s17, 0
      %p109 = por %p107, %p108
      %p110 = scmp.ne.s32.totalorder %s96, %s97
      %p111 = scmp.eq.s32.totalorder %s18, 1
      %p112 = por %p110, %p111
      %p114 = scmp.ne.s32.totalorder %s97, %s113
      %p115 = scmp.eq.s32.totalorder %s18, 0
      %p116 = por %p114, %p115
      %s117 = ssub.s32 %s19, %s38
      %s118 = ssub.s32 %s21, %s30
      %s119 = sor.u32 %s117, %s118
      %s120 = ssub.s32 %s20, %s34
      %s121 = sor.u32 %s119, %s120
      %p122 = scmp.eq.s32.totalorder %s121, 0
      %s124 = sadd.s32 %s123, 1
      %s125 = scalar_select %p122, %s123, %s124
      %p128 = pneg %p122
      %p129 = scmp.eq.s32.totalorder %s12, 1
      %p130 = por %p128, %p129
      %p131 = scmp.ne.s32.totalorder %s123, %s126
      %p132 = scmp.eq.s32.totalorder %s12, 0
      %p133 = por %p131, %p132
      %p134 = scmp.ne.s32.totalorder %s123, %s126
      %p135 = scmp.eq.s32.totalorder %s17, 1
      %p136 = por %p134, %p135
      %p137 = scmp.ne.s32.totalorder %s126, %s127
      %p138 = scmp.eq.s32.totalorder %s17, 0
      %p139 = por %p137, %p138
      %p140 = scmp.ne.s32.totalorder %s126, %s127
      %p141 = scmp.eq.s32.totalorder %s18, 1
      %p142 = por %p140, %p141
      %p144 = scmp.ne.s32.totalorder %s127, %s143
      %p145 = scmp.eq.s32.totalorder %s18, 0
      %p146 = por %p144, %p145
      %p147 = scmp.le.s32.totalorder 1, %s12
      %p148 = scmp.lt.s32.totalorder %s12, 3
      %p149 = pnand %p147, %p148
      %p150 = pneg %p149
      // Predicated region
      $region9: #{tpu_custom_call.1} parent=5 // pred_check
        _
      $region10: #{tpu_custom_call.1} parent=5 // pred_check_branch
        %152 = sbr.rel (%p149) target = $region12
      $region11: #{tpu_custom_call.1} parent=5 // pred_region
        %s153 = ssub.s32 %s12, 1
        // Predicated region
        $region13: #{tpu_custom_call.1} parent=11 // pred_check
          %p154 = pneg %p83
        $region14: #{tpu_custom_call.1} parent=11 // pred_check_branch
          %156 = sbr.rel (%p154) target = $region16
        $region15: #{tpu_custom_call.1} parent=11 // pred_region
          %p157 = scmp.lt.s32.totalorder %s23, 0
          %s158 = scalar_select %p157, %s23, 0
          %s159 = smul.addr %s158, 4
          %s160 = scalar_lea.vmem %s1, %s159
        $region16: #{tpu_custom_call.1} parent=11 // pred_fallthru
          _
        // Predicated region
        $region17: #{tpu_custom_call.1} parent=11 // pred_check
          %p161 = pneg %p109
        $region18: #{tpu_custom_call.1} parent=11 // pred_check_branch
          %163 = sbr.rel (%p161) target = $region20
        $region19: #{tpu_custom_call.1} parent=11 // pred_region
          %p164 = scmp.lt.s32.totalorder %s23, 0
          %s165 = scalar_select %p164, %s23, 0
          %s166 = scalar_lea.vmem %s2, %s165
        $region20: #{tpu_custom_call.1} parent=11 // pred_fallthru
          _
      $region12: #{tpu_custom_call.1} parent=5 // pred_fallthru
        _
      %p167 = scmp.lt.s32.totalorder %s12, 2
      // Predicated region
      $region21: #{tpu_custom_call.1} parent=5 // pred_check
        %p168 = pneg %p167
      $region22: #{tpu_custom_call.1} parent=5 // pred_check_branch
        %170 = sbr.rel (%p168) target = $region24
      $region23: #{tpu_custom_call.1} parent=5 // pred_region
        // Predicated region
        $region25: #{tpu_custom_call.1} parent=23 // pred_check
          %p171 = pneg %p51
        $region26: #{tpu_custom_call.1} parent=23 // pred_check_branch
          %173 = sbr.rel (%p171) target = $region28
        $region27: #{tpu_custom_call.1} parent=23 // pred_region
          %p174 = scmp.lt.s32.totalorder %s19, 1
          %s175 = scalar_select %p174, %s19, 1
          %s176 = smul.addr %s175, 54
          %s177 = smul.addr %s176, 4
          %s178 = scalar_lea.vmem %s0, %s177
        $region28: #{tpu_custom_call.1} parent=23 // pred_fallthru
          _
      $region24: #{tpu_custom_call.1} parent=5 // pred_fallthru
        _
      %p179 = scmp.le.s32.totalorder 1, %s12
      %p180 = scmp.lt.s32.totalorder %s12, 3
      %p181 = pnand %p179, %p180
      %p182 = pneg %p181
      // Predicated region
      $region29: #{tpu_custom_call.1} parent=5 // pred_check
        _
      $region30: #{tpu_custom_call.1} parent=5 // pred_check_branch
        %184 = sbr.rel (%p181) target = $region32
      $region31: #{tpu_custom_call.1} parent=5 // pred_region
        %s185 = ssub.s32 %s12, 1
        %p186 = scmp.lt.s32.totalorder %s22, 1
        %s187 = scalar_select %p186, %s22, 1
        %s188 = smul.addr %s187, 54
        %s189 = smul.addr %s188, 4
        %s190 = scalar_lea.vmem %s0, %s189
        %p191 = pneg %p57
        %p192 = pneg %p54
        %p193 = scmp.lt.s32.totalorder %s23, 0
        %s194 = scalar_select %p193, %s23, 0
        %s195 = smul.addr %s194, 4
        %s196 = scalar_lea.vmem %s1, %s195
        %p197 = pneg %p83
        %p198 = pneg %p80
        %p199 = scmp.lt.s32.totalorder %s23, 0
        %s200 = scalar_select %p199, %s23, 0
        %s201 = scalar_lea.vmem %s2, %s200
        %p202 = pneg %p109
        %p203 = pneg %p106
        %p204 = pneg %p139
        %p205 = pneg %p136
        %s206 = sand.u32 %s126, 1
        %s207 = scalar_lea.sflag [#allocation3], %s206
        %s208 = sand.u32 %s126, 1
        %s209 = smul.addr %s208, 256
        %s210 = scalar_lea.vmem [#allocation2], %s209
        %p211 = scmp.lt.s32.totalorder %s22, 1
        %s212 = scalar_select %p211, %s22, 1
        %s213 = smul.addr %s212, 54
        %s214 = smul.addr %s213, 4
        %s215 = scalar_lea.vmem %s0, %s214
        %p216 = scmp.lt.s32.totalorder %s23, 0
        %s217 = scalar_select %p216, %s23, 0
        %s218 = smul.addr %s217, 4
        %s219 = scalar_lea.vmem %s1, %s218
        %p220 = scmp.lt.s32.totalorder %s23, 0
        %s221 = scalar_select %p220, %s23, 0
        %s222 = scalar_lea.vmem %s2, %s221
        %s223 = smul.u32 16, %s24
        %s225 = smul.u32 %s24, 16
        %s226 = smul.u32 %s225, 3
        %s227 = smul.addr %s226, 4
        %s228 = scalar_lea.vmem %s215, %s227
        %v229 = vld [vmem:[%s228] sm:$0xf]
        %v230 = vld [vmem:[%s228 + $0x4] sm:$0xf]
        %v231 = vld [vmem:[%s228 + $0xc] sm:$0xf]
        %v232 = vld [vmem:[%s228 + $0x10] sm:$0xf]
        %v233 = vld [vmem:[%s228 + $0x18] sm:$0xf]
        %v234 = vld [vmem:[%s228 + $0x1c] sm:$0xf]
        %v235 = vld [vmem:[%s228 + $0x24] sm:$0xf]
        %v236 = vld [vmem:[%s228 + $0x28] sm:$0xf]
        %v237 = vld [vmem:[%s228 + $0x30] sm:$0xf]
        %v238 = vld [vmem:[%s228 + $0x34] sm:$0xf]
        %v239 = vld [vmem:[%s228 + $0x3c] sm:$0xf]
        %v240 = vld [vmem:[%s228 + $0x40] sm:$0xf]
        %v241 = vld [vmem:[%s228 + $0x48] sm:$0xf]
        %v242 = vld [vmem:[%s228 + $0x4c] sm:$0xf]
        %v243 = vld [vmem:[%s228 + $0x54] sm:$0xf]
        %v244 = vld [vmem:[%s228 + $0x58] sm:$0xf]
        %v245 = vld [vmem:[%s228 + $0x60] sm:$0xf]
        %v246 = vld [vmem:[%s228 + $0x64] sm:$0xf]
        %v247 = vld [vmem:[%s228 + $0x6c] sm:$0xf]
        %v248 = vld [vmem:[%s228 + $0x70] sm:$0xf]
        %v249 = vld [vmem:[%s228 + $0x78] sm:$0xf]
        %v250 = vld [vmem:[%s228 + $0x7c] sm:$0xf]
        %v251 = vld [vmem:[%s228 + $0x84] sm:$0xf]
        %v252 = vld [vmem:[%s228 + $0x88] sm:$0xf]
        %v253 = vld [vmem:[%s228 + $0x90] sm:$0xf]
        %v254 = vld [vmem:[%s228 + $0x94] sm:$0xf]
        %v255 = vld [vmem:[%s228 + $0x9c] sm:$0xf]
        %v256 = vld [vmem:[%s228 + $0xa0] sm:$0xf]
        %v257 = vld [vmem:[%s228 + $0xa8] sm:$0xf]
        %v258 = vld [vmem:[%s228 + $0xac] sm:$0xf]
        %v259 = vld [vmem:[%s228 + $0xb4] sm:$0xf]
        %v260 = vld [vmem:[%s228 + $0xb8] sm:$0xf]
        %v261 = vld [vmem:[%s219] sm:$0xf]
        %v262 = vld [vmem:[%s219 + $0x4] sm:$0xf]
        %v263 = vld [vmem:[%s228 + $0x8] sm:$0x1]
        %v264 = vld [vmem:[%s228 + $0x14] sm:$0x1]
        %v265 = vld [vmem:[%s228 + $0x20] sm:$0x1]
        %v266 = vld [vmem:[%s228 + $0x2c] sm:$0x1]
        %v267 = vld [vmem:[%s228 + $0x38] sm:$0x1]
        %v268 = vld [vmem:[%s228 + $0x44] sm:$0x1]
        %v269 = vld [vmem:[%s228 + $0x50] sm:$0x1]
        %v270 = vld [vmem:[%s228 + $0x5c] sm:$0x1]
        %v271 = vld [vmem:[%s228 + $0x68] sm:$0x1]
        %v272 = vld [vmem:[%s228 + $0x74] sm:$0x1]
        %v273 = vld [vmem:[%s228 + $0x80] sm:$0x1]
        %v274 = vld [vmem:[%s228 + $0x8c] sm:$0x1]
        %v275 = vld [vmem:[%s228 + $0x98] sm:$0x1]
        %v276 = vld [vmem:[%s228 + $0xa4] sm:$0x1]
        %v277 = vld [vmem:[%s228 + $0xb0] sm:$0x1]
        %v278 = vld [vmem:[%s228 + $0xbc] sm:$0x1]
        %vm279 = vsmask.f32 3328
        %vm280 = vsmask.f32 7440
        %vm281 = vmor %vm279, %vm280
        %v283 = vshrl.u32 %v229, 16
        %v285 = vrot.slane %v283, 4
        %v286 = vshll.u32 %v229, 16
        %v288 = vrot.slane %v286, 5
        %v289 = vor.u32 %v285, %v288
        %v290 = vrot.slane %v289, 4
        %v292 = vshll.u32 %v230, 16
        %v294 = vrot.slane %v292, 5
        %v295 = vsel %vm281, %v290, %v294
        %v296 = vshrl.u32 %v230, 16
        %v298 = vrot.slane %v296, 4
        %v299 = vor.u32 %v298, %v294
        %v300 = vrot.slane %v299, 4
        %v302 = vshll.u32 %v263, 16
        %v304 = vrot.slane %v302, 5
        %v305 = vsel %vm281, %v300, %v304
        %v307 = vshrl.u32 %v231, 16
        %v309 = vrot.slane %v307, 4
        %v310 = vshll.u32 %v231, 16
        %v312 = vrot.slane %v310, 5
        %v313 = vor.u32 %v309, %v312
        %v314 = vrot.slane %v313, 4
        %v316 = vshll.u32 %v232, 16
        %v318 = vrot.slane %v316, 5
        %v319 = vsel %vm281, %v314, %v318
        %v320 = vshrl.u32 %v232, 16
        %v322 = vrot.slane %v320, 4
        %v323 = vor.u32 %v322, %v318
        %v324 = vrot.slane %v323, 4
        %v326 = vshll.u32 %v264, 16
        %v328 = vrot.slane %v326, 5
        %v329 = vsel %vm281, %v324, %v328
        %v331 = vshrl.u32 %v233, 16
        %v333 = vrot.slane %v331, 4
        %v334 = vshll.u32 %v233, 16
        %v336 = vrot.slane %v334, 5
        %v337 = vor.u32 %v333, %v336
        %v338 = vrot.slane %v337, 4
        %v340 = vshll.u32 %v234, 16
        %v342 = vrot.slane %v340, 5
        %v343 = vsel %vm281, %v338, %v342
        %v344 = vshrl.u32 %v234, 16
        %v346 = vrot.slane %v344, 4
        %v347 = vor.u32 %v346, %v342
        %v348 = vrot.slane %v347, 4
        %v350 = vshll.u32 %v265, 16
        %v352 = vrot.slane %v350, 5
        %v353 = vsel %vm281, %v348, %v352
        %v355 = vshrl.u32 %v235, 16
        %v357 = vrot.slane %v355, 4
        %v358 = vshll.u32 %v235, 16
        %v360 = vrot.slane %v358, 5
        %v361 = vor.u32 %v357, %v360
        %v362 = vrot.slane %v361, 4
        %v364 = vshll.u32 %v236, 16
        %v366 = vrot.slane %v364, 5
        %v367 = vsel %vm281, %v362, %v366
        %v368 = vshrl.u32 %v236, 16
        %v370 = vrot.slane %v368, 4
        %v371 = vor.u32 %v370, %v366
        %v372 = vrot.slane %v371, 4
        %v374 = vshll.u32 %v266, 16
        %v376 = vrot.slane %v374, 5
        %v377 = vsel %vm281, %v372, %v376
        %v379 = vshrl.u32 %v237, 16
        %v381 = vrot.slane %v379, 4
        %v382 = vshll.u32 %v237, 16
        %v384 = vrot.slane %v382, 5
        %v385 = vor.u32 %v381, %v384
        %v386 = vrot.slane %v385, 4
        %v388 = vshll.u32 %v238, 16
        %v390 = vrot.slane %v388, 5
        %v391 = vsel %vm281, %v386, %v390
        %v392 = vshrl.u32 %v238, 16
        %v394 = vrot.slane %v392, 4
        %v395 = vor.u32 %v394, %v390
        %v396 = vrot.slane %v395, 4
        %v398 = vshll.u32 %v267, 16
        %v400 = vrot.slane %v398, 5
        %v401 = vsel %vm281, %v396, %v400
        %v403 = vshrl.u32 %v239, 16
        %v405 = vrot.slane %v403, 4
        %v406 = vshll.u32 %v239, 16
        %v408 = vrot.slane %v406, 5
        %v409 = vor.u32 %v405, %v408
        %v410 = vrot.slane %v409, 4
        %v412 = vshll.u32 %v240, 16
        %v414 = vrot.slane %v412, 5
        %v415 = vsel %vm281, %v410, %v414
        %v416 = vshrl.u32 %v240, 16
        %v418 = vrot.slane %v416, 4
        %v419 = vor.u32 %v418, %v414
        %v420 = vrot.slane %v419, 4
        %v422 = vshll.u32 %v268, 16
        %v424 = vrot.slane %v422, 5
        %v425 = vsel %vm281, %v420, %v424
        %v427 = vshrl.u32 %v241, 16
        %v429 = vrot.slane %v427, 4
        %v430 = vshll.u32 %v241, 16
        %v432 = vrot.slane %v430, 5
        %v433 = vor.u32 %v429, %v432
        %v434 = vrot.slane %v433, 4
        %v436 = vshll.u32 %v242, 16
        %v438 = vrot.slane %v436, 5
        %v439 = vsel %vm281, %v434, %v438
        %v440 = vshrl.u32 %v242, 16
        %v442 = vrot.slane %v440, 4
        %v443 = vor.u32 %v442, %v438
        %v444 = vrot.slane %v443, 4
        %v446 = vshll.u32 %v269, 16
        %v448 = vrot.slane %v446, 5
        %v449 = vsel %vm281, %v444, %v448
        %v451 = vshrl.u32 %v243, 16
        %v453 = vrot.slane %v451, 4
        %v454 = vshll.u32 %v243, 16
        %v456 = vrot.slane %v454, 5
        %v457 = vor.u32 %v453, %v456
        %v458 = vrot.slane %v457, 4
        %v460 = vshll.u32 %v244, 16
        %v462 = vrot.slane %v460, 5
        %v463 = vsel %vm281, %v458, %v462
        %v464 = vshrl.u32 %v244, 16
        %v466 = vrot.slane %v464, 4
        %v467 = vor.u32 %v466, %v462
        %v468 = vrot.slane %v467, 4
        %v470 = vshll.u32 %v270, 16
        %v472 = vrot.slane %v470, 5
        %v473 = vsel %vm281, %v468, %v472
        %v475 = vshrl.u32 %v245, 16
        %v477 = vrot.slane %v475, 4
        %v478 = vshll.u32 %v245, 16
        %v480 = vrot.slane %v478, 5
        %v481 = vor.u32 %v477, %v480
        %v482 = vrot.slane %v481, 4
        %v484 = vshll.u32 %v246, 16
        %v486 = vrot.slane %v484, 5
        %v487 = vsel %vm281, %v482, %v486
        %v488 = vshrl.u32 %v246, 16
        %v490 = vrot.slane %v488, 4
        %v491 = vor.u32 %v490, %v486
        %v492 = vrot.slane %v491, 4
        %v494 = vshll.u32 %v271, 16
        %v496 = vrot.slane %v494, 5
        %v497 = vsel %vm281, %v492, %v496
        %v499 = vshrl.u32 %v247, 16
        %v501 = vrot.slane %v499, 4
        %v502 = vshll.u32 %v247, 16
        %v504 = vrot.slane %v502, 5
        %v505 = vor.u32 %v501, %v504
        %v506 = vrot.slane %v505, 4
        %v508 = vshll.u32 %v248, 16
        %v510 = vrot.slane %v508, 5
        %v511 = vsel %vm281, %v506, %v510
        %v512 = vshrl.u32 %v248, 16
        %v514 = vrot.slane %v512, 4
        %v515 = vor.u32 %v514, %v510
        %v516 = vrot.slane %v515, 4
        %v518 = vshll.u32 %v272, 16
        %v520 = vrot.slane %v518, 5
        %v521 = vsel %vm281, %v516, %v520
        %v523 = vshrl.u32 %v249, 16
        %v525 = vrot.slane %v523, 4
        %v526 = vshll.u32 %v249, 16
        %v528 = vrot.slane %v526, 5
        %v529 = vor.u32 %v525, %v528
        %v530 = vrot.slane %v529, 4
        %v532 = vshll.u32 %v250, 16
        %v534 = vrot.slane %v532, 5
        %v535 = vsel %vm281, %v530, %v534
        %v536 = vshrl.u32 %v250, 16
        %v538 = vrot.slane %v536, 4
        %v539 = vor.u32 %v538, %v534
        %v540 = vrot.slane %v539, 4
        %v542 = vshll.u32 %v273, 16
        %v544 = vrot.slane %v542, 5
        %v545 = vsel %vm281, %v540, %v544
        %v547 = vshrl.u32 %v251, 16
        %v549 = vrot.slane %v547, 4
        %v550 = vshll.u32 %v251, 16
        %v552 = vrot.slane %v550, 5
        %v553 = vor.u32 %v549, %v552
        %v554 = vrot.slane %v553, 4
        %v556 = vshll.u32 %v252, 16
        %v558 = vrot.slane %v556, 5
        %v559 = vsel %vm281, %v554, %v558
        %v560 = vshrl.u32 %v252, 16
        %v562 = vrot.slane %v560, 4
        %v563 = vor.u32 %v562, %v558
        %v564 = vrot.slane %v563, 4
        %v566 = vshll.u32 %v274, 16
        %v568 = vrot.slane %v566, 5
        %v569 = vsel %vm281, %v564, %v568
        %v571 = vshrl.u32 %v253, 16
        %v573 = vrot.slane %v571, 4
        %v574 = vshll.u32 %v253, 16
        %v576 = vrot.slane %v574, 5
        %v577 = vor.u32 %v573, %v576
        %v578 = vrot.slane %v577, 4
        %v580 = vshll.u32 %v254, 16
        %v582 = vrot.slane %v580, 5
        %v583 = vsel %vm281, %v578, %v582
        %v584 = vshrl.u32 %v254, 16
        %v586 = vrot.slane %v584, 4
        %v587 = vor.u32 %v586, %v582
        %v588 = vrot.slane %v587, 4
        %v590 = vshll.u32 %v275, 16
        %v592 = vrot.slane %v590, 5
        %v593 = vsel %vm281, %v588, %v592
        %v595 = vshrl.u32 %v255, 16
        %v597 = vrot.slane %v595, 4
        %v598 = vshll.u32 %v255, 16
        %v600 = vrot.slane %v598, 5
        %v601 = vor.u32 %v597, %v600
        %v602 = vrot.slane %v601, 4
        %v604 = vshll.u32 %v256, 16
        %v606 = vrot.slane %v604, 5
        %v607 = vsel %vm281, %v602, %v606
        %v608 = vshrl.u32 %v256, 16
        %v610 = vrot.slane %v608, 4
        %v611 = vor.u32 %v610, %v606
        %v612 = vrot.slane %v611, 4
        %v614 = vshll.u32 %v276, 16
        %v616 = vrot.slane %v614, 5
        %v617 = vsel %vm281, %v612, %v616
        %v619 = vshrl.u32 %v257, 16
        %v621 = vrot.slane %v619, 4
        %v622 = vshll.u32 %v257, 16
        %v624 = vrot.slane %v622, 5
        %v625 = vor.u32 %v621, %v624
        %v626 = vrot.slane %v625, 4
        %v628 = vshll.u32 %v258, 16
        %v630 = vrot.slane %v628, 5
        %v631 = vsel %vm281, %v626, %v630
        %v632 = vshrl.u32 %v258, 16
        %v634 = vrot.slane %v632, 4
        %v635 = vor.u32 %v634, %v630
        %v636 = vrot.slane %v635, 4
        %v638 = vshll.u32 %v277, 16
        %v640 = vrot.slane %v638, 5
        %v641 = vsel %vm281, %v636, %v640
        %v643 = vshrl.u32 %v259, 16
        %v645 = vrot.slane %v643, 4
        %v646 = vshll.u32 %v259, 16
        %v648 = vrot.slane %v646, 5
        %v649 = vor.u32 %v645, %v648
        %v650 = vrot.slane %v649, 4
        %v652 = vshll.u32 %v260, 16
        %v654 = vrot.slane %v652, 5
        %v655 = vsel %vm281, %v650, %v654
        %v656 = vshrl.u32 %v260, 16
        %v658 = vrot.slane %v656, 4
        %v659 = vor.u32 %v658, %v654
        %v660 = vrot.slane %v659, 4
        %v662 = vshll.u32 %v278, 16
        %v664 = vrot.slane %v662, 5
        %v665 = vsel %vm281, %v660, %v664
        %s666 = scalar_lea.vmem %s219, 8
        %v667 = vld [vmem:[%s666] sm:$0xf]
        %v668 = vld [vmem:[%s666 + $0x4] sm:$0xf]
        %v669 = vunpack.c.l.b16 %v295
        %v670 = vunpack.c.l.b16 %v305
        %v671 = vunpack.c.l.b16 %v319
        %v672 = vunpack.c.l.b16 %v329
        %v673 = vunpack.c.l.b16 %v343
        %v674 = vunpack.c.l.b16 %v353
        %v675 = vunpack.c.l.b16 %v367
        %v676 = vunpack.c.l.b16 %v377
        %v677 = vunpack.c.l.b16 %v391
        %v678 = vunpack.c.l.b16 %v401
        %v679 = vunpack.c.l.b16 %v415
        %v680 = vunpack.c.l.b16 %v425
        %v681 = vunpack.c.l.b16 %v439
        %v682 = vunpack.c.l.b16 %v449
        %v683 = vunpack.c.l.b16 %v463
        %v684 = vunpack.c.l.b16 %v473
        %v685 = vunpack.c.l.b16 %v487
        %v686 = vunpack.c.l.b16 %v497
        %v687 = vunpack.c.l.b16 %v511
        %v688 = vunpack.c.l.b16 %v521
        %v689 = vunpack.c.l.b16 %v535
        %v690 = vunpack.c.l.b16 %v545
        %v691 = vunpack.c.l.b16 %v559
        %v692 = vunpack.c.l.b16 %v569
        %v693 = vunpack.c.l.b16 %v583
        %v694 = vunpack.c.l.b16 %v593
        %v695 = vunpack.c.l.b16 %v607
        %v696 = vunpack.c.l.b16 %v617
        %v697 = vunpack.c.l.b16 %v631
        %v698 = vunpack.c.l.b16 %v641
        %v699 = vunpack.c.l.b16 %v655
        %v700 = vunpack.c.l.b16 %v665
        %v701 = vpack.c.b16 %v670, %v669
        %v702 = vpack.c.b16 %v672, %v671
        %v703 = vpack.c.b16 %v674, %v673
        %v704 = vpack.c.b16 %v676, %v675
        %v705 = vpack.c.b16 %v678, %v677
        %v706 = vpack.c.b16 %v680, %v679
        %v707 = vpack.c.b16 %v682, %v681
        %v708 = vpack.c.b16 %v684, %v683
        %v709 = vpack.c.b16 %v686, %v685
        %v710 = vpack.c.b16 %v688, %v687
        %v711 = vpack.c.b16 %v690, %v689
        %v712 = vpack.c.b16 %v692, %v691
        %v713 = vpack.c.b16 %v694, %v693
        %v714 = vpack.c.b16 %v696, %v695
        %v715 = vpack.c.b16 %v698, %v697
        %v716 = vpack.c.b16 %v700, %v699
        %v719 = vunpack.c.l.b16 %v667
        %v720 = vunpack.c.l.b16 %v668
        %v721 = vpack.c.b16 %v720, %v719
        %vm723 = vcmask 130048
        %v725 = vsel %vm723, %v701, 0
        %v728 = vsel %vm723, %v702, 0
        %v731 = vsel %vm723, %v703, 0
        %v734 = vsel %vm723, %v704, 0
        %v737 = vsel %vm723, %v705, 0
        %v740 = vsel %vm723, %v706, 0
        %v743 = vsel %vm723, %v707, 0
        %v746 = vsel %vm723, %v708, 0
        %v749 = vsel %vm723, %v709, 0
        %v752 = vsel %vm723, %v710, 0
        %v755 = vsel %vm723, %v711, 0
        %v758 = vsel %vm723, %v712, 0
        %v761 = vsel %vm723, %v713, 0
        %v764 = vsel %vm723, %v714, 0
        %v767 = vsel %vm723, %v715, 0
        %v770 = vsel %vm723, %v716, 0
        %772 = vmatprep.subr.bf16.mxu0 0
        %773 = vmatpush1.bf16.msra.mxu0 %v721
        %774 = vmatprep.subr.bf16.mxu0 0
        %775 = vmatpush1.bf16.msra.mxu0 0
        %776 = vmatprep.subr.bf16.mxu0 0
        %777 = vmatpush1.bf16.msra.mxu0 0
        %778 = vmatprep.subr.bf16.mxu0 0
        %779 = vmatpush1.bf16.msra.mxu0 0
        %780 = vmatprep.subr.bf16.mxu0 0
        %781 = vmatpush1.bf16.msra.mxu0 0
        %782 = vmatprep.subr.bf16.mxu0 0
        %783 = vmatpush1.bf16.msra.mxu0 0
        %784 = vmatprep.subr.bf16.mxu0 0
        %785 = vmatpush1.bf16.msra.mxu0 0
        %786 = vmatprep.subr.bf16.mxu0 0
        %787 = vmatpush1.bf16.msra.mxu0 0
        %788 = vmatprep.subr.bf16.mxu0 0
        %789 = vmatpush1.bf16.msra.mxu0 0
        %790 = vmatprep.subr.bf16.mxu0 0
        %791 = vmatpush1.bf16.msra.mxu0 0
        %792 = vmatprep.subr.bf16.mxu0 0
        %793 = vmatpush1.bf16.msra.mxu0 0
        %794 = vmatprep.subr.bf16.mxu0 0
        %795 = vmatpush1.bf16.msra.mxu0 0
        %796 = vmatprep.subr.bf16.mxu0 0
        %797 = vmatpush1.bf16.msra.mxu0 0
        %798 = vmatprep.subr.bf16.mxu0 0
        %799 = vmatpush1.bf16.msra.mxu0 0
        %800 = vmatprep.subr.bf16.mxu0 0
        %801 = vmatpush1.bf16.msra.mxu0 0
        %802 = vmatprep.subr.bf16.mxu0 0
        %803 = vmatpush1.bf16.msra.mxu0 0
        %804 = vmatprep.mubr.bf16.mxu0 0
        %805 = vmatmul.mubr.bf16.gmra.mrb[0].mxu0 %v725
        %v806 = vpop.f32.mrb[0].mxu0
        %v807 = vadd.f32 0.0, %v806
        %v808 = vpop.f32.mrb[0].mxu0
        %v809 = vpop.f32.mrb[0].mxu0
        %v810 = vadd.f32 0.0, %v809
        %v811 = vpop.f32.mrb[0].mxu0
        %812 = vmatprep.mubr.bf16.mxu0 0
        %813 = vmatmul.mubr.bf16.gmra.mrb[0].mxu0 %v728
        %v814 = vpop.f32.mrb[0].mxu0
        %v815 = vadd.f32 0.0, %v814
        %v816 = vpop.f32.mrb[0].mxu0
        %v817 = vpop.f32.mrb[0].mxu0
        %v818 = vadd.f32 0.0, %v817
        %v819 = vpop.f32.mrb[0].mxu0
        %820 = vmatprep.mubr.bf16.mxu0 0
        %821 = vmatmul.mubr.bf16.gmra.mrb[0].mxu0 %v731
        %v822 = vpop.f32.mrb[0].mxu0
        %v823 = vadd.f32 0.0, %v822
        %v824 = vpop.f32.mrb[0].mxu0
        %v825 = vpop.f32.mrb[0].mxu0
        %v826 = vadd.f32 0.0, %v825
        %v827 = vpop.f32.mrb[0].mxu0
        %828 = vmatprep.mubr.bf16.mxu0 0
        %829 = vmatmul.mubr.bf16.gmra.mrb[0].mxu0 %v734
        %v830 = vpop.f32.mrb[0].mxu0
        %v831 = vadd.f32 0.0, %v830
        %v832 = vpop.f32.mrb[0].mxu0
        %v833 = vpop.f32.mrb[0].mxu0
        %v834 = vadd.f32 0.0, %v833
        %v835 = vpop.f32.mrb[0].mxu0
        %836 = vmatprep.mubr.bf16.mxu0 0
        %837 = vmatmul.mubr.bf16.gmra.mrb[0].mxu0 %v737
        %v838 = vpop.f32.mrb[0].mxu0
        %v839 = vadd.f32 0.0, %v838
        %v840 = vpop.f32.mrb[0].mxu0
        %v841 = vpop.f32.mrb[0].mxu0
        %v842 = vadd.f32 0.0, %v841
        %v843 = vpop.f32.mrb[0].mxu0
        %844 = vmatprep.mubr.bf16.mxu0 0
        %845 = vmatmul.mubr.bf16.gmra.mrb[0].mxu0 %v740
        %v846 = vpop.f32.mrb[0].mxu0
        %v847 = vadd.f32 0.0, %v846
        %v848 = vpop.f32.mrb[0].mxu0
        %v849 = vpop.f32.mrb[0].mxu0
        %v850 = vadd.f32 0.0, %v849
        %v851 = vpop.f32.mrb[0].mxu0
        %852 = vmatprep.mubr.bf16.mxu0 0
        %853 = vmatmul.mubr.bf16.gmra.mrb[0].mxu0 %v743
        %v854 = vpop.f32.mrb[0].mxu0
        %v855 = vadd.f32 0.0, %v854
        %v856 = vpop.f32.mrb[0].mxu0
        %v857 = vpop.f32.mrb[0].mxu0
        %v858 = vadd.f32 0.0, %v857
        %v859 = vpop.f32.mrb[0].mxu0
        %860 = vmatprep.mubr.bf16.mxu0 0
        %861 = vmatmul.mubr.bf16.gmra.mrb[0].mxu0 %v746
        %v862 = vpop.f32.mrb[0].mxu0
        %v863 = vadd.f32 0.0, %v862
        %v864 = vpop.f32.mrb[0].mxu0
        %v865 = vpop.f32.mrb[0].mxu0
        %v866 = vadd.f32 0.0, %v865
        %v867 = vpop.f32.mrb[0].mxu0
        %868 = vmatprep.mubr.bf16.mxu0 0
        %869 = vmatmul.mubr.bf16.gmra.mrb[0].mxu0 %v749
        %v870 = vpop.f32.mrb[0].mxu0
        %v871 = vadd.f32 0.0, %v870
        %v872 = vpop.f32.mrb[0].mxu0
        %v873 = vpop.f32.mrb[0].mxu0
        %v874 = vadd.f32 0.0, %v873
        %v875 = vpop.f32.mrb[0].mxu0
        %876 = vmatprep.mubr.bf16.mxu0 0
        %877 = vmatmul.mubr.bf16.gmra.mrb[0].mxu0 %v752
        %v878 = vpop.f32.mrb[0].mxu0
        %v879 = vadd.f32 0.0, %v878
        %v880 = vpop.f32.mrb[0].mxu0
        %v881 = vpop.f32.mrb[0].mxu0
        %v882 = vadd.f32 0.0, %v881
        %v883 = vpop.f32.mrb[0].mxu0
        %884 = vmatprep.mubr.bf16.mxu0 0
        %885 = vmatmul.mubr.bf16.gmra.mrb[0].mxu0 %v755
        %v886 = vpop.f32.mrb[0].mxu0
        %v887 = vadd.f32 0.0, %v886
        %v888 = vpop.f32.mrb[0].mxu0
        %v889 = vpop.f32.mrb[0].mxu0
        %v890 = vadd.f32 0.0, %v889
        %v891 = vpop.f32.mrb[0].mxu0
        %892 = vmatprep.mubr.bf16.mxu0 0
        %893 = vmatmul.mubr.bf16.gmra.mrb[0].mxu0 %v758
        %v894 = vpop.f32.mrb[0].mxu0
        %v895 = vadd.f32 0.0, %v894
        %v896 = vpop.f32.mrb[0].mxu0
        %v897 = vpop.f32.mrb[0].mxu0
        %v898 = vadd.f32 0.0, %v897
        %v899 = vpop.f32.mrb[0].mxu0
        %900 = vmatprep.mubr.bf16.mxu0 0
        %901 = vmatmul.mubr.bf16.gmra.mrb[0].mxu0 %v761
        %v902 = vpop.f32.mrb[0].mxu0
        %v903 = vadd.f32 0.0, %v902
        %v904 = vpop.f32.mrb[0].mxu0
        %v905 = vpop.f32.mrb[0].mxu0
        %v906 = vadd.f32 0.0, %v905
        %v907 = vpop.f32.mrb[0].mxu0
        %908 = vmatprep.mubr.bf16.mxu0 0
        %909 = vmatmul.mubr.bf16.gmra.mrb[0].mxu0 %v764
        %v910 = vpop.f32.mrb[0].mxu0
        %v911 = vadd.f32 0.0, %v910
        %v912 = vpop.f32.mrb[0].mxu0
        %v913 = vpop.f32.mrb[0].mxu0
        %v914 = vadd.f32 0.0, %v913
        %v915 = vpop.f32.mrb[0].mxu0
        %916 = vmatprep.mubr.bf16.mxu0 0
        %917 = vmatmul.mubr.bf16.gmra.mrb[0].mxu0 %v767
        %v918 = vpop.f32.mrb[0].mxu0
        %v919 = vadd.f32 0.0, %v918
        %v920 = vpop.f32.mrb[0].mxu0
        %v921 = vpop.f32.mrb[0].mxu0
        %v922 = vadd.f32 0.0, %v921
        %v923 = vpop.f32.mrb[0].mxu0
        %924 = vmatprep.mubr.bf16.mxu0 0
        %925 = vmatmul.mubr.bf16.gmra.mrb[0].mxu0 %v770
        %v926 = vpop.f32.mrb[0].mxu0
        %v927 = vadd.f32 0.0, %v926
        %v928 = vpop.f32.mrb[0].mxu0
        %v929 = vpop.f32.mrb[0].mxu0
        %v930 = vadd.f32 0.0, %v929
        %v931 = vpop.f32.mrb[0].mxu0
        %932 = vdwg.mxu0
        %v965 = vunpack.c.l.b16 %v229
        %v966 = vunpack.c.l.b16 %v230
        %v967 = vunpack.c.l.b16 %v231
        %v968 = vunpack.c.l.b16 %v232
        %v969 = vunpack.c.l.b16 %v233
        %v970 = vunpack.c.l.b16 %v234
        %v971 = vunpack.c.l.b16 %v235
        %v972 = vunpack.c.l.b16 %v236
        %v973 = vunpack.c.l.b16 %v237
        %v974 = vunpack.c.l.b16 %v238
        %v975 = vunpack.c.l.b16 %v239
        %v976 = vunpack.c.l.b16 %v240
        %v977 = vunpack.c.l.b16 %v241
        %v978 = vunpack.c.l.b16 %v242
        %v979 = vunpack.c.l.b16 %v243
        %v980 = vunpack.c.l.b16 %v244
        %v981 = vunpack.c.l.b16 %v245
        %v982 = vunpack.c.l.b16 %v246
        %v983 = vunpack.c.l.b16 %v247
        %v984 = vunpack.c.l.b16 %v248
        %v985 = vunpack.c.l.b16 %v249
        %v986 = vunpack.c.l.b16 %v250
        %v987 = vunpack.c.l.b16 %v251
        %v988 = vunpack.c.l.b16 %v252
        %v989 = vunpack.c.l.b16 %v253
        %v990 = vunpack.c.l.b16 %v254
        %v991 = vunpack.c.l.b16 %v255
        %v992 = vunpack.c.l.b16 %v256
        %v993 = vunpack.c.l.b16 %v257
        %v994 = vunpack.c.l.b16 %v258
        %v995 = vunpack.c.l.b16 %v259
        %v996 = vunpack.c.l.b16 %v260
        %v997 = vpack.c.b16 %v966, %v965
        %v998 = vpack.c.b16 %v968, %v967
        %v999 = vpack.c.b16 %v970, %v969
        %v1000 = vpack.c.b16 %v972, %v971
        %v1001 = vpack.c.b16 %v974, %v973
        %v1002 = vpack.c.b16 %v976, %v975
        %v1003 = vpack.c.b16 %v978, %v977
        %v1004 = vpack.c.b16 %v980, %v979
        %v1005 = vpack.c.b16 %v982, %v981
        %v1006 = vpack.c.b16 %v984, %v983
        %v1007 = vpack.c.b16 %v986, %v985
        %v1008 = vpack.c.b16 %v988, %v987
        %v1009 = vpack.c.b16 %v990, %v989
        %v1010 = vpack.c.b16 %v992, %v991
        %v1011 = vpack.c.b16 %v994, %v993
        %v1012 = vpack.c.b16 %v996, %v995
        %v1015 = vunpack.c.l.b16 %v261
        %v1016 = vunpack.c.l.b16 %v262
        %v1017 = vpack.c.b16 %v1016, %v1015
        %v1020 = vsel %vm723, %v997, 0
        %v1023 = vsel %vm723, %v998, 0
        %v1026 = vsel %vm723, %v999, 0
        %v1029 = vsel %vm723, %v1000, 0
        %v1032 = vsel %vm723, %v1001, 0
        %v1035 = vsel %vm723, %v1002, 0
        %v1038 = vsel %vm723, %v1003, 0
        %v1041 = vsel %vm723, %v1004, 0
        %v1044 = vsel %vm723, %v1005, 0
        %v1047 = vsel %vm723, %v1006, 0
        %v1050 = vsel %vm723, %v1007, 0
        %v1053 = vsel %vm723, %v1008, 0
        %v1056 = vsel %vm723, %v1009, 0
        %v1059 = vsel %vm723, %v1010, 0
        %v1062 = vsel %vm723, %v1011, 0
        %v1065 = vsel %vm723, %v1012, 0
        %1067 = vmatprep.subr.bf16.mxu0 0
        %1068 = vmatpush1.bf16.msra.mxu0 %v1017
        %1069 = vmatprep.subr.bf16.mxu0 0
        %1070 = vmatpush1.bf16.msra.mxu0 0
        %1071 = vmatprep.subr.bf16.mxu0 0
        %1072 = vmatpush1.bf16.msra.mxu0 0
        %1073 = vmatprep.subr.bf16.mxu0 0
        %1074 = vmatpush1.bf16.msra.mxu0 0
        %1075 = vmatprep.subr.bf16.mxu0 0
        %1076 = vmatpush1.bf16.msra.mxu0 0
        %1077 = vmatprep.subr.bf16.mxu0 0
        %1078 = vmatpush1.bf16.msra.mxu0 0
        %1079 = vmatprep.subr.bf16.mxu0 0
        %1080 = vmatpush1.bf16.msra.mxu0 0
        %1081 = vmatprep.subr.bf16.mxu0 0
        %1082 = vmatpush1.bf16.msra.mxu0 0
        %1083 = vmatprep.subr.bf16.mxu0 0
        %1084 = vmatpush1.bf16.msra.mxu0 0
        %1085 = vmatprep.subr.bf16.mxu0 0
        %1086 = vmatpush1.bf16.msra.mxu0 0
        %1087 = vmatprep.subr.bf16.mxu0 0
        %1088 = vmatpush1.bf16.msra.mxu0 0
        %1089 = vmatprep.subr.bf16.mxu0 0
        %1090 = vmatpush1.bf16.msra.mxu0 0
        %1091 = vmatprep.subr.bf16.mxu0 0
        %1092 = vmatpush1.bf16.msra.mxu0 0
        %1093 = vmatprep.subr.bf16.mxu0 0
        %1094 = vmatpush1.bf16.msra.mxu0 0
        %1095 = vmatprep.subr.bf16.mxu0 0
        %1096 = vmatpush1.bf16.msra.mxu0 0
        %1097 = vmatprep.subr.bf16.mxu0 0
        %1098 = vmatpush1.bf16.msra.mxu0 0
        %1099 = vmatprep.mubr.bf16.mxu0 0
        %1100 = vmatmul.mubr.bf16.gmra.mrb[0].mxu0 %v1020
        %v1101 = vpop.f32.mrb[0].mxu0
        %v1102 = vadd.f32 %v807, %v1101
        %v1103 = vpop.f32.mrb[0].mxu0
        %v1104 = vpop.f32.mrb[0].mxu0
        %v1105 = vadd.f32 %v810, %v1104
        %v1106 = vpop.f32.mrb[0].mxu0
        %1107 = vmatprep.mubr.bf16.mxu0 0
        %1108 = vmatmul.mubr.bf16.gmra.mrb[0].mxu0 %v1023
        %v1109 = vpop.f32.mrb[0].mxu0
        %v1110 = vadd.f32 %v815, %v1109
        %v1111 = vpop.f32.mrb[0].mxu0
        %v1112 = vpop.f32.mrb[0].mxu0
        %v1113 = vadd.f32 %v818, %v1112
        %v1114 = vpop.f32.mrb[0].mxu0
        %1115 = vmatprep.mubr.bf16.mxu0 0
        %1116 = vmatmul.mubr.bf16.gmra.mrb[0].mxu0 %v1026
        %v1117 = vpop.f32.mrb[0].mxu0
        %v1118 = vadd.f32 %v823, %v1117
        %v1119 = vpop.f32.mrb[0].mxu0
        %v1120 = vpop.f32.mrb[0].mxu0
        %v1121 = vadd.f32 %v826, %v1120
        %v1122 = vpop.f32.mrb[0].mxu0
        %1123 = vmatprep.mubr.bf16.mxu0 0
        %1124 = vmatmul.mubr.bf16.gmra.mrb[0].mxu0 %v1029
        %v1125 = vpop.f32.mrb[0].mxu0
        %v1126 = vadd.f32 %v831, %v1125
        %v1127 = vpop.f32.mrb[0].mxu0
        %v1128 = vpop.f32.mrb[0].mxu0
        %v1129 = vadd.f32 %v834, %v1128
        %v1130 = vpop.f32.mrb[0].mxu0
        %1131 = vmatprep.mubr.bf16.mxu0 0
        %1132 = vmatmul.mubr.bf16.gmra.mrb[0].mxu0 %v1032
        %v1133 = vpop.f32.mrb[0].mxu0
        %v1134 = vadd.f32 %v839, %v1133
        %v1135 = vpop.f32.mrb[0].mxu0
        %v1136 = vpop.f32.mrb[0].mxu0
        %v1137 = vadd.f32 %v842, %v1136
        %v1138 = vpop.f32.mrb[0].mxu0
        %1139 = vmatprep.mubr.bf16.mxu0 0
        %1140 = vmatmul.mubr.bf16.gmra.mrb[0].mxu0 %v1035
        %v1141 = vpop.f32.mrb[0].mxu0
        %v1142 = vadd.f32 %v847, %v1141
        %v1143 = vpop.f32.mrb[0].mxu0
        %v1144 = vpop.f32.mrb[0].mxu0
        %v1145 = vadd.f32 %v850, %v1144
        %v1146 = vpop.f32.mrb[0].mxu0
        %1147 = vmatprep.mubr.bf16.mxu0 0
        %1148 = vmatmul.mubr.bf16.gmra.mrb[0].mxu0 %v1038
        %v1149 = vpop.f32.mrb[0].mxu0
        %v1150 = vadd.f32 %v855, %v1149
        %v1151 = vpop.f32.mrb[0].mxu0
        %v1152 = vpop.f32.mrb[0].mxu0
        %v1153 = vadd.f32 %v858, %v1152
        %v1154 = vpop.f32.mrb[0].mxu0
        %1155 = vmatprep.mubr.bf16.mxu0 0
        %1156 = vmatmul.mubr.bf16.gmra.mrb[0].mxu0 %v1041
        %v1157 = vpop.f32.mrb[0].mxu0
        %v1158 = vadd.f32 %v863, %v1157
        %v1159 = vpop.f32.mrb[0].mxu0
        %v1160 = vpop.f32.mrb[0].mxu0
        %v1161 = vadd.f32 %v866, %v1160
        %v1162 = vpop.f32.mrb[0].mxu0
        %1163 = vmatprep.mubr.bf16.mxu0 0
        %1164 = vmatmul.mubr.bf16.gmra.mrb[0].mxu0 %v1044
        %v1165 = vpop.f32.mrb[0].mxu0
        %v1166 = vadd.f32 %v871, %v1165
        %v1167 = vpop.f32.mrb[0].mxu0
        %v1168 = vpop.f32.mrb[0].mxu0
        %v1169 = vadd.f32 %v874, %v1168
        %v1170 = vpop.f32.mrb[0].mxu0
        %1171 = vmatprep.mubr.bf16.mxu0 0
        %1172 = vmatmul.mubr.bf16.gmra.mrb[0].mxu0 %v1047
        %v1173 = vpop.f32.mrb[0].mxu0
        %v1174 = vadd.f32 %v879, %v1173
        %v1175 = vpop.f32.mrb[0].mxu0
        %v1176 = vpop.f32.mrb[0].mxu0
        %v1177 = vadd.f32 %v882, %v1176
        %v1178 = vpop.f32.mrb[0].mxu0
        %1179 = vmatprep.mubr.bf16.mxu0 0
        %1180 = vmatmul.mubr.bf16.gmra.mrb[0].mxu0 %v1050
        %v1181 = vpop.f32.mrb[0].mxu0
        %v1182 = vadd.f32 %v887, %v1181
        %v1183 = vpop.f32.mrb[0].mxu0
        %v1184 = vpop.f32.mrb[0].mxu0
        %v1185 = vadd.f32 %v890, %v1184
        %v1186 = vpop.f32.mrb[0].mxu0
        %1187 = vmatprep.mubr.bf16.mxu0 0
        %1188 = vmatmul.mubr.bf16.gmra.mrb[0].mxu0 %v1053
        %v1189 = vpop.f32.mrb[0].mxu0
        %v1190 = vadd.f32 %v895, %v1189
        %v1191 = vpop.f32.mrb[0].mxu0
        %v1192 = vpop.f32.mrb[0].mxu0
        %v1193 = vadd.f32 %v898, %v1192
        %v1194 = vpop.f32.mrb[0].mxu0
        %1195 = vmatprep.mubr.bf16.mxu0 0
        %1196 = vmatmul.mubr.bf16.gmra.mrb[0].mxu0 %v1056
        %v1197 = vpop.f32.mrb[0].mxu0
        %v1198 = vadd.f32 %v903, %v1197
        %v1199 = vpop.f32.mrb[0].mxu0
        %v1200 = vpop.f32.mrb[0].mxu0
        %v1201 = vadd.f32 %v906, %v1200
        %v1202 = vpop.f32.mrb[0].mxu0
        %1203 = vmatprep.mubr.bf16.mxu0 0
        %1204 = vmatmul.mubr.bf16.gmra.mrb[0].mxu0 %v1059
        %v1205 = vpop.f32.mrb[0].mxu0
        %v1206 = vadd.f32 %v911, %v1205
        %v1207 = vpop.f32.mrb[0].mxu0
        %v1208 = vpop.f32.mrb[0].mxu0
        %v1209 = vadd.f32 %v914, %v1208
        %v1210 = vpop.f32.mrb[0].mxu0
        %1211 = vmatprep.mubr.bf16.mxu0 0
        %1212 = vmatmul.mubr.bf16.gmra.mrb[0].mxu0 %v1062
        %v1213 = vpop.f32.mrb[0].mxu0
        %v1214 = vadd.f32 %v919, %v1213
        %v1215 = vpop.f32.mrb[0].mxu0
        %v1216 = vpop.f32.mrb[0].mxu0
        %v1217 = vadd.f32 %v922, %v1216
        %v1218 = vpop.f32.mrb[0].mxu0
        %1219 = vmatprep.mubr.bf16.mxu0 0
        %1220 = vmatmul.mubr.bf16.gmra.mrb[0].mxu0 %v1065
        %v1221 = vpop.f32.mrb[0].mxu0
        %v1222 = vadd.f32 %v927, %v1221
        %v1223 = vpop.f32.mrb[0].mxu0
        %v1224 = vpop.f32.mrb[0].mxu0
        %v1225 = vadd.f32 %v930, %v1224
        %v1226 = vpop.f32.mrb[0].mxu0
        %1227 = vdwg.mxu0
        %v1228 = vld [vmem:[%s228] sm:$0xe]
        %v1229 = vld [vmem:[%s228 + $0xc] sm:$0xe]
        %v1230 = vld [vmem:[%s228 + $0x18] sm:$0xe]
        %v1231 = vld [vmem:[%s228 + $0x24] sm:$0xe]
        %v1232 = vld [vmem:[%s228 + $0x30] sm:$0xe]
        %v1233 = vld [vmem:[%s228 + $0x3c] sm:$0xe]
        %v1234 = vld [vmem:[%s228 + $0x48] sm:$0xe]
        %v1235 = vld [vmem:[%s228 + $0x54] sm:$0xe]
        %v1236 = vld [vmem:[%s228 + $0x60] sm:$0xe]
        %v1237 = vld [vmem:[%s228 + $0x6c] sm:$0xe]
        %v1238 = vld [vmem:[%s228 + $0x78] sm:$0xe]
        %v1239 = vld [vmem:[%s228 + $0x84] sm:$0xe]
        %v1240 = vld [vmem:[%s228 + $0x90] sm:$0xe]
        %v1241 = vld [vmem:[%s228 + $0x9c] sm:$0xe]
        %v1242 = vld [vmem:[%s228 + $0xa8] sm:$0xe]
        %v1243 = vld [vmem:[%s228 + $0xb4] sm:$0xe]
        %vm1276 = vcmask 1042432
        %vm1277 = vcmask 1046532
        %vm1278 = vmor %vm1276, %vm1277
        %v1279 = vrot.slane %v1228, 5
        %v1280 = vrot.slane %v1279, 4
        %v1281 = vrot.slane %v230, 5
        %v1282 = vsel %vm1278, %v1280, %v1281
        %v1283 = vrot.slane %v1281, 4
        %v1284 = vrot.slane %v263, 5
        %v1285 = vsel %vm1278, %v1283, %v1284
        %v1286 = vrot.slane %v1229, 5
        %v1287 = vrot.slane %v1286, 4
        %v1288 = vrot.slane %v232, 5
        %v1289 = vsel %vm1278, %v1287, %v1288
        %v1290 = vrot.slane %v1288, 4
        %v1291 = vrot.slane %v264, 5
        %v1292 = vsel %vm1278, %v1290, %v1291
        %v1293 = vrot.slane %v1230, 5
        %v1294 = vrot.slane %v1293, 4
        %v1295 = vrot.slane %v234, 5
        %v1296 = vsel %vm1278, %v1294, %v1295
        %v1297 = vrot.slane %v1295, 4
        %v1298 = vrot.slane %v265, 5
        %v1299 = vsel %vm1278, %v1297, %v1298
        %v1300 = vrot.slane %v1231, 5
        %v1301 = vrot.slane %v1300, 4
        %v1302 = vrot.slane %v236, 5
        %v1303 = vsel %vm1278, %v1301, %v1302
        %v1304 = vrot.slane %v1302, 4
        %v1305 = vrot.slane %v266, 5
        %v1306 = vsel %vm1278, %v1304, %v1305
        %v1307 = vrot.slane %v1232, 5
        %v1308 = vrot.slane %v1307, 4
        %v1309 = vrot.slane %v238, 5
        %v1310 = vsel %vm1278, %v1308, %v1309
        %v1311 = vrot.slane %v1309, 4
        %v1312 = vrot.slane %v267, 5
        %v1313 = vsel %vm1278, %v1311, %v1312
        %v1314 = vrot.slane %v1233, 5
        %v1315 = vrot.slane %v1314, 4
        %v1316 = vrot.slane %v240, 5
        %v1317 = vsel %vm1278, %v1315, %v1316
        %v1318 = vrot.slane %v1316, 4
        %v1319 = vrot.slane %v268, 5
        %v1320 = vsel %vm1278, %v1318, %v1319
        %v1321 = vrot.slane %v1234, 5
        %v1322 = vrot.slane %v1321, 4
        %v1323 = vrot.slane %v242, 5
        %v1324 = vsel %vm1278, %v1322, %v1323
        %v1325 = vrot.slane %v1323, 4
        %v1326 = vrot.slane %v269, 5
        %v1327 = vsel %vm1278, %v1325, %v1326
        %v1328 = vrot.slane %v1235, 5
        %v1329 = vrot.slane %v1328, 4
        %v1330 = vrot.slane %v244, 5
        %v1331 = vsel %vm1278, %v1329, %v1330
        %v1332 = vrot.slane %v1330, 4
        %v1333 = vrot.slane %v270, 5
        %v1334 = vsel %vm1278, %v1332, %v1333
        %v1335 = vrot.slane %v1236, 5
        %v1336 = vrot.slane %v1335, 4
        %v1337 = vrot.slane %v246, 5
        %v1338 = vsel %vm1278, %v1336, %v1337
        %v1339 = vrot.slane %v1337, 4
        %v1340 = vrot.slane %v271, 5
        %v1341 = vsel %vm1278, %v1339, %v1340
        %v1342 = vrot.slane %v1237, 5
        %v1343 = vrot.slane %v1342, 4
        %v1344 = vrot.slane %v248, 5
        %v1345 = vsel %vm1278, %v1343, %v1344
        %v1346 = vrot.slane %v1344, 4
        %v1347 = vrot.slane %v272, 5
        %v1348 = vsel %vm1278, %v1346, %v1347
        %v1349 = vrot.slane %v1238, 5
        %v1350 = vrot.slane %v1349, 4
        %v1351 = vrot.slane %v250, 5
        %v1352 = vsel %vm1278, %v1350, %v1351
        %v1353 = vrot.slane %v1351, 4
        %v1354 = vrot.slane %v273, 5
        %v1355 = vsel %vm1278, %v1353, %v1354
        %v1356 = vrot.slane %v1239, 5
        %v1357 = vrot.slane %v1356, 4
        %v1358 = vrot.slane %v252, 5
        %v1359 = vsel %vm1278, %v1357, %v1358
        %v1360 = vrot.slane %v1358, 4
        %v1361 = vrot.slane %v274, 5
        %v1362 = vsel %vm1278, %v1360, %v1361
        %v1363 = vrot.slane %v1240, 5
        %v1364 = vrot.slane %v1363, 4
        %v1365 = vrot.slane %v254, 5
        %v1366 = vsel %vm1278, %v1364, %v1365
        %v1367 = vrot.slane %v1365, 4
        %v1368 = vrot.slane %v275, 5
        %v1369 = vsel %vm1278, %v1367, %v1368
        %v1370 = vrot.slane %v1241, 5
        %v1371 = vrot.slane %v1370, 4
        %v1372 = vrot.slane %v256, 5
        %v1373 = vsel %vm1278, %v1371, %v1372
        %v1374 = vrot.slane %v1372, 4
        %v1375 = vrot.slane %v276, 5
        %v1376 = vsel %vm1278, %v1374, %v1375
        %v1377 = vrot.slane %v1242, 5
        %v1378 = vrot.slane %v1377, 4
        %v1379 = vrot.slane %v258, 5
        %v1380 = vsel %vm1278, %v1378, %v1379
        %v1381 = vrot.slane %v1379, 4
        %v1382 = vrot.slane %v277, 5
        %v1383 = vsel %vm1278, %v1381, %v1382
        %v1384 = vrot.slane %v1243, 5
        %v1385 = vrot.slane %v1384, 4
        %v1386 = vrot.slane %v260, 5
        %v1387 = vsel %vm1278, %v1385, %v1386
        %v1388 = vrot.slane %v1386, 4
        %v1389 = vrot.slane %v278, 5
        %v1390 = vsel %vm1278, %v1388, %v1389
        %s1391 = scalar_lea.vmem %s219, 16
        %v1392 = vld [vmem:[%s1391] sm:$0xf]
        %v1393 = vld [vmem:[%s1391 + $0x4] sm:$0xf]
        %v1394 = vunpack.c.l.b16 %v1282
        %v1395 = vunpack.c.l.b16 %v1285
        %v1396 = vunpack.c.l.b16 %v1289
        %v1397 = vunpack.c.l.b16 %v1292
        %v1398 = vunpack.c.l.b16 %v1296
        %v1399 = vunpack.c.l.b16 %v1299
        %v1400 = vunpack.c.l.b16 %v1303
        %v1401 = vunpack.c.l.b16 %v1306
        %v1402 = vunpack.c.l.b16 %v1310
        %v1403 = vunpack.c.l.b16 %v1313
        %v1404 = vunpack.c.l.b16 %v1317
        %v1405 = vunpack.c.l.b16 %v1320
        %v1406 = vunpack.c.l.b16 %v1324
        %v1407 = vunpack.c.l.b16 %v1327
        %v1408 = vunpack.c.l.b16 %v1331
        %v1409 = vunpack.c.l.b16 %v1334
        %v1410 = vunpack.c.l.b16 %v1338
        %v1411 = vunpack.c.l.b16 %v1341
        %v1412 = vunpack.c.l.b16 %v1345
        %v1413 = vunpack.c.l.b16 %v1348
        %v1414 = vunpack.c.l.b16 %v1352
        %v1415 = vunpack.c.l.b16 %v1355
        %v1416 = vunpack.c.l.b16 %v1359
        %v1417 = vunpack.c.l.b16 %v1362
        %v1418 = vunpack.c.l.b16 %v1366
        %v1419 = vunpack.c.l.b16 %v1369
        %v1420 = vunpack.c.l.b16 %v1373
        %v1421 = vunpack.c.l.b16 %v1376
        %v1422 = vunpack.c.l.b16 %v1380
        %v1423 = vunpack.c.l.b16 %v1383
        %v1424 = vunpack.c.l.b16 %v1387
        %v1425 = vunpack.c.l.b16 %v1390
        %v1426 = vpack.c.b16 %v1395, %v1394
        %v1427 = vpack.c.b16 %v1397, %v1396
        %v1428 = vpack.c.b16 %v1399, %v1398
        %v1429 = vpack.c.b16 %v1401, %v1400
        %v1430 = vpack.c.b16 %v1403, %v1402
        %v1431 = vpack.c.b16 %v1405, %v1404
        %v1432 = vpack.c.b16 %v1407, %v1406
        %v1433 = vpack.c.b16 %v1409, %v1408
        %v1434 = vpack.c.b16 %v1411, %v1410
        %v1435 = vpack.c.b16 %v1413, %v1412
        %v1436 = vpack.c.b16 %v1415, %v1414
        %v1437 = vpack.c.b16 %v1417, %v1416
        %v1438 = vpack.c.b16 %v1419, %v1418
        %v1439 = vpack.c.b16 %v1421, %v1420
        %v1440 = vpack.c.b16 %v1423, %v1422
        %v1441 = vpack.c.b16 %v1425, %v1424
        %v1444 = vunpack.c.l.b16 %v1392
        %v1445 = vunpack.c.l.b16 %v1393
        %v1446 = vpack.c.b16 %v1445, %v1444
        %v1449 = vsel %vm723, %v1426, 0
        %v1452 = vsel %vm723, %v1427, 0
        %v1455 = vsel %vm723, %v1428, 0
        %v1458 = vsel %vm723, %v1429, 0
        %v1461 = vsel %vm723, %v1430, 0
        %v1464 = vsel %vm723, %v1431, 0
        %v1467 = vsel %vm723, %v1432, 0
        %v1470 = vsel %vm723, %v1433, 0
        %v1473 = vsel %vm723, %v1434, 0
        %v1476 = vsel %vm723, %v1435, 0
        %v1479 = vsel %vm723, %v1436, 0
        %v1482 = vsel %vm723, %v1437, 0
        %v1485 = vsel %vm723, %v1438, 0
        %v1488 = vsel %vm723, %v1439, 0
        %v1491 = vsel %vm723, %v1440, 0
        %v1494 = vsel %vm723, %v1441, 0
        %1496 = vmatprep.subr.bf16.mxu0 0
        %1497 = vmatpush1.bf16.msra.mxu0 %v1446
        %1498 = vmatprep.subr.bf16.mxu0 0
        %1499 = vmatpush1.bf16.msra.mxu0 0
        %1500 = vmatprep.subr.bf16.mxu0 0
        %1501 = vmatpush1.bf16.msra.mxu0 0
        %1502 = vmatprep.subr.bf16.mxu0 0
        %1503 = vmatpush1.bf16.msra.mxu0 0
        %1504 = vmatprep.subr.bf16.mxu0 0
        %1505 = vmatpush1.bf16.msra.mxu0 0
        %1506 = vmatprep.subr.bf16.mxu0 0
        %1507 = vmatpush1.bf16.msra.mxu0 0
        %1508 = vmatprep.subr.bf16.mxu0 0
        %1509 = vmatpush1.bf16.msra.mxu0 0
        %1510 = vmatprep.subr.bf16.mxu0 0
        %1511 = vmatpush1.bf16.msra.mxu0 0
        %1512 = vmatprep.subr.bf16.mxu0 0
        %1513 = vmatpush1.bf16.msra.mxu0 0
        %1514 = vmatprep.subr.bf16.mxu0 0
        %1515 = vmatpush1.bf16.msra.mxu0 0
        %1516 = vmatprep.subr.bf16.mxu0 0
        %1517 = vmatpush1.bf16.msra.mxu0 0
        %1518 = vmatprep.subr.bf16.mxu0 0
        %1519 = vmatpush1.bf16.msra.mxu0 0
        %1520 = vmatprep.subr.bf16.mxu0 0
        %1521 = vmatpush1.bf16.msra.mxu0 0
        %1522 = vmatprep.subr.bf16.mxu0 0
        %1523 = vmatpush1.bf16.msra.mxu0 0
        %1524 = vmatprep.subr.bf16.mxu0 0
        %1525 = vmatpush1.bf16.msra.mxu0 0
        %1526 = vmatprep.subr.bf16.mxu0 0
        %1527 = vmatpush1.bf16.msra.mxu0 0
        %1528 = vmatprep.mubr.bf16.mxu0 0
        %1529 = vmatmul.mubr.bf16.gmra.mrb[0].mxu0 %v1449
        %v1530 = vpop.f32.mrb[0].mxu0
        %v1531 = vadd.f32 0.0, %v1530
        %v1532 = vpop.f32.mrb[0].mxu0
        %v1533 = vpop.f32.mrb[0].mxu0
        %v1534 = vadd.f32 0.0, %v1533
        %v1535 = vpop.f32.mrb[0].mxu0
        %1536 = vmatprep.mubr.bf16.mxu0 0
        %1537 = vmatmul.mubr.bf16.gmra.mrb[0].mxu0 %v1452
        %v1538 = vpop.f32.mrb[0].mxu0
        %v1539 = vadd.f32 0.0, %v1538
        %v1540 = vpop.f32.mrb[0].mxu0
        %v1541 = vpop.f32.mrb[0].mxu0
        %v1542 = vadd.f32 0.0, %v1541
        %v1543 = vpop.f32.mrb[0].mxu0
        %1544 = vmatprep.mubr.bf16.mxu0 0
        %1545 = vmatmul.mubr.bf16.gmra.mrb[0].mxu0 %v1455
        %v1546 = vpop.f32.mrb[0].mxu0
        %v1547 = vadd.f32 0.0, %v1546
        %v1548 = vpop.f32.mrb[0].mxu0
        %v1549 = vpop.f32.mrb[0].mxu0
        %v1550 = vadd.f32 0.0, %v1549
        %v1551 = vpop.f32.mrb[0].mxu0
        %1552 = vmatprep.mubr.bf16.mxu0 0
        %1553 = vmatmul.mubr.bf16.gmra.mrb[0].mxu0 %v1458
        %v1554 = vpop.f32.mrb[0].mxu0
        %v1555 = vadd.f32 0.0, %v1554
        %v1556 = vpop.f32.mrb[0].mxu0
        %v1557 = vpop.f32.mrb[0].mxu0
        %v1558 = vadd.f32 0.0, %v1557
        %v1559 = vpop.f32.mrb[0].mxu0
        %1560 = vmatprep.mubr.bf16.mxu0 0
        %1561 = vmatmul.mubr.bf16.gmra.mrb[0].mxu0 %v1461
        %v1562 = vpop.f32.mrb[0].mxu0
        %v1563 = vadd.f32 0.0, %v1562
        %v1564 = vpop.f32.mrb[0].mxu0
        %v1565 = vpop.f32.mrb[0].mxu0
        %v1566 = vadd.f32 0.0, %v1565
        %v1567 = vpop.f32.mrb[0].mxu0
        %1568 = vmatprep.mubr.bf16.mxu0 0
        %1569 = vmatmul.mubr.bf16.gmra.mrb[0].mxu0 %v1464
        %v1570 = vpop.f32.mrb[0].mxu0
        %v1571 = vadd.f32 0.0, %v1570
        %v1572 = vpop.f32.mrb[0].mxu0
        %v1573 = vpop.f32.mrb[0].mxu0
        %v1574 = vadd.f32 0.0, %v1573
        %v1575 = vpop.f32.mrb[0].mxu0
        %1576 = vmatprep.mubr.bf16.mxu0 0
        %1577 = vmatmul.mubr.bf16.gmra.mrb[0].mxu0 %v1467
        %v1578 = vpop.f32.mrb[0].mxu0
        %v1579 = vadd.f32 0.0, %v1578
        %v1580 = vpop.f32.mrb[0].mxu0
        %v1581 = vpop.f32.mrb[0].mxu0
        %v1582 = vadd.f32 0.0, %v1581
        %v1583 = vpop.f32.mrb[0].mxu0
        %1584 = vmatprep.mubr.bf16.mxu0 0
        %1585 = vmatmul.mubr.bf16.gmra.mrb[0].mxu0 %v1470
        %v1586 = vpop.f32.mrb[0].mxu0
        %v1587 = vadd.f32 0.0, %v1586
        %v1588 = vpop.f32.mrb[0].mxu0
        %v1589 = vpop.f32.mrb[0].mxu0
        %v1590 = vadd.f32 0.0, %v1589
        %v1591 = vpop.f32.mrb[0].mxu0
        %1592 = vmatprep.mubr.bf16.mxu0 0
        %1593 = vmatmul.mubr.bf16.gmra.mrb[0].mxu0 %v1473
        %v1594 = vpop.f32.mrb[0].mxu0
        %v1595 = vadd.f32 0.0, %v1594
        %v1596 = vpop.f32.mrb[0].mxu0
        %v1597 = vpop.f32.mrb[0].mxu0
        %v1598 = vadd.f32 0.0, %v1597
        %v1599 = vpop.f32.mrb[0].mxu0
        %1600 = vmatprep.mubr.bf16.mxu0 0
        %1601 = vmatmul.mubr.bf16.gmra.mrb[0].mxu0 %v1476
        %v1602 = vpop.f32.mrb[0].mxu0
        %v1603 = vadd.f32 0.0, %v1602
        %v1604 = vpop.f32.mrb[0].mxu0
        %v1605 = vpop.f32.mrb[0].mxu0
        %v1606 = vadd.f32 0.0, %v1605
        %v1607 = vpop.f32.mrb[0].mxu0
        %1608 = vmatprep.mubr.bf16.mxu0 0
        %1609 = vmatmul.mubr.bf16.gmra.mrb[0].mxu0 %v1479
        %v1610 = vpop.f32.mrb[0].mxu0
        %v1611 = vadd.f32 0.0, %v1610
        %v1612 = vpop.f32.mrb[0].mxu0
        %v1613 = vpop.f32.mrb[0].mxu0
        %v1614 = vadd.f32 0.0, %v1613
        %v1615 = vpop.f32.mrb[0].mxu0
        %1616 = vmatprep.mubr.bf16.mxu0 0
        %1617 = vmatmul.mubr.bf16.gmra.mrb[0].mxu0 %v1482
        %v1618 = vpop.f32.mrb[0].mxu0
        %v1619 = vadd.f32 0.0, %v1618
        %v1620 = vpop.f32.mrb[0].mxu0
        %v1621 = vpop.f32.mrb[0].mxu0
        %v1622 = vadd.f32 0.0, %v1621
        %v1623 = vpop.f32.mrb[0].mxu0
        %1624 = vmatprep.mubr.bf16.mxu0 0
        %1625 = vmatmul.mubr.bf16.gmra.mrb[0].mxu0 %v1485
        %v1626 = vpop.f32.mrb[0].mxu0
        %v1627 = vadd.f32 0.0, %v1626
        %v1628 = vpop.f32.mrb[0].mxu0
        %v1629 = vpop.f32.mrb[0].mxu0
        %v1630 = vadd.f32 0.0, %v1629
        %v1631 = vpop.f32.mrb[0].mxu0
        %1632 = vmatprep.mubr.bf16.mxu0 0
        %1633 = vmatmul.mubr.bf16.gmra.mrb[0].mxu0 %v1488
        %v1634 = vpop.f32.mrb[0].mxu0
        %v1635 = vadd.f32 0.0, %v1634
        %v1636 = vpop.f32.mrb[0].mxu0
        %v1637 = vpop.f32.mrb[0].mxu0
        %v1638 = vadd.f32 0.0, %v1637
        %v1639 = vpop.f32.mrb[0].mxu0
        %1640 = vmatprep.mubr.bf16.mxu0 0
        %1641 = vmatmul.mubr.bf16.gmra.mrb[0].mxu0 %v1491
        %v1642 = vpop.f32.mrb[0].mxu0
        %v1643 = vadd.f32 0.0, %v1642
        %v1644 = vpop.f32.mrb[0].mxu0
        %v1645 = vpop.f32.mrb[0].mxu0
        %v1646 = vadd.f32 0.0, %v1645
        %v1647 = vpop.f32.mrb[0].mxu0
        %1648 = vmatprep.mubr.bf16.mxu0 0
        %1649 = vmatmul.mubr.bf16.gmra.mrb[0].mxu0 %v1494
        %v1650 = vpop.f32.mrb[0].mxu0
        %v1651 = vadd.f32 0.0, %v1650
        %v1652 = vpop.f32.mrb[0].mxu0
        %v1653 = vpop.f32.mrb[0].mxu0
        %v1654 = vadd.f32 0.0, %v1653
        %v1655 = vpop.f32.mrb[0].mxu0
        %1656 = vdwg.mxu0
        %v1657 = vadd.f32 %v1102, %v1531
        %v1658 = vadd.f32 %v1105, %v1534
        %v1659 = vadd.f32 %v1110, %v1539
        %v1660 = vadd.f32 %v1113, %v1542
        %v1661 = vadd.f32 %v1118, %v1547
        %v1662 = vadd.f32 %v1121, %v1550
        %v1663 = vadd.f32 %v1126, %v1555
        %v1664 = vadd.f32 %v1129, %v1558
        %v1665 = vadd.f32 %v1134, %v1563
        %v1666 = vadd.f32 %v1137, %v1566
        %v1667 = vadd.f32 %v1142, %v1571
        %v1668 = vadd.f32 %v1145, %v1574
        %v1669 = vadd.f32 %v1150, %v1579
        %v1670 = vadd.f32 %v1153, %v1582
        %v1671 = vadd.f32 %v1158, %v1587
        %v1672 = vadd.f32 %v1161, %v1590
        %v1673 = vadd.f32 %v1166, %v1595
        %v1674 = vadd.f32 %v1169, %v1598
        %v1675 = vadd.f32 %v1174, %v1603
        %v1676 = vadd.f32 %v1177, %v1606
        %v1677 = vadd.f32 %v1182, %v1611
        %v1678 = vadd.f32 %v1185, %v1614
        %v1679 = vadd.f32 %v1190, %v1619
        %v1680 = vadd.f32 %v1193, %v1622
        %v1681 = vadd.f32 %v1198, %v1627
        %v1682 = vadd.f32 %v1201, %v1630
        %v1683 = vadd.f32 %v1206, %v1635
        %v1684 = vadd.f32 %v1209, %v1638
        %v1685 = vadd.f32 %v1214, %v1643
        %v1686 = vadd.f32 %v1217, %v1646
        %v1687 = vadd.f32 %v1222, %v1651
        %v1688 = vadd.f32 %v1225, %v1654
        %s1689 = sadd.s32 %s225, 1
        %s1690 = smul.u32 %s1689, 3
        %s1691 = smul.addr %s1690, 4
        %s1692 = scalar_lea.vmem %s215, %s1691
        %v1693 = vld [vmem:[%s1692] sm:$0xf]
        %v1694 = vld [vmem:[%s1692 + $0x4] sm:$0xf]
        %v1695 = vld [vmem:[%s1692 + $0xc] sm:$0xf]
        %v1696 = vld [vmem:[%s1692 + $0x10] sm:$0xf]
        %v1697 = vld [vmem:[%s1692 + $0x18] sm:$0xf]
        %v1698 = vld [vmem:[%s1692 + $0x1c] sm:$0xf]
        %v1699 = vld [vmem:[%s1692 + $0x24] sm:$0xf]
        %v1700 = vld [vmem:[%s1692 + $0x28] sm:$0xf]
        %v1701 = vld [vmem:[%s1692 + $0x30] sm:$0xf]
        %v1702 = vld [vmem:[%s1692 + $0x34] sm:$0xf]
        %v1703 = vld [vmem:[%s1692 + $0x3c] sm:$0xf]
        %v1704 = vld [vmem:[%s1692 + $0x40] sm:$0xf]
        %v1705 = vld [vmem:[%s1692 + $0x48] sm:$0xf]
        %v1706 = vld [vmem:[%s1692 + $0x4c] sm:$0xf]
        %v1707 = vld [vmem:[%s1692 + $0x54] sm:$0xf]
        %v1708 = vld [vmem:[%s1692 + $0x58] sm:$0xf]
        %v1709 = vld [vmem:[%s1692 + $0x60] sm:$0xf]
        %v1710 = vld [vmem:[%s1692 + $0x64] sm:$0xf]
        %v1711 = vld [vmem:[%s1692 + $0x6c] sm:$0xf]
        %v1712 = vld [vmem:[%s1692 + $0x70] sm:$0xf]
        %v1713 = vld [vmem:[%s1692 + $0x78] sm:$0xf]
        %v1714 = vld [vmem:[%s1692 + $0x7c] sm:$0xf]
        %v1715 = vld [vmem:[%s1692 + $0x84] sm:$0xf]
        %v1716 = vld [vmem:[%s1692 + $0x88] sm:$0xf]
        %v1717 = vld [vmem:[%s1692 + $0x90] sm:$0xf]
        %v1718 = vld [vmem:[%s1692 + $0x94] sm:$0xf]
        %v1719 = vld [vmem:[%s1692 + $0x9c] sm:$0xf]
        %v1720 = vld [vmem:[%s1692 + $0xa0] sm:$0xf]
        %v1721 = vld [vmem:[%s1692 + $0xa8] sm:$0xf]
        %v1722 = vld [vmem:[%s1692 + $0xac] sm:$0xf]
        %v1723 = vld [vmem:[%s1692 + $0xb4] sm:$0xf]
        %v1724 = vld [vmem:[%s1692 + $0xb8] sm:$0xf]
        %s1725 = scalar_lea.vmem %s219, 24
        %v1726 = vld [vmem:[%s1725] sm:$0xf]
        %v1727 = vld [vmem:[%s1725 + $0x4] sm:$0xf]
        %v1760 = vunpack.c.l.b16 %v1693
        %v1761 = vunpack.c.l.b16 %v1694
        %v1762 = vunpack.c.l.b16 %v1695
        %v1763 = vunpack.c.l.b16 %v1696
        %v1764 = vunpack.c.l.b16 %v1697
        %v1765 = vunpack.c.l.b16 %v1698
        %v1766 = vunpack.c.l.b16 %v1699
        %v1767 = vunpack.c.l.b16 %v1700
        %v1768 = vunpack.c.l.b16 %v1701
        %v1769 = vunpack.c.l.b16 %v1702
        %v1770 = vunpack.c.l.b16 %v1703
        %v1771 = vunpack.c.l.b16 %v1704
        %v1772 = vunpack.c.l.b16 %v1705
        %v1773 = vunpack.c.l.b16 %v1706
        %v1774 = vunpack.c.l.b16 %v1707
        %v1775 = vunpack.c.l.b16 %v1708
        %v1776 = vunpack.c.l.b16 %v1709
        %v1777 = vunpack.c.l.b16 %v1710
        %v1778 = vunpack.c.l.b16 %v1711
        %v1779 = vunpack.c.l.b16 %v1712
        %v1780 = vunpack.c.l.b16 %v1713
        %v1781 = vunpack.c.l.b16 %v1714
        %v1782 = vunpack.c.l.b16 %v1715
        %v1783 = vunpack.c.l.b16 %v1716
        %v1784 = vunpack.c.l.b16 %v1717
        %v1785 = vunpack.c.l.b16 %v1718
        %v1786 = vunpack.c.l.b16 %v1719
        %v1787 = vunpack.c.l.b16 %v1720
        %v1788 = vunpack.c.l.b16 %v1721
        %v1789 = vunpack.c.l.b16 %v1722
        %v1790 = vunpack.c.l.b16 %v1723
        %v1791 = vunpack.c.l.b16 %v1724
        %v1792 = vpack.c.b16 %v1761, %v1760
        %v1793 = vpack.c.b16 %v1763, %v1762
        %v1794 = vpack.c.b16 %v1765, %v1764
        %v1795 = vpack.c.b16 %v1767, %v1766
        %v1796 = vpack.c.b16 %v1769, %v1768
        %v1797 = vpack.c.b16 %v1771, %v1770
        %v1798 = vpack.c.b16 %v1773, %v1772
        %v1799 = vpack.c.b16 %v1775, %v1774
        %v1800 = vpack.c.b16 %v1777, %v1776
        %v1801 = vpack.c.b16 %v1779, %v1778
        %v1802 = vpack.c.b16 %v1781, %v1780
        %v1803 = vpack.c.b16 %v1783, %v1782
        %v1804 = vpack.c.b16 %v1785, %v1784
        %v1805 = vpack.c.b16 %v1787, %v1786
        %v1806 = vpack.c.b16 %v1789, %v1788
        %v1807 = vpack.c.b16 %v1791, %v1790
        %v1810 = vunpack.c.l.b16 %v1726
        %v1811 = vunpack.c.l.b16 %v1727
        %v1812 = vpack.c.b16 %v1811, %v1810
        %v1815 = vsel %vm723, %v1792, 0
        %v1818 = vsel %vm723, %v1793, 0
        %v1821 = vsel %vm723, %v1794, 0
        %v1824 = vsel %vm723, %v1795, 0
        %v1827 = vsel %vm723, %v1796, 0
        %v1830 = vsel %vm723, %v1797, 0
        %v1833 = vsel %vm723, %v1798, 0
        %v1836 = vsel %vm723, %v1799, 0
        %v1839 = vsel %vm723, %v1800, 0
        %v1842 = vsel %vm723, %v1801, 0
        %v1845 = vsel %vm723, %v1802, 0
        %v1848 = vsel %vm723, %v1803, 0
        %v1851 = vsel %vm723, %v1804, 0
        %v1854 = vsel %vm723, %v1805, 0
        %v1857 = vsel %vm723, %v1806, 0
        %v1860 = vsel %vm723, %v1807, 0
        %1862 = vmatprep.subr.bf16.mxu0 0
        %1863 = vmatpush1.bf16.msra.mxu0 %v1812
        %1864 = vmatprep.subr.bf16.mxu0 0
        %1865 = vmatpush1.bf16.msra.mxu0 0
        %1866 = vmatprep.subr.bf16.mxu0 0
        %1867 = vmatpush1.bf16.msra.mxu0 0
        %1868 = vmatprep.subr.bf16.mxu0 0
        %1869 = vmatpush1.bf16.msra.mxu0 0
        %1870 = vmatprep.subr.bf16.mxu0 0
        %1871 = vmatpush1.bf16.msra.mxu0 0
        %1872 = vmatprep.subr.bf16.mxu0 0
        %1873 = vmatpush1.bf16.msra.mxu0 0
        %1874 = vmatprep.subr.bf16.mxu0 0
        %1875 = vmatpush1.bf16.msra.mxu0 0
        %1876 = vmatprep.subr.bf16.mxu0 0
        %1877 = vmatpush1.bf16.msra.mxu0 0
        %1878 = vmatprep.subr.bf16.mxu0 0
        %1879 = vmatpush1.bf16.msra.mxu0 0
        %1880 = vmatprep.subr.bf16.mxu0 0
        %1881 = vmatpush1.bf16.msra.mxu0 0
        %1882 = vmatprep.subr.bf16.mxu0 0
        %1883 = vmatpush1.bf16.msra.mxu0 0
        %1884 = vmatprep.subr.bf16.mxu0 0
        %1885 = vmatpush1.bf16.msra.mxu0 0
        %1886 = vmatprep.subr.bf16.mxu0 0
        %1887 = vmatpush1.bf16.msra.mxu0 0
        %1888 = vmatprep.subr.bf16.mxu0 0
        %1889 = vmatpush1.bf16.msra.mxu0 0
        %1890 = vmatprep.subr.bf16.mxu0 0
        %1891 = vmatpush1.bf16.msra.mxu0 0
        %1892 = vmatprep.subr.bf16.mxu0 0
        %1893 = vmatpush1.bf16.msra.mxu0 0
        %1894 = vmatprep.mubr.bf16.mxu0 0
        %1895 = vmatmul.mubr.bf16.gmra.mrb[0].mxu0 %v1815
        %v1896 = vpop.f32.mrb[0].mxu0
        %v1897 = vadd.f32 0.0, %v1896
        %v1898 = vpop.f32.mrb[0].mxu0
        %v1899 = vpop.f32.mrb[0].mxu0
        %v1900 = vadd.f32 0.0, %v1899
        %v1901 = vpop.f32.mrb[0].mxu0
        %1902 = vmatprep.mubr.bf16.mxu0 0
        %1903 = vmatmul.mubr.bf16.gmra.mrb[0].mxu0 %v1818
        %v1904 = vpop.f32.mrb[0].mxu0
        %v1905 = vadd.f32 0.0, %v1904
        %v1906 = vpop.f32.mrb[0].mxu0
        %v1907 = vpop.f32.mrb[0].mxu0
        %v1908 = vadd.f32 0.0, %v1907
        %v1909 = vpop.f32.mrb[0].mxu0
        %1910 = vmatprep.mubr.bf16.mxu0 0
        %1911 = vmatmul.mubr.bf16.gmra.mrb[0].mxu0 %v1821
        %v1912 = vpop.f32.mrb[0].mxu0
        %v1913 = vadd.f32 0.0, %v1912
        %v1914 = vpop.f32.mrb[0].mxu0
        %v1915 = vpop.f32.mrb[0].mxu0
        %v1916 = vadd.f32 0.0, %v1915
        %v1917 = vpop.f32.mrb[0].mxu0
        %1918 = vmatprep.mubr.bf16.mxu0 0
        %1919 = vmatmul.mubr.bf16.gmra.mrb[0].mxu0 %v1824
        %v1920 = vpop.f32.mrb[0].mxu0
        %v1921 = vadd.f32 0.0, %v1920
        %v1922 = vpop.f32.mrb[0].mxu0
        %v1923 = vpop.f32.mrb[0].mxu0
        %v1924 = vadd.f32 0.0, %v1923
        %v1925 = vpop.f32.mrb[0].mxu0
        %1926 = vmatprep.mubr.bf16.mxu0 0
        %1927 = vmatmul.mubr.bf16.gmra.mrb[0].mxu0 %v1827
        %v1928 = vpop.f32.mrb[0].mxu0
        %v1929 = vadd.f32 0.0, %v1928
        %v1930 = vpop.f32.mrb[0].mxu0
        %v1931 = vpop.f32.mrb[0].mxu0
        %v1932 = vadd.f32 0.0, %v1931
        %v1933 = vpop.f32.mrb[0].mxu0
        %1934 = vmatprep.mubr.bf16.mxu0 0
        %1935 = vmatmul.mubr.bf16.gmra.mrb[0].mxu0 %v1830
        %v1936 = vpop.f32.mrb[0].mxu0
        %v1937 = vadd.f32 0.0, %v1936
        %v1938 = vpop.f32.mrb[0].mxu0
        %v1939 = vpop.f32.mrb[0].mxu0
        %v1940 = vadd.f32 0.0, %v1939
        %v1941 = vpop.f32.mrb[0].mxu0
        %1942 = vmatprep.mubr.bf16.mxu0 0
        %1943 = vmatmul.mubr.bf16.gmra.mrb[0].mxu0 %v1833
        %v1944 = vpop.f32.mrb[0].mxu0
        %v1945 = vadd.f32 0.0, %v1944
        %v1946 = vpop.f32.mrb[0].mxu0
        %v1947 = vpop.f32.mrb[0].mxu0
        %v1948 = vadd.f32 0.0, %v1947
        %v1949 = vpop.f32.mrb[0].mxu0
        %1950 = vmatprep.mubr.bf16.mxu0 0
        %1951 = vmatmul.mubr.bf16.gmra.mrb[0].mxu0 %v1836
        %v1952 = vpop.f32.mrb[0].mxu0
        %v1953 = vadd.f32 0.0, %v1952
        %v1954 = vpop.f32.mrb[0].mxu0
        %v1955 = vpop.f32.mrb[0].mxu0
        %v1956 = vadd.f32 0.0, %v1955
        %v1957 = vpop.f32.mrb[0].mxu0
        %1958 = vmatprep.mubr.bf16.mxu0 0
        %1959 = vmatmul.mubr.bf16.gmra.mrb[0].mxu0 %v1839
        %v1960 = vpop.f32.mrb[0].mxu0
        %v1961 = vadd.f32 0.0, %v1960
        %v1962 = vpop.f32.mrb[0].mxu0
        %v1963 = vpop.f32.mrb[0].mxu0
        %v1964 = vadd.f32 0.0, %v1963
        %v1965 = vpop.f32.mrb[0].mxu0
        %1966 = vmatprep.mubr.bf16.mxu0 0
        %1967 = vmatmul.mubr.bf16.gmra.mrb[0].mxu0 %v1842
        %v1968 = vpop.f32.mrb[0].mxu0
        %v1969 = vadd.f32 0.0, %v1968
        %v1970 = vpop.f32.mrb[0].mxu0
        %v1971 = vpop.f32.mrb[0].mxu0
        %v1972 = vadd.f32 0.0, %v1971
        %v1973 = vpop.f32.mrb[0].mxu0
        %1974 = vmatprep.mubr.bf16.mxu0 0
        %1975 = vmatmul.mubr.bf16.gmra.mrb[0].mxu0 %v1845
        %v1976 = vpop.f32.mrb[0].mxu0
        %v1977 = vadd.f32 0.0, %v1976
        %v1978 = vpop.f32.mrb[0].mxu0
        %v1979 = vpop.f32.mrb[0].mxu0
        %v1980 = vadd.f32 0.0, %v1979
        %v1981 = vpop.f32.mrb[0].mxu0
        %1982 = vmatprep.mubr.bf16.mxu0 0
        %1983 = vmatmul.mubr.bf16.gmra.mrb[0].mxu0 %v1848
        %v1984 = vpop.f32.mrb[0].mxu0
        %v1985 = vadd.f32 0.0, %v1984
        %v1986 = vpop.f32.mrb[0].mxu0
        %v1987 = vpop.f32.mrb[0].mxu0
        %v1988 = vadd.f32 0.0, %v1987
        %v1989 = vpop.f32.mrb[0].mxu0
        %1990 = vmatprep.mubr.bf16.mxu0 0
        %1991 = vmatmul.mubr.bf16.gmra.mrb[0].mxu0 %v1851
        %v1992 = vpop.f32.mrb[0].mxu0
        %v1993 = vadd.f32 0.0, %v1992
        %v1994 = vpop.f32.mrb[0].mxu0
        %v1995 = vpop.f32.mrb[0].mxu0
        %v1996 = vadd.f32 0.0, %v1995
        %v1997 = vpop.f32.mrb[0].mxu0
        %1998 = vmatprep.mubr.bf16.mxu0 0
        %1999 = vmatmul.mubr.bf16.gmra.mrb[0].mxu0 %v1854
        %v2000 = vpop.f32.mrb[0].mxu0
        %v2001 = vadd.f32 0.0, %v2000
        %v2002 = vpop.f32.mrb[0].mxu0
        %v2003 = vpop.f32.mrb[0].mxu0
        %v2004 = vadd.f32 0.0, %v2003
        %v2005 = vpop.f32.mrb[0].mxu0
        %2006 = vmatprep.mubr.bf16.mxu0 0
        %2007 = vmatmul.mubr.bf16.gmra.mrb[0].mxu0 %v1857
        %v2008 = vpop.f32.mrb[0].mxu0
        %v2009 = vadd.f32 0.0, %v2008
        %v2010 = vpop.f32.mrb[0].mxu0
        %v2011 = vpop.f32.mrb[0].mxu0
        %v2012 = vadd.f32 0.0, %v2011
        %v2013 = vpop.f32.mrb[0].mxu0
        %2014 = vmatprep.mubr.bf16.mxu0 0
        %2015 = vmatmul.mubr.bf16.gmra.mrb[0].mxu0 %v1860
        %v2016 = vpop.f32.mrb[0].mxu0
        %v2017 = vadd.f32 0.0, %v2016
        %v2018 = vpop.f32.mrb[0].mxu0
        %v2019 = vpop.f32.mrb[0].mxu0
        %v2020 = vadd.f32 0.0, %v2019
        %v2021 = vpop.f32.mrb[0].mxu0
        %2022 = vdwg.mxu0
        %v2023 = vadd.f32 %v1657, %v1897
        %v2024 = vadd.f32 %v1658, %v1900
        %v2025 = vadd.f32 %v1659, %v1905
        %v2026 = vadd.f32 %v1660, %v1908
        %v2027 = vadd.f32 %v1661, %v1913
        %v2028 = vadd.f32 %v1662, %v1916
        %v2029 = vadd.f32 %v1663, %v1921
        %v2030 = vadd.f32 %v1664, %v1924
        %v2031 = vadd.f32 %v1665, %v1929
        %v2032 = vadd.f32 %v1666, %v1932
        %v2033 = vadd.f32 %v1667, %v1937
        %v2034 = vadd.f32 %v1668, %v1940
        %v2035 = vadd.f32 %v1669, %v1945
        %v2036 = vadd.f32 %v1670, %v1948
        %v2037 = vadd.f32 %v1671, %v1953
        %v2038 = vadd.f32 %v1672, %v1956
        %v2039 = vadd.f32 %v1673, %v1961
        %v2040 = vadd.f32 %v1674, %v1964
        %v2041 = vadd.f32 %v1675, %v1969
        %v2042 = vadd.f32 %v1676, %v1972
        %v2043 = vadd.f32 %v1677, %v1977
        %v2044 = vadd.f32 %v1678, %v1980
        %v2045 = vadd.f32 %v1679, %v1985
        %v2046 = vadd.f32 %v1680, %v1988
        %v2047 = vadd.f32 %v1681, %v1993
        %v2048 = vadd.f32 %v1682, %v1996
        %v2049 = vadd.f32 %v1683, %v2001
        %v2050 = vadd.f32 %v1684, %v2004
        %v2051 = vadd.f32 %v1685, %v2009
        %v2052 = vadd.f32 %v1686, %v2012
        %v2053 = vadd.f32 %v1687, %v2017
        %v2054 = vadd.f32 %v1688, %v2020
        %v2055 = vld [vmem:[%s1692] sm:$0xf]
        %v2056 = vld [vmem:[%s1692 + $0x4] sm:$0xf]
        %v2057 = vld [vmem:[%s1692 + $0x8] sm:$0x1]
        %v2058 = vld [vmem:[%s1692 + $0xc] sm:$0xf]
        %v2059 = vld [vmem:[%s1692 + $0x10] sm:$0xf]
        %v2060 = vld [vmem:[%s1692 + $0x14] sm:$0x1]
        %v2061 = vld [vmem:[%s1692 + $0x18] sm:$0xf]
        %v2062 = vld [vmem:[%s1692 + $0x1c] sm:$0xf]
        %v2063 = vld [vmem:[%s1692 + $0x20] sm:$0x1]
        %v2064 = vld [vmem:[%s1692 + $0x24] sm:$0xf]
        %v2065 = vld [vmem:[%s1692 + $0x28] sm:$0xf]
        %v2066 = vld [vmem:[%s1692 + $0x2c] sm:$0x1]
        %v2067 = vld [vmem:[%s1692 + $0x30] sm:$0xf]
        %v2068 = vld [vmem:[%s1692 + $0x34] sm:$0xf]
        %v2069 = vld [vmem:[%s1692 + $0x38] sm:$0x1]
        %v2070 = vld [vmem:[%s1692 + $0x3c] sm:$0xf]
        %v2071 = vld [vmem:[%s1692 + $0x40] sm:$0xf]
        %v2072 = vld [vmem:[%s1692 + $0x44] sm:$0x1]
        %v2073 = vld [vmem:[%s1692 + $0x48] sm:$0xf]
        %v2074 = vld [vmem:[%s1692 + $0x4c] sm:$0xf]
        %v2075 = vld [vmem:[%s1692 + $0x50] sm:$0x1]
        %v2076 = vld [vmem:[%s1692 + $0x54] sm:$0xf]
        %v2077 = vld [vmem:[%s1692 + $0x58] sm:$0xf]
        %v2078 = vld [vmem:[%s1692 + $0x5c] sm:$0x1]
        %v2079 = vld [vmem:[%s1692 + $0x60] sm:$0xf]
        %v2080 = vld [vmem:[%s1692 + $0x64] sm:$0xf]
        %v2081 = vld [vmem:[%s1692 + $0x68] sm:$0x1]
        %v2082 = vld [vmem:[%s1692 + $0x6c] sm:$0xf]
        %v2083 = vld [vmem:[%s1692 + $0x70] sm:$0xf]
        %v2084 = vld [vmem:[%s1692 + $0x74] sm:$0x1]
        %v2085 = vld [vmem:[%s1692 + $0x78] sm:$0xf]
        %v2086 = vld [vmem:[%s1692 + $0x7c] sm:$0xf]
        %v2087 = vld [vmem:[%s1692 + $0x80] sm:$0x1]
        %v2088 = vld [vmem:[%s1692 + $0x84] sm:$0xf]
        %v2089 = vld [vmem:[%s1692 + $0x88] sm:$0xf]
        %v2090 = vld [vmem:[%s1692 + $0x8c] sm:$0x1]
        %v2091 = vld [vmem:[%s1692 + $0x90] sm:$0xf]
        %v2092 = vld [vmem:[%s1692 + $0x94] sm:$0xf]
        %v2093 = vld [vmem:[%s1692 + $0x98] sm:$0x1]
        %v2094 = vld [vmem:[%s1692 + $0x9c] sm:$0xf]
        %v2095 = vld [vmem:[%s1692 + $0xa0] sm:$0xf]
        %v2096 = vld [vmem:[%s1692 + $0xa4] sm:$0x1]
        %v2097 = vld [vmem:[%s1692 + $0xa8] sm:$0xf]
        %v2098 = vld [vmem:[%s1692 + $0xac] sm:$0xf]
        %v2099 = vld [vmem:[%s1692 + $0xb0] sm:$0x1]
        %v2100 = vld [vmem:[%s1692 + $0xb4] sm:$0xf]
        %v2101 = vld [vmem:[%s1692 + $0xb8] sm:$0xf]
        %v2102 = vld [vmem:[%s1692 + $0xbc] sm:$0x1]
        %v2104 = vshrl.u32 %v2055, 16
        %v2106 = vrot.slane %v2104, 4
        %v2107 = vshll.u32 %v2055, 16
        %v2109 = vrot.slane %v2107, 5
        %v2110 = vor.u32 %v2106, %v2109
        %v2111 = vrot.slane %v2110, 4
        %v2113 = vshll.u32 %v2056, 16
        %v2115 = vrot.slane %v2113, 5
        %v2116 = vsel %vm281, %v2111, %v2115
        %v2117 = vshrl.u32 %v2056, 16
        %v2119 = vrot.slane %v2117, 4
        %v2120 = vor.u32 %v2119, %v2115
        %v2121 = vrot.slane %v2120, 4
        %v2123 = vshll.u32 %v2057, 16
        %v2125 = vrot.slane %v2123, 5
        %v2126 = vsel %vm281, %v2121, %v2125
        %v2128 = vshrl.u32 %v2058, 16
        %v2130 = vrot.slane %v2128, 4
        %v2131 = vshll.u32 %v2058, 16
        %v2133 = vrot.slane %v2131, 5
        %v2134 = vor.u32 %v2130, %v2133
        %v2135 = vrot.slane %v2134, 4
        %v2137 = vshll.u32 %v2059, 16
        %v2139 = vrot.slane %v2137, 5
        %v2140 = vsel %vm281, %v2135, %v2139
        %v2141 = vshrl.u32 %v2059, 16
        %v2143 = vrot.slane %v2141, 4
        %v2144 = vor.u32 %v2143, %v2139
        %v2145 = vrot.slane %v2144, 4
        %v2147 = vshll.u32 %v2060, 16
        %v2149 = vrot.slane %v2147, 5
        %v2150 = vsel %vm281, %v2145, %v2149
        %v2152 = vshrl.u32 %v2061, 16
        %v2154 = vrot.slane %v2152, 4
        %v2155 = vshll.u32 %v2061, 16
        %v2157 = vrot.slane %v2155, 5
        %v2158 = vor.u32 %v2154, %v2157
        %v2159 = vrot.slane %v2158, 4
        %v2161 = vshll.u32 %v2062, 16
        %v2163 = vrot.slane %v2161, 5
        %v2164 = vsel %vm281, %v2159, %v2163
        %v2165 = vshrl.u32 %v2062, 16
        %v2167 = vrot.slane %v2165, 4
        %v2168 = vor.u32 %v2167, %v2163
        %v2169 = vrot.slane %v2168, 4
        %v2171 = vshll.u32 %v2063, 16
        %v2173 = vrot.slane %v2171, 5
        %v2174 = vsel %vm281, %v2169, %v2173
        %v2176 = vshrl.u32 %v2064, 16
        %v2178 = vrot.slane %v2176, 4
        %v2179 = vshll.u32 %v2064, 16
        %v2181 = vrot.slane %v2179, 5
        %v2182 = vor.u32 %v2178, %v2181
        %v2183 = vrot.slane %v2182, 4
        %v2185 = vshll.u32 %v2065, 16
        %v2187 = vrot.slane %v2185, 5
        %v2188 = vsel %vm281, %v2183, %v2187
        %v2189 = vshrl.u32 %v2065, 16
        %v2191 = vrot.slane %v2189, 4
        %v2192 = vor.u32 %v2191, %v2187
        %v2193 = vrot.slane %v2192, 4
        %v2195 = vshll.u32 %v2066, 16
        %v2197 = vrot.slane %v2195, 5
        %v2198 = vsel %vm281, %v2193, %v2197
        %v2200 = vshrl.u32 %v2067, 16
        %v2202 = vrot.slane %v2200, 4
        %v2203 = vshll.u32 %v2067, 16
        %v2205 = vrot.slane %v2203, 5
        %v2206 = vor.u32 %v2202, %v2205
        %v2207 = vrot.slane %v2206, 4
        %v2209 = vshll.u32 %v2068, 16
        %v2211 = vrot.slane %v2209, 5
        %v2212 = vsel %vm281, %v2207, %v2211
        %v2213 = vshrl.u32 %v2068, 16
        %v2215 = vrot.slane %v2213, 4
        %v2216 = vor.u32 %v2215, %v2211
        %v2217 = vrot.slane %v2216, 4
        %v2219 = vshll.u32 %v2069, 16
        %v2221 = vrot.slane %v2219, 5
        %v2222 = vsel %vm281, %v2217, %v2221
        %v2224 = vshrl.u32 %v2070, 16
        %v2226 = vrot.slane %v2224, 4
        %v2227 = vshll.u32 %v2070, 16
        %v2229 = vrot.slane %v2227, 5
        %v2230 = vor.u32 %v2226, %v2229
        %v2231 = vrot.slane %v2230, 4
        %v2233 = vshll.u32 %v2071, 16
        %v2235 = vrot.slane %v2233, 5
        %v2236 = vsel %vm281, %v2231, %v2235
        %v2237 = vshrl.u32 %v2071, 16
        %v2239 = vrot.slane %v2237, 4
        %v2240 = vor.u32 %v2239, %v2235
        %v2241 = vrot.slane %v2240, 4
        %v2243 = vshll.u32 %v2072, 16
        %v2245 = vrot.slane %v2243, 5
        %v2246 = vsel %vm281, %v2241, %v2245
        %v2248 = vshrl.u32 %v2073, 16
        %v2250 = vrot.slane %v2248, 4
        %v2251 = vshll.u32 %v2073, 16
        %v2253 = vrot.slane %v2251, 5
        %v2254 = vor.u32 %v2250, %v2253
        %v2255 = vrot.slane %v2254, 4
        %v2257 = vshll.u32 %v2074, 16
        %v2259 = vrot.slane %v2257, 5
        %v2260 = vsel %vm281, %v2255, %v2259
        %v2261 = vshrl.u32 %v2074, 16
        %v2263 = vrot.slane %v2261, 4
        %v2264 = vor.u32 %v2263, %v2259
        %v2265 = vrot.slane %v2264, 4
        %v2267 = vshll.u32 %v2075, 16
        %v2269 = vrot.slane %v2267, 5
        %v2270 = vsel %vm281, %v2265, %v2269
        %v2272 = vshrl.u32 %v2076, 16
        %v2274 = vrot.slane %v2272, 4
        %v2275 = vshll.u32 %v2076, 16
        %v2277 = vrot.slane %v2275, 5
        %v2278 = vor.u32 %v2274, %v2277
        %v2279 = vrot.slane %v2278, 4
        %v2281 = vshll.u32 %v2077, 16
        %v2283 = vrot.slane %v2281, 5
        %v2284 = vsel %vm281, %v2279, %v2283
        %v2285 = vshrl.u32 %v2077, 16
        %v2287 = vrot.slane %v2285, 4
        %v2288 = vor.u32 %v2287, %v2283
        %v2289 = vrot.slane %v2288, 4
        %v2291 = vshll.u32 %v2078, 16
        %v2293 = vrot.slane %v2291, 5
        %v2294 = vsel %vm281, %v2289, %v2293
        %v2296 = vshrl.u32 %v2079, 16
        %v2298 = vrot.slane %v2296, 4
        %v2299 = vshll.u32 %v2079, 16
        %v2301 = vrot.slane %v2299, 5
        %v2302 = vor.u32 %v2298, %v2301
        %v2303 = vrot.slane %v2302, 4
        %v2305 = vshll.u32 %v2080, 16
        %v2307 = vrot.slane %v2305, 5
        %v2308 = vsel %vm281, %v2303, %v2307
        %v2309 = vshrl.u32 %v2080, 16
        %v2311 = vrot.slane %v2309, 4
        %v2312 = vor.u32 %v2311, %v2307
        %v2313 = vrot.slane %v2312, 4
        %v2315 = vshll.u32 %v2081, 16
        %v2317 = vrot.slane %v2315, 5
        %v2318 = vsel %vm281, %v2313, %v2317
        %v2320 = vshrl.u32 %v2082, 16
        %v2322 = vrot.slane %v2320, 4
        %v2323 = vshll.u32 %v2082, 16
        %v2325 = vrot.slane %v2323, 5
        %v2326 = vor.u32 %v2322, %v2325
        %v2327 = vrot.slane %v2326, 4
        %v2329 = vshll.u32 %v2083, 16
        %v2331 = vrot.slane %v2329, 5
        %v2332 = vsel %vm281, %v2327, %v2331
        %v2333 = vshrl.u32 %v2083, 16
        %v2335 = vrot.slane %v2333, 4
        %v2336 = vor.u32 %v2335, %v2331
        %v2337 = vrot.slane %v2336, 4
        %v2339 = vshll.u32 %v2084, 16
        %v2341 = vrot.slane %v2339, 5
        %v2342 = vsel %vm281, %v2337, %v2341
        %v2344 = vshrl.u32 %v2085, 16
        %v2346 = vrot.slane %v2344, 4
        %v2347 = vshll.u32 %v2085, 16
        %v2349 = vrot.slane %v2347, 5
        %v2350 = vor.u32 %v2346, %v2349
        %v2351 = vrot.slane %v2350, 4
        %v2353 = vshll.u32 %v2086, 16
        %v2355 = vrot.slane %v2353, 5
        %v2356 = vsel %vm281, %v2351, %v2355
        %v2357 = vshrl.u32 %v2086, 16
        %v2359 = vrot.slane %v2357, 4
        %v2360 = vor.u32 %v2359, %v2355
        %v2361 = vrot.slane %v2360, 4
        %v2363 = vshll.u32 %v2087, 16
        %v2365 = vrot.slane %v2363, 5
        %v2366 = vsel %vm281, %v2361, %v2365
        %v2368 = vshrl.u32 %v2088, 16
        %v2370 = vrot.slane %v2368, 4
        %v2371 = vshll.u32 %v2088, 16
        %v2373 = vrot.slane %v2371, 5
        %v2374 = vor.u32 %v2370, %v2373
        %v2375 = vrot.slane %v2374, 4
        %v2377 = vshll.u32 %v2089, 16
        %v2379 = vrot.slane %v2377, 5
        %v2380 = vsel %vm281, %v2375, %v2379
        %v2381 = vshrl.u32 %v2089, 16
        %v2383 = vrot.slane %v2381, 4
        %v2384 = vor.u32 %v2383, %v2379
        %v2385 = vrot.slane %v2384, 4
        %v2387 = vshll.u32 %v2090, 16
        %v2389 = vrot.slane %v2387, 5
        %v2390 = vsel %vm281, %v2385, %v2389
        %v2392 = vshrl.u32 %v2091, 16
        %v2394 = vrot.slane %v2392, 4
        %v2395 = vshll.u32 %v2091, 16
        %v2397 = vrot.slane %v2395, 5
        %v2398 = vor.u32 %v2394, %v2397
        %v2399 = vrot.slane %v2398, 4
        %v2401 = vshll.u32 %v2092, 16
        %v2403 = vrot.slane %v2401, 5
        %v2404 = vsel %vm281, %v2399, %v2403
        %v2405 = vshrl.u32 %v2092, 16
        %v2407 = vrot.slane %v2405, 4
        %v2408 = vor.u32 %v2407, %v2403
        %v2409 = vrot.slane %v2408, 4
        %v2411 = vshll.u32 %v2093, 16
        %v2413 = vrot.slane %v2411, 5
        %v2414 = vsel %vm281, %v2409, %v2413
        %v2416 = vshrl.u32 %v2094, 16
        %v2418 = vrot.slane %v2416, 4
        %v2419 = vshll.u32 %v2094, 16
        %v2421 = vrot.slane %v2419, 5
        %v2422 = vor.u32 %v2418, %v2421
        %v2423 = vrot.slane %v2422, 4
        %v2425 = vshll.u32 %v2095, 16
        %v2427 = vrot.slane %v2425, 5
        %v2428 = vsel %vm281, %v2423, %v2427
        %v2429 = vshrl.u32 %v2095, 16
        %v2431 = vrot.slane %v2429, 4
        %v2432 = vor.u32 %v2431, %v2427
        %v2433 = vrot.slane %v2432, 4
        %v2435 = vshll.u32 %v2096, 16
        %v2437 = vrot.slane %v2435, 5
        %v2438 = vsel %vm281, %v2433, %v2437
        %v2440 = vshrl.u32 %v2097, 16
        %v2442 = vrot.slane %v2440, 4
        %v2443 = vshll.u32 %v2097, 16
        %v2445 = vrot.slane %v2443, 5
        %v2446 = vor.u32 %v2442, %v2445
        %v2447 = vrot.slane %v2446, 4
        %v2449 = vshll.u32 %v2098, 16
        %v2451 = vrot.slane %v2449, 5
        %v2452 = vsel %vm281, %v2447, %v2451
        %v2453 = vshrl.u32 %v2098, 16
        %v2455 = vrot.slane %v2453, 4
        %v2456 = vor.u32 %v2455, %v2451
        %v2457 = vrot.slane %v2456, 4
        %v2459 = vshll.u32 %v2099, 16
        %v2461 = vrot.slane %v2459, 5
        %v2462 = vsel %vm281, %v2457, %v2461
        %v2464 = vshrl.u32 %v2100, 16
        %v2466 = vrot.slane %v2464, 4
        %v2467 = vshll.u32 %v2100, 16
        %v2469 = vrot.slane %v2467, 5
        %v2470 = vor.u32 %v2466, %v2469
        %v2471 = vrot.slane %v2470, 4
        %v2473 = vshll.u32 %v2101, 16
        %v2475 = vrot.slane %v2473, 5
        %v2476 = vsel %vm281, %v2471, %v2475
        %v2477 = vshrl.u32 %v2101, 16
        %v2479 = vrot.slane %v2477, 4
        %v2480 = vor.u32 %v2479, %v2475
        %v2481 = vrot.slane %v2480, 4
        %v2483 = vshll.u32 %v2102, 16
        %v2485 = vrot.slane %v2483, 5
        %v2486 = vsel %vm281, %v2481, %v2485
        %s2487 = scalar_lea.vmem %s219, 32
        %v2488 = vld [vmem:[%s2487] sm:$0xf]
        %v2489 = vld [vmem:[%s2487 + $0x4] sm:$0xf]
        %v2490 = vunpack.c.l.b16 %v2116
        %v2491 = vunpack.c.l.b16 %v2126
        %v2492 = vunpack.c.l.b16 %v2140
        %v2493 = vunpack.c.l.b16 %v2150
        %v2494 = vunpack.c.l.b16 %v2164
        %v2495 = vunpack.c.l.b16 %v2174
        %v2496 = vunpack.c.l.b16 %v2188
        %v2497 = vunpack.c.l.b16 %v2198
        %v2498 = vunpack.c.l.b16 %v2212
        %v2499 = vunpack.c.l.b16 %v2222
        %v2500 = vunpack.c.l.b16 %v2236
        %v2501 = vunpack.c.l.b16 %v2246
        %v2502 = vunpack.c.l.b16 %v2260
        %v2503 = vunpack.c.l.b16 %v2270
        %v2504 = vunpack.c.l.b16 %v2284
        %v2505 = vunpack.c.l.b16 %v2294
        %v2506 = vunpack.c.l.b16 %v2308
        %v2507 = vunpack.c.l.b16 %v2318
        %v2508 = vunpack.c.l.b16 %v2332
        %v2509 = vunpack.c.l.b16 %v2342
        %v2510 = vunpack.c.l.b16 %v2356
        %v2511 = vunpack.c.l.b16 %v2366
        %v2512 = vunpack.c.l.b16 %v2380
        %v2513 = vunpack.c.l.b16 %v2390
        %v2514 = vunpack.c.l.b16 %v2404
        %v2515 = vunpack.c.l.b16 %v2414
        %v2516 = vunpack.c.l.b16 %v2428
        %v2517 = vunpack.c.l.b16 %v2438
        %v2518 = vunpack.c.l.b16 %v2452
        %v2519 = vunpack.c.l.b16 %v2462
        %v2520 = vunpack.c.l.b16 %v2476
        %v2521 = vunpack.c.l.b16 %v2486
        %v2522 = vpack.c.b16 %v2491, %v2490
        %v2523 = vpack.c.b16 %v2493, %v2492
        %v2524 = vpack.c.b16 %v2495, %v2494
        %v2525 = vpack.c.b16 %v2497, %v2496
        %v2526 = vpack.c.b16 %v2499, %v2498
        %v2527 = vpack.c.b16 %v2501, %v2500
        %v2528 = vpack.c.b16 %v2503, %v2502
        %v2529 = vpack.c.b16 %v2505, %v2504
        %v2530 = vpack.c.b16 %v2507, %v2506
        %v2531 = vpack.c.b16 %v2509, %v2508
        %v2532 = vpack.c.b16 %v2511, %v2510
        %v2533 = vpack.c.b16 %v2513, %v2512
        %v2534 = vpack.c.b16 %v2515, %v2514
        %v2535 = vpack.c.b16 %v2517, %v2516
        %v2536 = vpack.c.b16 %v2519, %v2518
        %v2537 = vpack.c.b16 %v2521, %v2520
        %v2540 = vunpack.c.l.b16 %v2488
        %v2541 = vunpack.c.l.b16 %v2489
        %v2542 = vpack.c.b16 %v2541, %v2540
        %v2545 = vsel %vm723, %v2522, 0
        %v2548 = vsel %vm723, %v2523, 0
        %v2551 = vsel %vm723, %v2524, 0
        %v2554 = vsel %vm723, %v2525, 0
        %v2557 = vsel %vm723, %v2526, 0
        %v2560 = vsel %vm723, %v2527, 0
        %v2563 = vsel %vm723, %v2528, 0
        %v2566 = vsel %vm723, %v2529, 0
        %v2569 = vsel %vm723, %v2530, 0
        %v2572 = vsel %vm723, %v2531, 0
        %v2575 = vsel %vm723, %v2532, 0
        %v2578 = vsel %vm723, %v2533, 0
        %v2581 = vsel %vm723, %v2534, 0
        %v2584 = vsel %vm723, %v2535, 0
        %v2587 = vsel %vm723, %v2536, 0
        %v2590 = vsel %vm723, %v2537, 0
        %2592 = vmatprep.subr.bf16.mxu0 0
        %2593 = vmatpush1.bf16.msra.mxu0 %v2542
        %2594 = vmatprep.subr.bf16.mxu0 0
        %2595 = vmatpush1.bf16.msra.mxu0 0
        %2596 = vmatprep.subr.bf16.mxu0 0
        %2597 = vmatpush1.bf16.msra.mxu0 0
        %2598 = vmatprep.subr.bf16.mxu0 0
        %2599 = vmatpush1.bf16.msra.mxu0 0
        %2600 = vmatprep.subr.bf16.mxu0 0
        %2601 = vmatpush1.bf16.msra.mxu0 0
        %2602 = vmatprep.subr.bf16.mxu0 0
        %2603 = vmatpush1.bf16.msra.mxu0 0
        %2604 = vmatprep.subr.bf16.mxu0 0
        %2605 = vmatpush1.bf16.msra.mxu0 0
        %2606 = vmatprep.subr.bf16.mxu0 0
        %2607 = vmatpush1.bf16.msra.mxu0 0
        %2608 = vmatprep.subr.bf16.mxu0 0
        %2609 = vmatpush1.bf16.msra.mxu0 0
        %2610 = vmatprep.subr.bf16.mxu0 0
        %2611 = vmatpush1.bf16.msra.mxu0 0
        %2612 = vmatprep.subr.bf16.mxu0 0
        %2613 = vmatpush1.bf16.msra.mxu0 0
        %2614 = vmatprep.subr.bf16.mxu0 0
        %2615 = vmatpush1.bf16.msra.mxu0 0
        %2616 = vmatprep.subr.bf16.mxu0 0
        %2617 = vmatpush1.bf16.msra.mxu0 0
        %2618 = vmatprep.subr.bf16.mxu0 0
        %2619 = vmatpush1.bf16.msra.mxu0 0
        %2620 = vmatprep.subr.bf16.mxu0 0
        %2621 = vmatpush1.bf16.msra.mxu0 0
        %2622 = vmatprep.subr.bf16.mxu0 0
        %2623 = vmatpush1.bf16.msra.mxu0 0
        %2624 = vmatprep.mubr.bf16.mxu0 0
        %2625 = vmatmul.mubr.bf16.gmra.mrb[0].mxu0 %v2545
        %v2626 = vpop.f32.mrb[0].mxu0
        %v2627 = vadd.f32 0.0, %v2626
        %v2628 = vpop.f32.mrb[0].mxu0
        %v2629 = vpop.f32.mrb[0].mxu0
        %v2630 = vadd.f32 0.0, %v2629
        %v2631 = vpop.f32.mrb[0].mxu0
        %2632 = vmatprep.mubr.bf16.mxu0 0
        %2633 = vmatmul.mubr.bf16.gmra.mrb[0].mxu0 %v2548
        %v2634 = vpop.f32.mrb[0].mxu0
        %v2635 = vadd.f32 0.0, %v2634
        %v2636 = vpop.f32.mrb[0].mxu0
        %v2637 = vpop.f32.mrb[0].mxu0
        %v2638 = vadd.f32 0.0, %v2637
        %v2639 = vpop.f32.mrb[0].mxu0
        %2640 = vmatprep.mubr.bf16.mxu0 0
        %2641 = vmatmul.mubr.bf16.gmra.mrb[0].mxu0 %v2551
        %v2642 = vpop.f32.mrb[0].mxu0
        %v2643 = vadd.f32 0.0, %v2642
        %v2644 = vpop.f32.mrb[0].mxu0
        %v2645 = vpop.f32.mrb[0].mxu0
        %v2646 = vadd.f32 0.0, %v2645
        %v2647 = vpop.f32.mrb[0].mxu0
        %2648 = vmatprep.mubr.bf16.mxu0 0
        %2649 = vmatmul.mubr.bf16.gmra.mrb[0].mxu0 %v2554
        %v2650 = vpop.f32.mrb[0].mxu0
        %v2651 = vadd.f32 0.0, %v2650
        %v2652 = vpop.f32.mrb[0].mxu0
        %v2653 = vpop.f32.mrb[0].mxu0
        %v2654 = vadd.f32 0.0, %v2653
        %v2655 = vpop.f32.mrb[0].mxu0
        %2656 = vmatprep.mubr.bf16.mxu0 0
        %2657 = vmatmul.mubr.bf16.gmra.mrb[0].mxu0 %v2557
        %v2658 = vpop.f32.mrb[0].mxu0
        %v2659 = vadd.f32 0.0, %v2658
        %v2660 = vpop.f32.mrb[0].mxu0
        %v2661 = vpop.f32.mrb[0].mxu0
        %v2662 = vadd.f32 0.0, %v2661
        %v2663 = vpop.f32.mrb[0].mxu0
        %2664 = vmatprep.mubr.bf16.mxu0 0
        %2665 = vmatmul.mubr.bf16.gmra.mrb[0].mxu0 %v2560
        %v2666 = vpop.f32.mrb[0].mxu0
        %v2667 = vadd.f32 0.0, %v2666
        %v2668 = vpop.f32.mrb[0].mxu0
        %v2669 = vpop.f32.mrb[0].mxu0
        %v2670 = vadd.f32 0.0, %v2669
        %v2671 = vpop.f32.mrb[0].mxu0
        %2672 = vmatprep.mubr.bf16.mxu0 0
        %2673 = vmatmul.mubr.bf16.gmra.mrb[0].mxu0 %v2563
        %v2674 = vpop.f32.mrb[0].mxu0
        %v2675 = vadd.f32 0.0, %v2674
        %v2676 = vpop.f32.mrb[0].mxu0
        %v2677 = vpop.f32.mrb[0].mxu0
        %v2678 = vadd.f32 0.0, %v2677
        %v2679 = vpop.f32.mrb[0].mxu0
        %2680 = vmatprep.mubr.bf16.mxu0 0
        %2681 = vmatmul.mubr.bf16.gmra.mrb[0].mxu0 %v2566
        %v2682 = vpop.f32.mrb[0].mxu0
        %v2683 = vadd.f32 0.0, %v2682
        %v2684 = vpop.f32.mrb[0].mxu0
        %v2685 = vpop.f32.mrb[0].mxu0
        %v2686 = vadd.f32 0.0, %v2685
        %v2687 = vpop.f32.mrb[0].mxu0
        %2688 = vmatprep.mubr.bf16.mxu0 0
        %2689 = vmatmul.mubr.bf16.gmra.mrb[0].mxu0 %v2569
        %v2690 = vpop.f32.mrb[0].mxu0
        %v2691 = vadd.f32 0.0, %v2690
        %v2692 = vpop.f32.mrb[0].mxu0
        %v2693 = vpop.f32.mrb[0].mxu0
        %v2694 = vadd.f32 0.0, %v2693
        %v2695 = vpop.f32.mrb[0].mxu0
        %2696 = vmatprep.mubr.bf16.mxu0 0
        %2697 = vmatmul.mubr.bf16.gmra.mrb[0].mxu0 %v2572
        %v2698 = vpop.f32.mrb[0].mxu0
        %v2699 = vadd.f32 0.0, %v2698
        %v2700 = vpop.f32.mrb[0].mxu0
        %v2701 = vpop.f32.mrb[0].mxu0
        %v2702 = vadd.f32 0.0, %v2701
        %v2703 = vpop.f32.mrb[0].mxu0
        %2704 = vmatprep.mubr.bf16.mxu0 0
        %2705 = vmatmul.mubr.bf16.gmra.mrb[0].mxu0 %v2575
        %v2706 = vpop.f32.mrb[0].mxu0
        %v2707 = vadd.f32 0.0, %v2706
        %v2708 = vpop.f32.mrb[0].mxu0
        %v2709 = vpop.f32.mrb[0].mxu0
        %v2710 = vadd.f32 0.0, %v2709
        %v2711 = vpop.f32.mrb[0].mxu0
        %2712 = vmatprep.mubr.bf16.mxu0 0
        %2713 = vmatmul.mubr.bf16.gmra.mrb[0].mxu0 %v2578
        %v2714 = vpop.f32.mrb[0].mxu0
        %v2715 = vadd.f32 0.0, %v2714
        %v2716 = vpop.f32.mrb[0].mxu0
        %v2717 = vpop.f32.mrb[0].mxu0
        %v2718 = vadd.f32 0.0, %v2717
        %v2719 = vpop.f32.mrb[0].mxu0
        %2720 = vmatprep.mubr.bf16.mxu0 0
        %2721 = vmatmul.mubr.bf16.gmra.mrb[0].mxu0 %v2581
        %v2722 = vpop.f32.mrb[0].mxu0
        %v2723 = vadd.f32 0.0, %v2722
        %v2724 = vpop.f32.mrb[0].mxu0
        %v2725 = vpop.f32.mrb[0].mxu0
        %v2726 = vadd.f32 0.0, %v2725
        %v2727 = vpop.f32.mrb[0].mxu0
        %2728 = vmatprep.mubr.bf16.mxu0 0
        %2729 = vmatmul.mubr.bf16.gmra.mrb[0].mxu0 %v2584
        %v2730 = vpop.f32.mrb[0].mxu0
        %v2731 = vadd.f32 0.0, %v2730
        %v2732 = vpop.f32.mrb[0].mxu0
        %v2733 = vpop.f32.mrb[0].mxu0
        %v2734 = vadd.f32 0.0, %v2733
        %v2735 = vpop.f32.mrb[0].mxu0
        %2736 = vmatprep.mubr.bf16.mxu0 0
        %2737 = vmatmul.mubr.bf16.gmra.mrb[0].mxu0 %v2587
        %v2738 = vpop.f32.mrb[0].mxu0
        %v2739 = vadd.f32 0.0, %v2738
        %v2740 = vpop.f32.mrb[0].mxu0
        %v2741 = vpop.f32.mrb[0].mxu0
        %v2742 = vadd.f32 0.0, %v2741
        %v2743 = vpop.f32.mrb[0].mxu0
        %2744 = vmatprep.mubr.bf16.mxu0 0
        %2745 = vmatmul.mubr.bf16.gmra.mrb[0].mxu0 %v2590
        %v2746 = vpop.f32.mrb[0].mxu0
        %v2747 = vadd.f32 0.0, %v2746
        %v2748 = vpop.f32.mrb[0].mxu0
        %v2749 = vpop.f32.mrb[0].mxu0
        %v2750 = vadd.f32 0.0, %v2749
        %v2751 = vpop.f32.mrb[0].mxu0
        %2752 = vdwg.mxu0
        %v2753 = vadd.f32 %v2023, %v2627
        %v2754 = vadd.f32 %v2024, %v2630
        %v2755 = vadd.f32 %v2025, %v2635
        %v2756 = vadd.f32 %v2026, %v2638
        %v2757 = vadd.f32 %v2027, %v2643
        %v2758 = vadd.f32 %v2028, %v2646
        %v2759 = vadd.f32 %v2029, %v2651
        %v2760 = vadd.f32 %v2030, %v2654
        %v2761 = vadd.f32 %v2031, %v2659
        %v2762 = vadd.f32 %v2032, %v2662
        %v2763 = vadd.f32 %v2033, %v2667
        %v2764 = vadd.f32 %v2034, %v2670
        %v2765 = vadd.f32 %v2035, %v2675
        %v2766 = vadd.f32 %v2036, %v2678
        %v2767 = vadd.f32 %v2037, %v2683
        %v2768 = vadd.f32 %v2038, %v2686
        %v2769 = vadd.f32 %v2039, %v2691
        %v2770 = vadd.f32 %v2040, %v2694
        %v2771 = vadd.f32 %v2041, %v2699
        %v2772 = vadd.f32 %v2042, %v2702
        %v2773 = vadd.f32 %v2043, %v2707
        %v2774 = vadd.f32 %v2044, %v2710
        %v2775 = vadd.f32 %v2045, %v2715
        %v2776 = vadd.f32 %v2046, %v2718
        %v2777 = vadd.f32 %v2047, %v2723
        %v2778 = vadd.f32 %v2048, %v2726
        %v2779 = vadd.f32 %v2049, %v2731
        %v2780 = vadd.f32 %v2050, %v2734
        %v2781 = vadd.f32 %v2051, %v2739
        %v2782 = vadd.f32 %v2052, %v2742
        %v2783 = vadd.f32 %v2053, %v2747
        %v2784 = vadd.f32 %v2054, %v2750
        %v2785 = vld [vmem:[%s1692] sm:$0xe]
        %v2786 = vld [vmem:[%s1692 + $0xc] sm:$0xe]
        %v2787 = vld [vmem:[%s1692 + $0x18] sm:$0xe]
        %v2788 = vld [vmem:[%s1692 + $0x24] sm:$0xe]
        %v2789 = vld [vmem:[%s1692 + $0x30] sm:$0xe]
        %v2790 = vld [vmem:[%s1692 + $0x3c] sm:$0xe]
        %v2791 = vld [vmem:[%s1692 + $0x48] sm:$0xe]
        %v2792 = vld [vmem:[%s1692 + $0x54] sm:$0xe]
        %v2793 = vld [vmem:[%s1692 + $0x60] sm:$0xe]
        %v2794 = vld [vmem:[%s1692 + $0x6c] sm:$0xe]
        %v2795 = vld [vmem:[%s1692 + $0x78] sm:$0xe]
        %v2796 = vld [vmem:[%s1692 + $0x84] sm:$0xe]
        %v2797 = vld [vmem:[%s1692 + $0x90] sm:$0xe]
        %v2798 = vld [vmem:[%s1692 + $0x9c] sm:$0xe]
        %v2799 = vld [vmem:[%s1692 + $0xa8] sm:$0xe]
        %v2800 = vld [vmem:[%s1692 + $0xb4] sm:$0xe]
        %v2849 = vrot.slane %v2785, 5
        %v2850 = vrot.slane %v2849, 4
        %v2851 = vrot.slane %v2056, 5
        %v2852 = vsel %vm1278, %v2850, %v2851
        %v2853 = vrot.slane %v2851, 4
        %v2854 = vrot.slane %v2057, 5
        %v2855 = vsel %vm1278, %v2853, %v2854
        %v2856 = vrot.slane %v2786, 5
        %v2857 = vrot.slane %v2856, 4
        %v2858 = vrot.slane %v2059, 5
        %v2859 = vsel %vm1278, %v2857, %v2858
        %v2860 = vrot.slane %v2858, 4
        %v2861 = vrot.slane %v2060, 5
        %v2862 = vsel %vm1278, %v2860, %v2861
        %v2863 = vrot.slane %v2787, 5
        %v2864 = vrot.slane %v2863, 4
        %v2865 = vrot.slane %v2062, 5
        %v2866 = vsel %vm1278, %v2864, %v2865
        %v2867 = vrot.slane %v2865, 4
        %v2868 = vrot.slane %v2063, 5
        %v2869 = vsel %vm1278, %v2867, %v2868
        %v2870 = vrot.slane %v2788, 5
        %v2871 = vrot.slane %v2870, 4
        %v2872 = vrot.slane %v2065, 5
        %v2873 = vsel %vm1278, %v2871, %v2872
        %v2874 = vrot.slane %v2872, 4
        %v2875 = vrot.slane %v2066, 5
        %v2876 = vsel %vm1278, %v2874, %v2875
        %v2877 = vrot.slane %v2789, 5
        %v2878 = vrot.slane %v2877, 4
        %v2879 = vrot.slane %v2068, 5
        %v2880 = vsel %vm1278, %v2878, %v2879
        %v2881 = vrot.slane %v2879, 4
        %v2882 = vrot.slane %v2069, 5
        %v2883 = vsel %vm1278, %v2881, %v2882
        %v2884 = vrot.slane %v2790, 5
        %v2885 = vrot.slane %v2884, 4
        %v2886 = vrot.slane %v2071, 5
        %v2887 = vsel %vm1278, %v2885, %v2886
        %v2888 = vrot.slane %v2886, 4
        %v2889 = vrot.slane %v2072, 5
        %v2890 = vsel %vm1278, %v2888, %v2889
        %v2891 = vrot.slane %v2791, 5
        %v2892 = vrot.slane %v2891, 4
        %v2893 = vrot.slane %v2074, 5
        %v2894 = vsel %vm1278, %v2892, %v2893
        %v2895 = vrot.slane %v2893, 4
        %v2896 = vrot.slane %v2075, 5
        %v2897 = vsel %vm1278, %v2895, %v2896
        %v2898 = vrot.slane %v2792, 5
        %v2899 = vrot.slane %v2898, 4
        %v2900 = vrot.slane %v2077, 5
        %v2901 = vsel %vm1278, %v2899, %v2900
        %v2902 = vrot.slane %v2900, 4
        %v2903 = vrot.slane %v2078, 5
        %v2904 = vsel %vm1278, %v2902, %v2903
        %v2905 = vrot.slane %v2793, 5
        %v2906 = vrot.slane %v2905, 4
        %v2907 = vrot.slane %v2080, 5
        %v2908 = vsel %vm1278, %v2906, %v2907
        %v2909 = vrot.slane %v2907, 4
        %v2910 = vrot.slane %v2081, 5
        %v2911 = vsel %vm1278, %v2909, %v2910
        %v2912 = vrot.slane %v2794, 5
        %v2913 = vrot.slane %v2912, 4
        %v2914 = vrot.slane %v2083, 5
        %v2915 = vsel %vm1278, %v2913, %v2914
        %v2916 = vrot.slane %v2914, 4
        %v2917 = vrot.slane %v2084, 5
        %v2918 = vsel %vm1278, %v2916, %v2917
        %v2919 = vrot.slane %v2795, 5
        %v2920 = vrot.slane %v2919, 4
        %v2921 = vrot.slane %v2086, 5
        %v2922 = vsel %vm1278, %v2920, %v2921
        %v2923 = vrot.slane %v2921, 4
        %v2924 = vrot.slane %v2087, 5
        %v2925 = vsel %vm1278, %v2923, %v2924
        %v2926 = vrot.slane %v2796, 5
        %v2927 = vrot.slane %v2926, 4
        %v2928 = vrot.slane %v2089, 5
        %v2929 = vsel %vm1278, %v2927, %v2928
        %v2930 = vrot.slane %v2928, 4
        %v2931 = vrot.slane %v2090, 5
        %v2932 = vsel %vm1278, %v2930, %v2931
        %v2933 = vrot.slane %v2797, 5
        %v2934 = vrot.slane %v2933, 4
        %v2935 = vrot.slane %v2092, 5
        %v2936 = vsel %vm1278, %v2934, %v2935
        %v2937 = vrot.slane %v2935, 4
        %v2938 = vrot.slane %v2093, 5
        %v2939 = vsel %vm1278, %v2937, %v2938
        %v2940 = vrot.slane %v2798, 5
        %v2941 = vrot.slane %v2940, 4
        %v2942 = vrot.slane %v2095, 5
        %v2943 = vsel %vm1278, %v2941, %v2942
        %v2944 = vrot.slane %v2942, 4
        %v2945 = vrot.slane %v2096, 5
        %v2946 = vsel %vm1278, %v2944, %v2945
        %v2947 = vrot.slane %v2799, 5
        %v2948 = vrot.slane %v2947, 4
        %v2949 = vrot.slane %v2098, 5
        %v2950 = vsel %vm1278, %v2948, %v2949
        %v2951 = vrot.slane %v2949, 4
        %v2952 = vrot.slane %v2099, 5
        %v2953 = vsel %vm1278, %v2951, %v2952
        %v2954 = vrot.slane %v2800, 5
        %v2955 = vrot.slane %v2954, 4
        %v2956 = vrot.slane %v2101, 5
        %v2957 = vsel %vm1278, %v2955, %v2956
        %v2958 = vrot.slane %v2956, 4
        %v2959 = vrot.slane %v2102, 5
        %v2960 = vsel %vm1278, %v2958, %v2959
        %s2961 = scalar_lea.vmem %s219, 40
        %v2962 = vld [vmem:[%s2961] sm:$0xf]
        %v2963 = vld [vmem:[%s2961 + $0x4] sm:$0xf]
        %v2964 = vunpack.c.l.b16 %v2852
        %v2965 = vunpack.c.l.b16 %v2855
        %v2966 = vunpack.c.l.b16 %v2859
        %v2967 = vunpack.c.l.b16 %v2862
        %v2968 = vunpack.c.l.b16 %v2866
        %v2969 = vunpack.c.l.b16 %v2869
        %v2970 = vunpack.c.l.b16 %v2873
        %v2971 = vunpack.c.l.b16 %v2876
        %v2972 = vunpack.c.l.b16 %v2880
        %v2973 = vunpack.c.l.b16 %v2883
        %v2974 = vunpack.c.l.b16 %v2887
        %v2975 = vunpack.c.l.b16 %v2890
        %v2976 = vunpack.c.l.b16 %v2894
        %v2977 = vunpack.c.l.b16 %v2897
        %v2978 = vunpack.c.l.b16 %v2901
        %v2979 = vunpack.c.l.b16 %v2904
        %v2980 = vunpack.c.l.b16 %v2908
        %v2981 = vunpack.c.l.b16 %v2911
        %v2982 = vunpack.c.l.b16 %v2915
        %v2983 = vunpack.c.l.b16 %v2918
        %v2984 = vunpack.c.l.b16 %v2922
        %v2985 = vunpack.c.l.b16 %v2925
        %v2986 = vunpack.c.l.b16 %v2929
        %v2987 = vunpack.c.l.b16 %v2932
        %v2988 = vunpack.c.l.b16 %v2936
        %v2989 = vunpack.c.l.b16 %v2939
        %v2990 = vunpack.c.l.b16 %v2943
        %v2991 = vunpack.c.l.b16 %v2946
        %v2992 = vunpack.c.l.b16 %v2950
        %v2993 = vunpack.c.l.b16 %v2953
        %v2994 = vunpack.c.l.b16 %v2957
        %v2995 = vunpack.c.l.b16 %v2960
        %v2996 = vpack.c.b16 %v2965, %v2964
        %v2997 = vpack.c.b16 %v2967, %v2966
        %v2998 = vpack.c.b16 %v2969, %v2968
        %v2999 = vpack.c.b16 %v2971, %v2970
        %v3000 = vpack.c.b16 %v2973, %v2972
        %v3001 = vpack.c.b16 %v2975, %v2974
        %v3002 = vpack.c.b16 %v2977, %v2976
        %v3003 = vpack.c.b16 %v2979, %v2978
        %v3004 = vpack.c.b16 %v2981, %v2980
        %v3005 = vpack.c.b16 %v2983, %v2982
        %v3006 = vpack.c.b16 %v2985, %v2984
        %v3007 = vpack.c.b16 %v2987, %v2986
        %v3008 = vpack.c.b16 %v2989, %v2988
        %v3009 = vpack.c.b16 %v2991, %v2990
        %v3010 = vpack.c.b16 %v2993, %v2992
        %v3011 = vpack.c.b16 %v2995, %v2994
        %v3014 = vunpack.c.l.b16 %v2962
        %v3015 = vunpack.c.l.b16 %v2963
        %v3016 = vpack.c.b16 %v3015, %v3014
        %v3019 = vsel %vm723, %v2996, 0
        %v3022 = vsel %vm723, %v2997, 0
        %v3025 = vsel %vm723, %v2998, 0
        %v3028 = vsel %vm723, %v2999, 0
        %v3031 = vsel %vm723, %v3000, 0
        %v3034 = vsel %vm723, %v3001, 0
        %v3037 = vsel %vm723, %v3002, 0
        %v3040 = vsel %vm723, %v3003, 0
        %v3043 = vsel %vm723, %v3004, 0
        %v3046 = vsel %vm723, %v3005, 0
        %v3049 = vsel %vm723, %v3006, 0
        %v3052 = vsel %vm723, %v3007, 0
        %v3055 = vsel %vm723, %v3008, 0
        %v3058 = vsel %vm723, %v3009, 0
        %v3061 = vsel %vm723, %v3010, 0
        %v3064 = vsel %vm723, %v3011, 0
        %3066 = vmatprep.subr.bf16.mxu0 0
        %3067 = vmatpush1.bf16.msra.mxu0 %v3016
        %3068 = vmatprep.subr.bf16.mxu0 0
        %3069 = vmatpush1.bf16.msra.mxu0 0
        %3070 = vmatprep.subr.bf16.mxu0 0
        %3071 = vmatpush1.bf16.msra.mxu0 0
        %3072 = vmatprep.subr.bf16.mxu0 0
        %3073 = vmatpush1.bf16.msra.mxu0 0
        %3074 = vmatprep.subr.bf16.mxu0 0
        %3075 = vmatpush1.bf16.msra.mxu0 0
        %3076 = vmatprep.subr.bf16.mxu0 0
        %3077 = vmatpush1.bf16.msra.mxu0 0
        %3078 = vmatprep.subr.bf16.mxu0 0
        %3079 = vmatpush1.bf16.msra.mxu0 0
        %3080 = vmatprep.subr.bf16.mxu0 0
        %3081 = vmatpush1.bf16.msra.mxu0 0
        %3082 = vmatprep.subr.bf16.mxu0 0
        %3083 = vmatpush1.bf16.msra.mxu0 0
        %3084 = vmatprep.subr.bf16.mxu0 0
        %3085 = vmatpush1.bf16.msra.mxu0 0
        %3086 = vmatprep.subr.bf16.mxu0 0
        %3087 = vmatpush1.bf16.msra.mxu0 0
        %3088 = vmatprep.subr.bf16.mxu0 0
        %3089 = vmatpush1.bf16.msra.mxu0 0
        %3090 = vmatprep.subr.bf16.mxu0 0
        %3091 = vmatpush1.bf16.msra.mxu0 0
        %3092 = vmatprep.subr.bf16.mxu0 0
        %3093 = vmatpush1.bf16.msra.mxu0 0
        %3094 = vmatprep.subr.bf16.mxu0 0
        %3095 = vmatpush1.bf16.msra.mxu0 0
        %3096 = vmatprep.subr.bf16.mxu0 0
        %3097 = vmatpush1.bf16.msra.mxu0 0
        %3098 = vmatprep.mubr.bf16.mxu0 0
        %3099 = vmatmul.mubr.bf16.gmra.mrb[0].mxu0 %v3019
        %v3100 = vpop.f32.mrb[0].mxu0
        %v3101 = vadd.f32 0.0, %v3100
        %v3102 = vpop.f32.mrb[0].mxu0
        %v3103 = vpop.f32.mrb[0].mxu0
        %v3104 = vadd.f32 0.0, %v3103
        %v3105 = vpop.f32.mrb[0].mxu0
        %3106 = vmatprep.mubr.bf16.mxu0 0
        %3107 = vmatmul.mubr.bf16.gmra.mrb[0].mxu0 %v3022
        %v3108 = vpop.f32.mrb[0].mxu0
        %v3109 = vadd.f32 0.0, %v3108
        %v3110 = vpop.f32.mrb[0].mxu0
        %v3111 = vpop.f32.mrb[0].mxu0
        %v3112 = vadd.f32 0.0, %v3111
        %v3113 = vpop.f32.mrb[0].mxu0
        %3114 = vmatprep.mubr.bf16.mxu0 0
        %3115 = vmatmul.mubr.bf16.gmra.mrb[0].mxu0 %v3025
        %v3116 = vpop.f32.mrb[0].mxu0
        %v3117 = vadd.f32 0.0, %v3116
        %v3118 = vpop.f32.mrb[0].mxu0
        %v3119 = vpop.f32.mrb[0].mxu0
        %v3120 = vadd.f32 0.0, %v3119
        %v3121 = vpop.f32.mrb[0].mxu0
        %3122 = vmatprep.mubr.bf16.mxu0 0
        %3123 = vmatmul.mubr.bf16.gmra.mrb[0].mxu0 %v3028
        %v3124 = vpop.f32.mrb[0].mxu0
        %v3125 = vadd.f32 0.0, %v3124
        %v3126 = vpop.f32.mrb[0].mxu0
        %v3127 = vpop.f32.mrb[0].mxu0
        %v3128 = vadd.f32 0.0, %v3127
        %v3129 = vpop.f32.mrb[0].mxu0
        %3130 = vmatprep.mubr.bf16.mxu0 0
        %3131 = vmatmul.mubr.bf16.gmra.mrb[0].mxu0 %v3031
        %v3132 = vpop.f32.mrb[0].mxu0
        %v3133 = vadd.f32 0.0, %v3132
        %v3134 = vpop.f32.mrb[0].mxu0
        %v3135 = vpop.f32.mrb[0].mxu0
        %v3136 = vadd.f32 0.0, %v3135
        %v3137 = vpop.f32.mrb[0].mxu0
        %3138 = vmatprep.mubr.bf16.mxu0 0
        %3139 = vmatmul.mubr.bf16.gmra.mrb[0].mxu0 %v3034
        %v3140 = vpop.f32.mrb[0].mxu0
        %v3141 = vadd.f32 0.0, %v3140
        %v3142 = vpop.f32.mrb[0].mxu0
        %v3143 = vpop.f32.mrb[0].mxu0
        %v3144 = vadd.f32 0.0, %v3143
        %v3145 = vpop.f32.mrb[0].mxu0
        %3146 = vmatprep.mubr.bf16.mxu0 0
        %3147 = vmatmul.mubr.bf16.gmra.mrb[0].mxu0 %v3037
        %v3148 = vpop.f32.mrb[0].mxu0
        %v3149 = vadd.f32 0.0, %v3148
        %v3150 = vpop.f32.mrb[0].mxu0
        %v3151 = vpop.f32.mrb[0].mxu0
        %v3152 = vadd.f32 0.0, %v3151
        %v3153 = vpop.f32.mrb[0].mxu0
        %3154 = vmatprep.mubr.bf16.mxu0 0
        %3155 = vmatmul.mubr.bf16.gmra.mrb[0].mxu0 %v3040
        %v3156 = vpop.f32.mrb[0].mxu0
        %v3157 = vadd.f32 0.0, %v3156
        %v3158 = vpop.f32.mrb[0].mxu0
        %v3159 = vpop.f32.mrb[0].mxu0
        %v3160 = vadd.f32 0.0, %v3159
        %v3161 = vpop.f32.mrb[0].mxu0
        %3162 = vmatprep.mubr.bf16.mxu0 0
        %3163 = vmatmul.mubr.bf16.gmra.mrb[0].mxu0 %v3043
        %v3164 = vpop.f32.mrb[0].mxu0
        %v3165 = vadd.f32 0.0, %v3164
        %v3166 = vpop.f32.mrb[0].mxu0
        %v3167 = vpop.f32.mrb[0].mxu0
        %v3168 = vadd.f32 0.0, %v3167
        %v3169 = vpop.f32.mrb[0].mxu0
        %3170 = vmatprep.mubr.bf16.mxu0 0
        %3171 = vmatmul.mubr.bf16.gmra.mrb[0].mxu0 %v3046
        %v3172 = vpop.f32.mrb[0].mxu0
        %v3173 = vadd.f32 0.0, %v3172
        %v3174 = vpop.f32.mrb[0].mxu0
        %v3175 = vpop.f32.mrb[0].mxu0
        %v3176 = vadd.f32 0.0, %v3175
        %v3177 = vpop.f32.mrb[0].mxu0
        %3178 = vmatprep.mubr.bf16.mxu0 0
        %3179 = vmatmul.mubr.bf16.gmra.mrb[0].mxu0 %v3049
        %v3180 = vpop.f32.mrb[0].mxu0
        %v3181 = vadd.f32 0.0, %v3180
        %v3182 = vpop.f32.mrb[0].mxu0
        %v3183 = vpop.f32.mrb[0].mxu0
        %v3184 = vadd.f32 0.0, %v3183
        %v3185 = vpop.f32.mrb[0].mxu0
        %3186 = vmatprep.mubr.bf16.mxu0 0
        %3187 = vmatmul.mubr.bf16.gmra.mrb[0].mxu0 %v3052
        %v3188 = vpop.f32.mrb[0].mxu0
        %v3189 = vadd.f32 0.0, %v3188
        %v3190 = vpop.f32.mrb[0].mxu0
        %v3191 = vpop.f32.mrb[0].mxu0
        %v3192 = vadd.f32 0.0, %v3191
        %v3193 = vpop.f32.mrb[0].mxu0
        %3194 = vmatprep.mubr.bf16.mxu0 0
        %3195 = vmatmul.mubr.bf16.gmra.mrb[0].mxu0 %v3055
        %v3196 = vpop.f32.mrb[0].mxu0
        %v3197 = vadd.f32 0.0, %v3196
        %v3198 = vpop.f32.mrb[0].mxu0
        %v3199 = vpop.f32.mrb[0].mxu0
        %v3200 = vadd.f32 0.0, %v3199
        %v3201 = vpop.f32.mrb[0].mxu0
        %3202 = vmatprep.mubr.bf16.mxu0 0
        %3203 = vmatmul.mubr.bf16.gmra.mrb[0].mxu0 %v3058
        %v3204 = vpop.f32.mrb[0].mxu0
        %v3205 = vadd.f32 0.0, %v3204
        %v3206 = vpop.f32.mrb[0].mxu0
        %v3207 = vpop.f32.mrb[0].mxu0
        %v3208 = vadd.f32 0.0, %v3207
        %v3209 = vpop.f32.mrb[0].mxu0
        %3210 = vmatprep.mubr.bf16.mxu0 0
        %3211 = vmatmul.mubr.bf16.gmra.mrb[0].mxu0 %v3061
        %v3212 = vpop.f32.mrb[0].mxu0
        %v3213 = vadd.f32 0.0, %v3212
        %v3214 = vpop.f32.mrb[0].mxu0
        %v3215 = vpop.f32.mrb[0].mxu0
        %v3216 = vadd.f32 0.0, %v3215
        %v3217 = vpop.f32.mrb[0].mxu0
        %3218 = vmatprep.mubr.bf16.mxu0 0
        %3219 = vmatmul.mubr.bf16.gmra.mrb[0].mxu0 %v3064
        %v3220 = vpop.f32.mrb[0].mxu0
        %v3221 = vadd.f32 0.0, %v3220
        %v3222 = vpop.f32.mrb[0].mxu0
        %v3223 = vpop.f32.mrb[0].mxu0
        %v3224 = vadd.f32 0.0, %v3223
        %v3225 = vpop.f32.mrb[0].mxu0
        %3226 = vdwg.mxu0
        %v3227 = vadd.f32 %v2753, %v3101
        %v3228 = vadd.f32 %v2754, %v3104
        %v3229 = vadd.f32 %v2755, %v3109
        %v3230 = vadd.f32 %v2756, %v3112
        %v3231 = vadd.f32 %v2757, %v3117
        %v3232 = vadd.f32 %v2758, %v3120
        %v3233 = vadd.f32 %v2759, %v3125
        %v3234 = vadd.f32 %v2760, %v3128
        %v3235 = vadd.f32 %v2761, %v3133
        %v3236 = vadd.f32 %v2762, %v3136
        %v3237 = vadd.f32 %v2763, %v3141
        %v3238 = vadd.f32 %v2764, %v3144
        %v3239 = vadd.f32 %v2765, %v3149
        %v3240 = vadd.f32 %v2766, %v3152
        %v3241 = vadd.f32 %v2767, %v3157
        %v3242 = vadd.f32 %v2768, %v3160
        %v3243 = vadd.f32 %v2769, %v3165
        %v3244 = vadd.f32 %v2770, %v3168
        %v3245 = vadd.f32 %v2771, %v3173
        %v3246 = vadd.f32 %v2772, %v3176
        %v3247 = vadd.f32 %v2773, %v3181
        %v3248 = vadd.f32 %v2774, %v3184
        %v3249 = vadd.f32 %v2775, %v3189
        %v3250 = vadd.f32 %v2776, %v3192
        %v3251 = vadd.f32 %v2777, %v3197
        %v3252 = vadd.f32 %v2778, %v3200
        %v3253 = vadd.f32 %v2779, %v3205
        %v3254 = vadd.f32 %v2780, %v3208
        %v3255 = vadd.f32 %v2781, %v3213
        %v3256 = vadd.f32 %v2782, %v3216
        %v3257 = vadd.f32 %v2783, %v3221
        %v3258 = vadd.f32 %v2784, %v3224
        %s3259 = sadd.s32 %s225, 2
        %s3260 = smul.u32 %s3259, 3
        %s3261 = smul.addr %s3260, 4
        %s3262 = scalar_lea.vmem %s215, %s3261
        %v3263 = vld [vmem:[%s3262] sm:$0xf]
        %v3264 = vld [vmem:[%s3262 + $0x4] sm:$0xf]
        %v3265 = vld [vmem:[%s3262 + $0xc] sm:$0xf]
        %v3266 = vld [vmem:[%s3262 + $0x10] sm:$0xf]
        %v3267 = vld [vmem:[%s3262 + $0x18] sm:$0xf]
        %v3268 = vld [vmem:[%s3262 + $0x1c] sm:$0xf]
        %v3269 = vld [vmem:[%s3262 + $0x24] sm:$0xf]
        %v3270 = vld [vmem:[%s3262 + $0x28] sm:$0xf]
        %v3271 = vld [vmem:[%s3262 + $0x30] sm:$0xf]
        %v3272 = vld [vmem:[%s3262 + $0x34] sm:$0xf]
        %v3273 = vld [vmem:[%s3262 + $0x3c] sm:$0xf]
        %v3274 = vld [vmem:[%s3262 + $0x40] sm:$0xf]
        %v3275 = vld [vmem:[%s3262 + $0x48] sm:$0xf]
        %v3276 = vld [vmem:[%s3262 + $0x4c] sm:$0xf]
        %v3277 = vld [vmem:[%s3262 + $0x54] sm:$0xf]
        %v3278 = vld [vmem:[%s3262 + $0x58] sm:$0xf]
        %v3279 = vld [vmem:[%s3262 + $0x60] sm:$0xf]
        %v3280 = vld [vmem:[%s3262 + $0x64] sm:$0xf]
        %v3281 = vld [vmem:[%s3262 + $0x6c] sm:$0xf]
        %v3282 = vld [vmem:[%s3262 + $0x70] sm:$0xf]
        %v3283 = vld [vmem:[%s3262 + $0x78] sm:$0xf]
        %v3284 = vld [vmem:[%s3262 + $0x7c] sm:$0xf]
        %v3285 = vld [vmem:[%s3262 + $0x84] sm:$0xf]
        %v3286 = vld [vmem:[%s3262 + $0x88] sm:$0xf]
        %v3287 = vld [vmem:[%s3262 + $0x90] sm:$0xf]
        %v3288 = vld [vmem:[%s3262 + $0x94] sm:$0xf]
        %v3289 = vld [vmem:[%s3262 + $0x9c] sm:$0xf]
        %v3290 = vld [vmem:[%s3262 + $0xa0] sm:$0xf]
        %v3291 = vld [vmem:[%s3262 + $0xa8] sm:$0xf]
        %v3292 = vld [vmem:[%s3262 + $0xac] sm:$0xf]
        %v3293 = vld [vmem:[%s3262 + $0xb4] sm:$0xf]
        %v3294 = vld [vmem:[%s3262 + $0xb8] sm:$0xf]
        %s3295 = scalar_lea.vmem %s219, 48
        %v3296 = vld [vmem:[%s3295] sm:$0xf]
        %v3297 = vld [vmem:[%s3295 + $0x4] sm:$0xf]
        %v3330 = vunpack.c.l.b16 %v3263
        %v3331 = vunpack.c.l.b16 %v3264
        %v3332 = vunpack.c.l.b16 %v3265
        %v3333 = vunpack.c.l.b16 %v3266
        %v3334 = vunpack.c.l.b16 %v3267
        %v3335 = vunpack.c.l.b16 %v3268
        %v3336 = vunpack.c.l.b16 %v3269
        %v3337 = vunpack.c.l.b16 %v3270
        %v3338 = vunpack.c.l.b16 %v3271
        %v3339 = vunpack.c.l.b16 %v3272
        %v3340 = vunpack.c.l.b16 %v3273
        %v3341 = vunpack.c.l.b16 %v3274
        %v3342 = vunpack.c.l.b16 %v3275
        %v3343 = vunpack.c.l.b16 %v3276
        %v3344 = vunpack.c.l.b16 %v3277
        %v3345 = vunpack.c.l.b16 %v3278
        %v3346 = vunpack.c.l.b16 %v3279
        %v3347 = vunpack.c.l.b16 %v3280
        %v3348 = vunpack.c.l.b16 %v3281
        %v3349 = vunpack.c.l.b16 %v3282
        %v3350 = vunpack.c.l.b16 %v3283
        %v3351 = vunpack.c.l.b16 %v3284
        %v3352 = vunpack.c.l.b16 %v3285
        %v3353 = vunpack.c.l.b16 %v3286
        %v3354 = vunpack.c.l.b16 %v3287
        %v3355 = vunpack.c.l.b16 %v3288
        %v3356 = vunpack.c.l.b16 %v3289
        %v3357 = vunpack.c.l.b16 %v3290
        %v3358 = vunpack.c.l.b16 %v3291
        %v3359 = vunpack.c.l.b16 %v3292
        %v3360 = vunpack.c.l.b16 %v3293
        %v3361 = vunpack.c.l.b16 %v3294
        %v3362 = vpack.c.b16 %v3331, %v3330
        %v3363 = vpack.c.b16 %v3333, %v3332
        %v3364 = vpack.c.b16 %v3335, %v3334
        %v3365 = vpack.c.b16 %v3337, %v3336
        %v3366 = vpack.c.b16 %v3339, %v3338
        %v3367 = vpack.c.b16 %v3341, %v3340
        %v3368 = vpack.c.b16 %v3343, %v3342
        %v3369 = vpack.c.b16 %v3345, %v3344
        %v3370 = vpack.c.b16 %v3347, %v3346
        %v3371 = vpack.c.b16 %v3349, %v3348
        %v3372 = vpack.c.b16 %v3351, %v3350
        %v3373 = vpack.c.b16 %v3353, %v3352
        %v3374 = vpack.c.b16 %v3355, %v3354
        %v3375 = vpack.c.b16 %v3357, %v3356
        %v3376 = vpack.c.b16 %v3359, %v3358
        %v3377 = vpack.c.b16 %v3361, %v3360
        %v3380 = vunpack.c.l.b16 %v3296
        %v3381 = vunpack.c.l.b16 %v3297
        %v3382 = vpack.c.b16 %v3381, %v3380
        %v3385 = vsel %vm723, %v3362, 0
        %v3388 = vsel %vm723, %v3363, 0
        %v3391 = vsel %vm723, %v3364, 0
        %v3394 = vsel %vm723, %v3365, 0
        %v3397 = vsel %vm723, %v3366, 0
        %v3400 = vsel %vm723, %v3367, 0
        %v3403 = vsel %vm723, %v3368, 0
        %v3406 = vsel %vm723, %v3369, 0
        %v3409 = vsel %vm723, %v3370, 0
        %v3412 = vsel %vm723, %v3371, 0
        %v3415 = vsel %vm723, %v3372, 0
        %v3418 = vsel %vm723, %v3373, 0
        %v3421 = vsel %vm723, %v3374, 0
        %v3424 = vsel %vm723, %v3375, 0
        %v3427 = vsel %vm723, %v3376, 0
        %v3430 = vsel %vm723, %v3377, 0
        %3432 = vmatprep.subr.bf16.mxu0 0
        %3433 = vmatpush1.bf16.msra.mxu0 %v3382
        %3434 = vmatprep.subr.bf16.mxu0 0
        %3435 = vmatpush1.bf16.msra.mxu0 0
        %3436 = vmatprep.subr.bf16.mxu0 0
        %3437 = vmatpush1.bf16.msra.mxu0 0
        %3438 = vmatprep.subr.bf16.mxu0 0
        %3439 = vmatpush1.bf16.msra.mxu0 0
        %3440 = vmatprep.subr.bf16.mxu0 0
        %3441 = vmatpush1.bf16.msra.mxu0 0
        %3442 = vmatprep.subr.bf16.mxu0 0
        %3443 = vmatpush1.bf16.msra.mxu0 0
        %3444 = vmatprep.subr.bf16.mxu0 0
        %3445 = vmatpush1.bf16.msra.mxu0 0
        %3446 = vmatprep.subr.bf16.mxu0 0
        %3447 = vmatpush1.bf16.msra.mxu0 0
        %3448 = vmatprep.subr.bf16.mxu0 0
        %3449 = vmatpush1.bf16.msra.mxu0 0
        %3450 = vmatprep.subr.bf16.mxu0 0
        %3451 = vmatpush1.bf16.msra.mxu0 0
        %3452 = vmatprep.subr.bf16.mxu0 0
        %3453 = vmatpush1.bf16.msra.mxu0 0
        %3454 = vmatprep.subr.bf16.mxu0 0
        %3455 = vmatpush1.bf16.msra.mxu0 0
        %3456 = vmatprep.subr.bf16.mxu0 0
        %3457 = vmatpush1.bf16.msra.mxu0 0
        %3458 = vmatprep.subr.bf16.mxu0 0
        %3459 = vmatpush1.bf16.msra.mxu0 0
        %3460 = vmatprep.subr.bf16.mxu0 0
        %3461 = vmatpush1.bf16.msra.mxu0 0
        %3462 = vmatprep.subr.bf16.mxu0 0
        %3463 = vmatpush1.bf16.msra.mxu0 0
        %3464 = vmatprep.mubr.bf16.mxu0 0
        %3465 = vmatmul.mubr.bf16.gmra.mrb[0].mxu0 %v3385
        %v3466 = vpop.f32.mrb[0].mxu0
        %v3467 = vadd.f32 0.0, %v3466
        %v3468 = vpop.f32.mrb[0].mxu0
        %v3469 = vpop.f32.mrb[0].mxu0
        %v3470 = vadd.f32 0.0, %v3469
        %v3471 = vpop.f32.mrb[0].mxu0
        %3472 = vmatprep.mubr.bf16.mxu0 0
        %3473 = vmatmul.mubr.bf16.gmra.mrb[0].mxu0 %v3388
        %v3474 = vpop.f32.mrb[0].mxu0
        %v3475 = vadd.f32 0.0, %v3474
        %v3476 = vpop.f32.mrb[0].mxu0
        %v3477 = vpop.f32.mrb[0].mxu0
        %v3478 = vadd.f32 0.0, %v3477
        %v3479 = vpop.f32.mrb[0].mxu0
        %3480 = vmatprep.mubr.bf16.mxu0 0
        %3481 = vmatmul.mubr.bf16.gmra.mrb[0].mxu0 %v3391
        %v3482 = vpop.f32.mrb[0].mxu0
        %v3483 = vadd.f32 0.0, %v3482
        %v3484 = vpop.f32.mrb[0].mxu0
        %v3485 = vpop.f32.mrb[0].mxu0
        %v3486 = vadd.f32 0.0, %v3485
        %v3487 = vpop.f32.mrb[0].mxu0
        %3488 = vmatprep.mubr.bf16.mxu0 0
        %3489 = vmatmul.mubr.bf16.gmra.mrb[0].mxu0 %v3394
        %v3490 = vpop.f32.mrb[0].mxu0
        %v3491 = vadd.f32 0.0, %v3490
        %v3492 = vpop.f32.mrb[0].mxu0
        %v3493 = vpop.f32.mrb[0].mxu0
        %v3494 = vadd.f32 0.0, %v3493
        %v3495 = vpop.f32.mrb[0].mxu0
        %3496 = vmatprep.mubr.bf16.mxu0 0
        %3497 = vmatmul.mubr.bf16.gmra.mrb[0].mxu0 %v3397
        %v3498 = vpop.f32.mrb[0].mxu0
        %v3499 = vadd.f32 0.0, %v3498
        %v3500 = vpop.f32.mrb[0].mxu0
        %v3501 = vpop.f32.mrb[0].mxu0
        %v3502 = vadd.f32 0.0, %v3501
        %v3503 = vpop.f32.mrb[0].mxu0
        %3504 = vmatprep.mubr.bf16.mxu0 0
        %3505 = vmatmul.mubr.bf16.gmra.mrb[0].mxu0 %v3400
        %v3506 = vpop.f32.mrb[0].mxu0
        %v3507 = vadd.f32 0.0, %v3506
        %v3508 = vpop.f32.mrb[0].mxu0
        %v3509 = vpop.f32.mrb[0].mxu0
        %v3510 = vadd.f32 0.0, %v3509
        %v3511 = vpop.f32.mrb[0].mxu0
        %3512 = vmatprep.mubr.bf16.mxu0 0
        %3513 = vmatmul.mubr.bf16.gmra.mrb[0].mxu0 %v3403
        %v3514 = vpop.f32.mrb[0].mxu0
        %v3515 = vadd.f32 0.0, %v3514
        %v3516 = vpop.f32.mrb[0].mxu0
        %v3517 = vpop.f32.mrb[0].mxu0
        %v3518 = vadd.f32 0.0, %v3517
        %v3519 = vpop.f32.mrb[0].mxu0
        %3520 = vmatprep.mubr.bf16.mxu0 0
        %3521 = vmatmul.mubr.bf16.gmra.mrb[0].mxu0 %v3406
        %v3522 = vpop.f32.mrb[0].mxu0
        %v3523 = vadd.f32 0.0, %v3522
        %v3524 = vpop.f32.mrb[0].mxu0
        %v3525 = vpop.f32.mrb[0].mxu0
        %v3526 = vadd.f32 0.0, %v3525
        %v3527 = vpop.f32.mrb[0].mxu0
        %3528 = vmatprep.mubr.bf16.mxu0 0
        %3529 = vmatmul.mubr.bf16.gmra.mrb[0].mxu0 %v3409
        %v3530 = vpop.f32.mrb[0].mxu0
        %v3531 = vadd.f32 0.0, %v3530
        %v3532 = vpop.f32.mrb[0].mxu0
        %v3533 = vpop.f32.mrb[0].mxu0
        %v3534 = vadd.f32 0.0, %v3533
        %v3535 = vpop.f32.mrb[0].mxu0
        %3536 = vmatprep.mubr.bf16.mxu0 0
        %3537 = vmatmul.mubr.bf16.gmra.mrb[0].mxu0 %v3412
        %v3538 = vpop.f32.mrb[0].mxu0
        %v3539 = vadd.f32 0.0, %v3538
        %v3540 = vpop.f32.mrb[0].mxu0
        %v3541 = vpop.f32.mrb[0].mxu0
        %v3542 = vadd.f32 0.0, %v3541
        %v3543 = vpop.f32.mrb[0].mxu0
        %3544 = vmatprep.mubr.bf16.mxu0 0
        %3545 = vmatmul.mubr.bf16.gmra.mrb[0].mxu0 %v3415
        %v3546 = vpop.f32.mrb[0].mxu0
        %v3547 = vadd.f32 0.0, %v3546
        %v3548 = vpop.f32.mrb[0].mxu0
        %v3549 = vpop.f32.mrb[0].mxu0
        %v3550 = vadd.f32 0.0, %v3549
        %v3551 = vpop.f32.mrb[0].mxu0
        %3552 = vmatprep.mubr.bf16.mxu0 0
        %3553 = vmatmul.mubr.bf16.gmra.mrb[0].mxu0 %v3418
        %v3554 = vpop.f32.mrb[0].mxu0
        %v3555 = vadd.f32 0.0, %v3554
        %v3556 = vpop.f32.mrb[0].mxu0
        %v3557 = vpop.f32.mrb[0].mxu0
        %v3558 = vadd.f32 0.0, %v3557
        %v3559 = vpop.f32.mrb[0].mxu0
        %3560 = vmatprep.mubr.bf16.mxu0 0
        %3561 = vmatmul.mubr.bf16.gmra.mrb[0].mxu0 %v3421
        %v3562 = vpop.f32.mrb[0].mxu0
        %v3563 = vadd.f32 0.0, %v3562
        %v3564 = vpop.f32.mrb[0].mxu0
        %v3565 = vpop.f32.mrb[0].mxu0
        %v3566 = vadd.f32 0.0, %v3565
        %v3567 = vpop.f32.mrb[0].mxu0
        %3568 = vmatprep.mubr.bf16.mxu0 0
        %3569 = vmatmul.mubr.bf16.gmra.mrb[0].mxu0 %v3424
        %v3570 = vpop.f32.mrb[0].mxu0
        %v3571 = vadd.f32 0.0, %v3570
        %v3572 = vpop.f32.mrb[0].mxu0
        %v3573 = vpop.f32.mrb[0].mxu0
        %v3574 = vadd.f32 0.0, %v3573
        %v3575 = vpop.f32.mrb[0].mxu0
        %3576 = vmatprep.mubr.bf16.mxu0 0
        %3577 = vmatmul.mubr.bf16.gmra.mrb[0].mxu0 %v3427
        %v3578 = vpop.f32.mrb[0].mxu0
        %v3579 = vadd.f32 0.0, %v3578
        %v3580 = vpop.f32.mrb[0].mxu0
        %v3581 = vpop.f32.mrb[0].mxu0
        %v3582 = vadd.f32 0.0, %v3581
        %v3583 = vpop.f32.mrb[0].mxu0
        %3584 = vmatprep.mubr.bf16.mxu0 0
        %3585 = vmatmul.mubr.bf16.gmra.mrb[0].mxu0 %v3430
        %v3586 = vpop.f32.mrb[0].mxu0
        %v3587 = vadd.f32 0.0, %v3586
        %v3588 = vpop.f32.mrb[0].mxu0
        %v3589 = vpop.f32.mrb[0].mxu0
        %v3590 = vadd.f32 0.0, %v3589
        %v3591 = vpop.f32.mrb[0].mxu0
        %3592 = vdwg.mxu0
        %v3593 = vadd.f32 %v3227, %v3467
        %v3594 = vadd.f32 %v3228, %v3470
        %v3595 = vadd.f32 %v3229, %v3475
        %v3596 = vadd.f32 %v3230, %v3478
        %v3597 = vadd.f32 %v3231, %v3483
        %v3598 = vadd.f32 %v3232, %v3486
        %v3599 = vadd.f32 %v3233, %v3491
        %v3600 = vadd.f32 %v3234, %v3494
        %v3601 = vadd.f32 %v3235, %v3499
        %v3602 = vadd.f32 %v3236, %v3502
        %v3603 = vadd.f32 %v3237, %v3507
        %v3604 = vadd.f32 %v3238, %v3510
        %v3605 = vadd.f32 %v3239, %v3515
        %v3606 = vadd.f32 %v3240, %v3518
        %v3607 = vadd.f32 %v3241, %v3523
        %v3608 = vadd.f32 %v3242, %v3526
        %v3609 = vadd.f32 %v3243, %v3531
        %v3610 = vadd.f32 %v3244, %v3534
        %v3611 = vadd.f32 %v3245, %v3539
        %v3612 = vadd.f32 %v3246, %v3542
        %v3613 = vadd.f32 %v3247, %v3547
        %v3614 = vadd.f32 %v3248, %v3550
        %v3615 = vadd.f32 %v3249, %v3555
        %v3616 = vadd.f32 %v3250, %v3558
        %v3617 = vadd.f32 %v3251, %v3563
        %v3618 = vadd.f32 %v3252, %v3566
        %v3619 = vadd.f32 %v3253, %v3571
        %v3620 = vadd.f32 %v3254, %v3574
        %v3621 = vadd.f32 %v3255, %v3579
        %v3622 = vadd.f32 %v3256, %v3582
        %v3623 = vadd.f32 %v3257, %v3587
        %v3624 = vadd.f32 %v3258, %v3590
        %v3625 = vld [vmem:[%s3262] sm:$0xf]
        %v3626 = vld [vmem:[%s3262 + $0x4] sm:$0xf]
        %v3627 = vld [vmem:[%s3262 + $0x8] sm:$0x1]
        %v3628 = vld [vmem:[%s3262 + $0xc] sm:$0xf]
        %v3629 = vld [vmem:[%s3262 + $0x10] sm:$0xf]
        %v3630 = vld [vmem:[%s3262 + $0x14] sm:$0x1]
        %v3631 = vld [vmem:[%s3262 + $0x18] sm:$0xf]
        %v3632 = vld [vmem:[%s3262 + $0x1c] sm:$0xf]
        %v3633 = vld [vmem:[%s3262 + $0x20] sm:$0x1]
        %v3634 = vld [vmem:[%s3262 + $0x24] sm:$0xf]
        %v3635 = vld [vmem:[%s3262 + $0x28] sm:$0xf]
        %v3636 = vld [vmem:[%s3262 + $0x2c] sm:$0x1]
        %v3637 = vld [vmem:[%s3262 + $0x30] sm:$0xf]
        %v3638 = vld [vmem:[%s3262 + $0x34] sm:$0xf]
        %v3639 = vld [vmem:[%s3262 + $0x38] sm:$0x1]
        %v3640 = vld [vmem:[%s3262 + $0x3c] sm:$0xf]
        %v3641 = vld [vmem:[%s3262 + $0x40] sm:$0xf]
        %v3642 = vld [vmem:[%s3262 + $0x44] sm:$0x1]
        %v3643 = vld [vmem:[%s3262 + $0x48] sm:$0xf]
        %v3644 = vld [vmem:[%s3262 + $0x4c] sm:$0xf]
        %v3645 = vld [vmem:[%s3262 + $0x50] sm:$0x1]
        %v3646 = vld [vmem:[%s3262 + $0x54] sm:$0xf]
        %v3647 = vld [vmem:[%s3262 + $0x58] sm:$0xf]
        %v3648 = vld [vmem:[%s3262 + $0x5c] sm:$0x1]
        %v3649 = vld [vmem:[%s3262 + $0x60] sm:$0xf]
        %v3650 = vld [vmem:[%s3262 + $0x64] sm:$0xf]
        %v3651 = vld [vmem:[%s3262 + $0x68] sm:$0x1]
        %v3652 = vld [vmem:[%s3262 + $0x6c] sm:$0xf]
        %v3653 = vld [vmem:[%s3262 + $0x70] sm:$0xf]
        %v3654 = vld [vmem:[%s3262 + $0x74] sm:$0x1]
        %v3655 = vld [vmem:[%s3262 + $0x78] sm:$0xf]
        %v3656 = vld [vmem:[%s3262 + $0x7c] sm:$0xf]
        %v3657 = vld [vmem:[%s3262 + $0x80] sm:$0x1]
        %v3658 = vld [vmem:[%s3262 + $0x84] sm:$0xf]
        %v3659 = vld [vmem:[%s3262 + $0x88] sm:$0xf]
        %v3660 = vld [vmem:[%s3262 + $0x8c] sm:$0x1]
        %v3661 = vld [vmem:[%s3262 + $0x90] sm:$0xf]
        %v3662 = vld [vmem:[%s3262 + $0x94] sm:$0xf]
        %v3663 = vld [vmem:[%s3262 + $0x98] sm:$0x1]
        %v3664 = vld [vmem:[%s3262 + $0x9c] sm:$0xf]
        %v3665 = vld [vmem:[%s3262 + $0xa0] sm:$0xf]
        %v3666 = vld [vmem:[%s3262 + $0xa4] sm:$0x1]
        %v3667 = vld [vmem:[%s3262 + $0xa8] sm:$0xf]
        %v3668 = vld [vmem:[%s3262 + $0xac] sm:$0xf]
        %v3669 = vld [vmem:[%s3262 + $0xb0] sm:$0x1]
        %v3670 = vld [vmem:[%s3262 + $0xb4] sm:$0xf]
        %v3671 = vld [vmem:[%s3262 + $0xb8] sm:$0xf]
        %v3672 = vld [vmem:[%s3262 + $0xbc] sm:$0x1]
        %v3674 = vshrl.u32 %v3625, 16
        %v3676 = vrot.slane %v3674, 4
        %v3677 = vshll.u32 %v3625, 16
        %v3679 = vrot.slane %v3677, 5
        %v3680 = vor.u32 %v3676, %v3679
        %v3681 = vrot.slane %v3680, 4
        %v3683 = vshll.u32 %v3626, 16
        %v3685 = vrot.slane %v3683, 5
        %v3686 = vsel %vm281, %v3681, %v3685
        %v3687 = vshrl.u32 %v3626, 16
        %v3689 = vrot.slane %v3687, 4
        %v3690 = vor.u32 %v3689, %v3685
        %v3691 = vrot.slane %v3690, 4
        %v3693 = vshll.u32 %v3627, 16
        %v3695 = vrot.slane %v3693, 5
        %v3696 = vsel %vm281, %v3691, %v3695
        %v3698 = vshrl.u32 %v3628, 16
        %v3700 = vrot.slane %v3698, 4
        %v3701 = vshll.u32 %v3628, 16
        %v3703 = vrot.slane %v3701, 5
        %v3704 = vor.u32 %v3700, %v3703
        %v3705 = vrot.slane %v3704, 4
        %v3707 = vshll.u32 %v3629, 16
        %v3709 = vrot.slane %v3707, 5
        %v3710 = vsel %vm281, %v3705, %v3709
        %v3711 = vshrl.u32 %v3629, 16
        %v3713 = vrot.slane %v3711, 4
        %v3714 = vor.u32 %v3713, %v3709
        %v3715 = vrot.slane %v3714, 4
        %v3717 = vshll.u32 %v3630, 16
        %v3719 = vrot.slane %v3717, 5
        %v3720 = vsel %vm281, %v3715, %v3719
        %v3722 = vshrl.u32 %v3631, 16
        %v3724 = vrot.slane %v3722, 4
        %v3725 = vshll.u32 %v3631, 16
        %v3727 = vrot.slane %v3725, 5
        %v3728 = vor.u32 %v3724, %v3727
        %v3729 = vrot.slane %v3728, 4
        %v3731 = vshll.u32 %v3632, 16
        %v3733 = vrot.slane %v3731, 5
        %v3734 = vsel %vm281, %v3729, %v3733
        %v3735 = vshrl.u32 %v3632, 16
        %v3737 = vrot.slane %v3735, 4
        %v3738 = vor.u32 %v3737, %v3733
        %v3739 = vrot.slane %v3738, 4
        %v3741 = vshll.u32 %v3633, 16
        %v3743 = vrot.slane %v3741, 5
        %v3744 = vsel %vm281, %v3739, %v3743
        %v3746 = vshrl.u32 %v3634, 16
        %v3748 = vrot.slane %v3746, 4
        %v3749 = vshll.u32 %v3634, 16
        %v3751 = vrot.slane %v3749, 5
        %v3752 = vor.u32 %v3748, %v3751
        %v3753 = vrot.slane %v3752, 4
        %v3755 = vshll.u32 %v3635, 16
        %v3757 = vrot.slane %v3755, 5
        %v3758 = vsel %vm281, %v3753, %v3757
        %v3759 = vshrl.u32 %v3635, 16
        %v3761 = vrot.slane %v3759, 4
        %v3762 = vor.u32 %v3761, %v3757
        %v3763 = vrot.slane %v3762, 4
        %v3765 = vshll.u32 %v3636, 16
        %v3767 = vrot.slane %v3765, 5
        %v3768 = vsel %vm281, %v3763, %v3767
        %v3770 = vshrl.u32 %v3637, 16
        %v3772 = vrot.slane %v3770, 4
        %v3773 = vshll.u32 %v3637, 16
        %v3775 = vrot.slane %v3773, 5
        %v3776 = vor.u32 %v3772, %v3775
        %v3777 = vrot.slane %v3776, 4
        %v3779 = vshll.u32 %v3638, 16
        %v3781 = vrot.slane %v3779, 5
        %v3782 = vsel %vm281, %v3777, %v3781
        %v3783 = vshrl.u32 %v3638, 16
        %v3785 = vrot.slane %v3783, 4
        %v3786 = vor.u32 %v3785, %v3781
        %v3787 = vrot.slane %v3786, 4
        %v3789 = vshll.u32 %v3639, 16
        %v3791 = vrot.slane %v3789, 5
        %v3792 = vsel %vm281, %v3787, %v3791
        %v3794 = vshrl.u32 %v3640, 16
        %v3796 = vrot.slane %v3794, 4
        %v3797 = vshll.u32 %v3640, 16
        %v3799 = vrot.slane %v3797, 5
        %v3800 = vor.u32 %v3796, %v3799
        %v3801 = vrot.slane %v3800, 4
        %v3803 = vshll.u32 %v3641, 16
        %v3805 = vrot.slane %v3803, 5
        %v3806 = vsel %vm281, %v3801, %v3805
        %v3807 = vshrl.u32 %v3641, 16
        %v3809 = vrot.slane %v3807, 4
        %v3810 = vor.u32 %v3809, %v3805
        %v3811 = vrot.slane %v3810, 4
        %v3813 = vshll.u32 %v3642, 16
        %v3815 = vrot.slane %v3813, 5
        %v3816 = vsel %vm281, %v3811, %v3815
        %v3818 = vshrl.u32 %v3643, 16
        %v3820 = vrot.slane %v3818, 4
        %v3821 = vshll.u32 %v3643, 16
        %v3823 = vrot.slane %v3821, 5
        %v3824 = vor.u32 %v3820, %v3823
        %v3825 = vrot.slane %v3824, 4
        %v3827 = vshll.u32 %v3644, 16
        %v3829 = vrot.slane %v3827, 5
        %v3830 = vsel %vm281, %v3825, %v3829
        %v3831 = vshrl.u32 %v3644, 16
        %v3833 = vrot.slane %v3831, 4
        %v3834 = vor.u32 %v3833, %v3829
        %v3835 = vrot.slane %v3834, 4
        %v3837 = vshll.u32 %v3645, 16
        %v3839 = vrot.slane %v3837, 5
        %v3840 = vsel %vm281, %v3835, %v3839
        %v3842 = vshrl.u32 %v3646, 16
        %v3844 = vrot.slane %v3842, 4
        %v3845 = vshll.u32 %v3646, 16
        %v3847 = vrot.slane %v3845, 5
        %v3848 = vor.u32 %v3844, %v3847
        %v3849 = vrot.slane %v3848, 4
        %v3851 = vshll.u32 %v3647, 16
        %v3853 = vrot.slane %v3851, 5
        %v3854 = vsel %vm281, %v3849, %v3853
        %v3855 = vshrl.u32 %v3647, 16
        %v3857 = vrot.slane %v3855, 4
        %v3858 = vor.u32 %v3857, %v3853
        %v3859 = vrot.slane %v3858, 4
        %v3861 = vshll.u32 %v3648, 16
        %v3863 = vrot.slane %v3861, 5
        %v3864 = vsel %vm281, %v3859, %v3863
        %v3866 = vshrl.u32 %v3649, 16
        %v3868 = vrot.slane %v3866, 4
        %v3869 = vshll.u32 %v3649, 16
        %v3871 = vrot.slane %v3869, 5
        %v3872 = vor.u32 %v3868, %v3871
        %v3873 = vrot.slane %v3872, 4
        %v3875 = vshll.u32 %v3650, 16
        %v3877 = vrot.slane %v3875, 5
        %v3878 = vsel %vm281, %v3873, %v3877
        %v3879 = vshrl.u32 %v3650, 16
        %v3881 = vrot.slane %v3879, 4
        %v3882 = vor.u32 %v3881, %v3877
        %v3883 = vrot.slane %v3882, 4
        %v3885 = vshll.u32 %v3651, 16
        %v3887 = vrot.slane %v3885, 5
        %v3888 = vsel %vm281, %v3883, %v3887
        %v3890 = vshrl.u32 %v3652, 16
        %v3892 = vrot.slane %v3890, 4
        %v3893 = vshll.u32 %v3652, 16
        %v3895 = vrot.slane %v3893, 5
        %v3896 = vor.u32 %v3892, %v3895
        %v3897 = vrot.slane %v3896, 4
        %v3899 = vshll.u32 %v3653, 16
        %v3901 = vrot.slane %v3899, 5
        %v3902 = vsel %vm281, %v3897, %v3901
        %v3903 = vshrl.u32 %v3653, 16
        %v3905 = vrot.slane %v3903, 4
        %v3906 = vor.u32 %v3905, %v3901
        %v3907 = vrot.slane %v3906, 4
        %v3909 = vshll.u32 %v3654, 16
        %v3911 = vrot.slane %v3909, 5
        %v3912 = vsel %vm281, %v3907, %v3911
        %v3914 = vshrl.u32 %v3655, 16
        %v3916 = vrot.slane %v3914, 4
        %v3917 = vshll.u32 %v3655, 16
        %v3919 = vrot.slane %v3917, 5
        %v3920 = vor.u32 %v3916, %v3919
        %v3921 = vrot.slane %v3920, 4
        %v3923 = vshll.u32 %v3656, 16
        %v3925 = vrot.slane %v3923, 5
        %v3926 = vsel %vm281, %v3921, %v3925
        %v3927 = vshrl.u32 %v3656, 16
        %v3929 = vrot.slane %v3927, 4
        %v3930 = vor.u32 %v3929, %v3925
        %v3931 = vrot.slane %v3930, 4
        %v3933 = vshll.u32 %v3657, 16
        %v3935 = vrot.slane %v3933, 5
        %v3936 = vsel %vm281, %v3931, %v3935
        %v3938 = vshrl.u32 %v3658, 16
        %v3940 = vrot.slane %v3938, 4
        %v3941 = vshll.u32 %v3658, 16
        %v3943 = vrot.slane %v3941, 5
        %v3944 = vor.u32 %v3940, %v3943
        %v3945 = vrot.slane %v3944, 4
        %v3947 = vshll.u32 %v3659, 16
        %v3949 = vrot.slane %v3947, 5
        %v3950 = vsel %vm281, %v3945, %v3949
        %v3951 = vshrl.u32 %v3659, 16
        %v3953 = vrot.slane %v3951, 4
        %v3954 = vor.u32 %v3953, %v3949
        %v3955 = vrot.slane %v3954, 4
        %v3957 = vshll.u32 %v3660, 16
        %v3959 = vrot.slane %v3957, 5
        %v3960 = vsel %vm281, %v3955, %v3959
        %v3962 = vshrl.u32 %v3661, 16
        %v3964 = vrot.slane %v3962, 4
        %v3965 = vshll.u32 %v3661, 16
        %v3967 = vrot.slane %v3965, 5
        %v3968 = vor.u32 %v3964, %v3967
        %v3969 = vrot.slane %v3968, 4
        %v3971 = vshll.u32 %v3662, 16
        %v3973 = vrot.slane %v3971, 5
        %v3974 = vsel %vm281, %v3969, %v3973
        %v3975 = vshrl.u32 %v3662, 16
        %v3977 = vrot.slane %v3975, 4
        %v3978 = vor.u32 %v3977, %v3973
        %v3979 = vrot.slane %v3978, 4
        %v3981 = vshll.u32 %v3663, 16
        %v3983 = vrot.slane %v3981, 5
        %v3984 = vsel %vm281, %v3979, %v3983
        %v3986 = vshrl.u32 %v3664, 16
        %v3988 = vrot.slane %v3986, 4
        %v3989 = vshll.u32 %v3664, 16
        %v3991 = vrot.slane %v3989, 5
        %v3992 = vor.u32 %v3988, %v3991
        %v3993 = vrot.slane %v3992, 4
        %v3995 = vshll.u32 %v3665, 16
        %v3997 = vrot.slane %v3995, 5
        %v3998 = vsel %vm281, %v3993, %v3997
        %v3999 = vshrl.u32 %v3665, 16
        %v4001 = vrot.slane %v3999, 4
        %v4002 = vor.u32 %v4001, %v3997
        %v4003 = vrot.slane %v4002, 4
        %v4005 = vshll.u32 %v3666, 16
        %v4007 = vrot.slane %v4005, 5
        %v4008 = vsel %vm281, %v4003, %v4007
        %v4010 = vshrl.u32 %v3667, 16
        %v4012 = vrot.slane %v4010, 4
        %v4013 = vshll.u32 %v3667, 16
        %v4015 = vrot.slane %v4013, 5
        %v4016 = vor.u32 %v4012, %v4015
        %v4017 = vrot.slane %v4016, 4
        %v4019 = vshll.u32 %v3668, 16
        %v4021 = vrot.slane %v4019, 5
        %v4022 = vsel %vm281, %v4017, %v4021
        %v4023 = vshrl.u32 %v3668, 16
        %v4025 = vrot.slane %v4023, 4
        %v4026 = vor.u32 %v4025, %v4021
        %v4027 = vrot.slane %v4026, 4
        %v4029 = vshll.u32 %v3669, 16
        %v4031 = vrot.slane %v4029, 5
        %v4032 = vsel %vm281, %v4027, %v4031
        %v4034 = vshrl.u32 %v3670, 16
        %v4036 = vrot.slane %v4034, 4
        %v4037 = vshll.u32 %v3670, 16
        %v4039 = vrot.slane %v4037, 5
        %v4040 = vor.u32 %v4036, %v4039
        %v4041 = vrot.slane %v4040, 4
        %v4043 = vshll.u32 %v3671, 16
        %v4045 = vrot.slane %v4043, 5
        %v4046 = vsel %vm281, %v4041, %v4045
        %v4047 = vshrl.u32 %v3671, 16
        %v4049 = vrot.slane %v4047, 4
        %v4050 = vor.u32 %v4049, %v4045
        %v4051 = vrot.slane %v4050, 4
        %v4053 = vshll.u32 %v3672, 16
        %v4055 = vrot.slane %v4053, 5
        %v4056 = vsel %vm281, %v4051, %v4055
        %s4057 = scalar_lea.vmem %s219, 56
        %v4058 = vld [vmem:[%s4057] sm:$0xf]
        %v4059 = vld [vmem:[%s4057 + $0x4] sm:$0xf]
        %v4060 = vunpack.c.l.b16 %v3686
        %v4061 = vunpack.c.l.b16 %v3696
        %v4062 = vunpack.c.l.b16 %v3710
        %v4063 = vunpack.c.l.b16 %v3720
        %v4064 = vunpack.c.l.b16 %v3734
        %v4065 = vunpack.c.l.b16 %v3744
        %v4066 = vunpack.c.l.b16 %v3758
        %v4067 = vunpack.c.l.b16 %v3768
        %v4068 = vunpack.c.l.b16 %v3782
        %v4069 = vunpack.c.l.b16 %v3792
        %v4070 = vunpack.c.l.b16 %v3806
        %v4071 = vunpack.c.l.b16 %v3816
        %v4072 = vunpack.c.l.b16 %v3830
        %v4073 = vunpack.c.l.b16 %v3840
        %v4074 = vunpack.c.l.b16 %v3854
        %v4075 = vunpack.c.l.b16 %v3864
        %v4076 = vunpack.c.l.b16 %v3878
        %v4077 = vunpack.c.l.b16 %v3888
        %v4078 = vunpack.c.l.b16 %v3902
        %v4079 = vunpack.c.l.b16 %v3912
        %v4080 = vunpack.c.l.b16 %v3926
        %v4081 = vunpack.c.l.b16 %v3936
        %v4082 = vunpack.c.l.b16 %v3950
        %v4083 = vunpack.c.l.b16 %v3960
        %v4084 = vunpack.c.l.b16 %v3974
        %v4085 = vunpack.c.l.b16 %v3984
        %v4086 = vunpack.c.l.b16 %v3998
        %v4087 = vunpack.c.l.b16 %v4008
        %v4088 = vunpack.c.l.b16 %v4022
        %v4089 = vunpack.c.l.b16 %v4032
        %v4090 = vunpack.c.l.b16 %v4046
        %v4091 = vunpack.c.l.b16 %v4056
        %v4092 = vpack.c.b16 %v4061, %v4060
        %v4093 = vpack.c.b16 %v4063, %v4062
        %v4094 = vpack.c.b16 %v4065, %v4064
        %v4095 = vpack.c.b16 %v4067, %v4066
        %v4096 = vpack.c.b16 %v4069, %v4068
        %v4097 = vpack.c.b16 %v4071, %v4070
        %v4098 = vpack.c.b16 %v4073, %v4072
        %v4099 = vpack.c.b16 %v4075, %v4074
        %v4100 = vpack.c.b16 %v4077, %v4076
        %v4101 = vpack.c.b16 %v4079, %v4078
        %v4102 = vpack.c.b16 %v4081, %v4080
        %v4103 = vpack.c.b16 %v4083, %v4082
        %v4104 = vpack.c.b16 %v4085, %v4084
        %v4105 = vpack.c.b16 %v4087, %v4086
        %v4106 = vpack.c.b16 %v4089, %v4088
        %v4107 = vpack.c.b16 %v4091, %v4090
        %v4110 = vunpack.c.l.b16 %v4058
        %v4111 = vunpack.c.l.b16 %v4059
        %v4112 = vpack.c.b16 %v4111, %v4110
        %v4115 = vsel %vm723, %v4092, 0
        %v4118 = vsel %vm723, %v4093, 0
        %v4121 = vsel %vm723, %v4094, 0
        %v4124 = vsel %vm723, %v4095, 0
        %v4127 = vsel %vm723, %v4096, 0
        %v4130 = vsel %vm723, %v4097, 0
        %v4133 = vsel %vm723, %v4098, 0
        %v4136 = vsel %vm723, %v4099, 0
        %v4139 = vsel %vm723, %v4100, 0
        %v4142 = vsel %vm723, %v4101, 0
        %v4145 = vsel %vm723, %v4102, 0
        %v4148 = vsel %vm723, %v4103, 0
        %v4151 = vsel %vm723, %v4104, 0
        %v4154 = vsel %vm723, %v4105, 0
        %v4157 = vsel %vm723, %v4106, 0
        %v4160 = vsel %vm723, %v4107, 0
        %4162 = vmatprep.subr.bf16.mxu0 0
        %4163 = vmatpush1.bf16.msra.mxu0 %v4112
        %4164 = vmatprep.subr.bf16.mxu0 0
        %4165 = vmatpush1.bf16.msra.mxu0 0
        %4166 = vmatprep.subr.bf16.mxu0 0
        %4167 = vmatpush1.bf16.msra.mxu0 0
        %4168 = vmatprep.subr.bf16.mxu0 0
        %4169 = vmatpush1.bf16.msra.mxu0 0
        %4170 = vmatprep.subr.bf16.mxu0 0
        %4171 = vmatpush1.bf16.msra.mxu0 0
        %4172 = vmatprep.subr.bf16.mxu0 0
        %4173 = vmatpush1.bf16.msra.mxu0 0
        %4174 = vmatprep.subr.bf16.mxu0 0
        %4175 = vmatpush1.bf16.msra.mxu0 0
        %4176 = vmatprep.subr.bf16.mxu0 0
        %4177 = vmatpush1.bf16.msra.mxu0 0
        %4178 = vmatprep.subr.bf16.mxu0 0
        %4179 = vmatpush1.bf16.msra.mxu0 0
        %4180 = vmatprep.subr.bf16.mxu0 0
        %4181 = vmatpush1.bf16.msra.mxu0 0
        %4182 = vmatprep.subr.bf16.mxu0 0
        %4183 = vmatpush1.bf16.msra.mxu0 0
        %4184 = vmatprep.subr.bf16.mxu0 0
        %4185 = vmatpush1.bf16.msra.mxu0 0
        %4186 = vmatprep.subr.bf16.mxu0 0
        %4187 = vmatpush1.bf16.msra.mxu0 0
        %4188 = vmatprep.subr.bf16.mxu0 0
        %4189 = vmatpush1.bf16.msra.mxu0 0
        %4190 = vmatprep.subr.bf16.mxu0 0
        %4191 = vmatpush1.bf16.msra.mxu0 0
        %4192 = vmatprep.subr.bf16.mxu0 0
        %4193 = vmatpush1.bf16.msra.mxu0 0
        %4194 = vmatprep.mubr.bf16.mxu0 0
        %4195 = vmatmul.mubr.bf16.gmra.mrb[0].mxu0 %v4115
        %v4196 = vpop.f32.mrb[0].mxu0
        %v4197 = vadd.f32 0.0, %v4196
        %v4198 = vpop.f32.mrb[0].mxu0
        %v4199 = vpop.f32.mrb[0].mxu0
        %v4200 = vadd.f32 0.0, %v4199
        %v4201 = vpop.f32.mrb[0].mxu0
        %4202 = vmatprep.mubr.bf16.mxu0 0
        %4203 = vmatmul.mubr.bf16.gmra.mrb[0].mxu0 %v4118
        %v4204 = vpop.f32.mrb[0].mxu0
        %v4205 = vadd.f32 0.0, %v4204
        %v4206 = vpop.f32.mrb[0].mxu0
        %v4207 = vpop.f32.mrb[0].mxu0
        %v4208 = vadd.f32 0.0, %v4207
        %v4209 = vpop.f32.mrb[0].mxu0
        %4210 = vmatprep.mubr.bf16.mxu0 0
        %4211 = vmatmul.mubr.bf16.gmra.mrb[0].mxu0 %v4121
        %v4212 = vpop.f32.mrb[0].mxu0
        %v4213 = vadd.f32 0.0, %v4212
        %v4214 = vpop.f32.mrb[0].mxu0
        %v4215 = vpop.f32.mrb[0].mxu0
        %v4216 = vadd.f32 0.0, %v4215
        %v4217 = vpop.f32.mrb[0].mxu0
        %4218 = vmatprep.mubr.bf16.mxu0 0
        %4219 = vmatmul.mubr.bf16.gmra.mrb[0].mxu0 %v4124
        %v4220 = vpop.f32.mrb[0].mxu0
        %v4221 = vadd.f32 0.0, %v4220
        %v4222 = vpop.f32.mrb[0].mxu0
        %v4223 = vpop.f32.mrb[0].mxu0
        %v4224 = vadd.f32 0.0, %v4223
        %v4225 = vpop.f32.mrb[0].mxu0
        %4226 = vmatprep.mubr.bf16.mxu0 0
        %4227 = vmatmul.mubr.bf16.gmra.mrb[0].mxu0 %v4127
        %v4228 = vpop.f32.mrb[0].mxu0
        %v4229 = vadd.f32 0.0, %v4228
        %v4230 = vpop.f32.mrb[0].mxu0
        %v4231 = vpop.f32.mrb[0].mxu0
        %v4232 = vadd.f32 0.0, %v4231
        %v4233 = vpop.f32.mrb[0].mxu0
        %4234 = vmatprep.mubr.bf16.mxu0 0
        %4235 = vmatmul.mubr.bf16.gmra.mrb[0].mxu0 %v4130
        %v4236 = vpop.f32.mrb[0].mxu0
        %v4237 = vadd.f32 0.0, %v4236
        %v4238 = vpop.f32.mrb[0].mxu0
        %v4239 = vpop.f32.mrb[0].mxu0
        %v4240 = vadd.f32 0.0, %v4239
        %v4241 = vpop.f32.mrb[0].mxu0
        %4242 = vmatprep.mubr.bf16.mxu0 0
        %4243 = vmatmul.mubr.bf16.gmra.mrb[0].mxu0 %v4133
        %v4244 = vpop.f32.mrb[0].mxu0
        %v4245 = vadd.f32 0.0, %v4244
        %v4246 = vpop.f32.mrb[0].mxu0
        %v4247 = vpop.f32.mrb[0].mxu0
        %v4248 = vadd.f32 0.0, %v4247
        %v4249 = vpop.f32.mrb[0].mxu0
        %4250 = vmatprep.mubr.bf16.mxu0 0
        %4251 = vmatmul.mubr.bf16.gmra.mrb[0].mxu0 %v4136
        %v4252 = vpop.f32.mrb[0].mxu0
        %v4253 = vadd.f32 0.0, %v4252
        %v4254 = vpop.f32.mrb[0].mxu0
        %v4255 = vpop.f32.mrb[0].mxu0
        %v4256 = vadd.f32 0.0, %v4255
        %v4257 = vpop.f32.mrb[0].mxu0
        %4258 = vmatprep.mubr.bf16.mxu0 0
        %4259 = vmatmul.mubr.bf16.gmra.mrb[0].mxu0 %v4139
        %v4260 = vpop.f32.mrb[0].mxu0
        %v4261 = vadd.f32 0.0, %v4260
        %v4262 = vpop.f32.mrb[0].mxu0
        %v4263 = vpop.f32.mrb[0].mxu0
        %v4264 = vadd.f32 0.0, %v4263
        %v4265 = vpop.f32.mrb[0].mxu0
        %4266 = vmatprep.mubr.bf16.mxu0 0
        %4267 = vmatmul.mubr.bf16.gmra.mrb[0].mxu0 %v4142
        %v4268 = vpop.f32.mrb[0].mxu0
        %v4269 = vadd.f32 0.0, %v4268
        %v4270 = vpop.f32.mrb[0].mxu0
        %v4271 = vpop.f32.mrb[0].mxu0
        %v4272 = vadd.f32 0.0, %v4271
        %v4273 = vpop.f32.mrb[0].mxu0
        %4274 = vmatprep.mubr.bf16.mxu0 0
        %4275 = vmatmul.mubr.bf16.gmra.mrb[0].mxu0 %v4145
        %v4276 = vpop.f32.mrb[0].mxu0
        %v4277 = vadd.f32 0.0, %v4276
        %v4278 = vpop.f32.mrb[0].mxu0
        %v4279 = vpop.f32.mrb[0].mxu0
        %v4280 = vadd.f32 0.0, %v4279
        %v4281 = vpop.f32.mrb[0].mxu0
        %4282 = vmatprep.mubr.bf16.mxu0 0
        %4283 = vmatmul.mubr.bf16.gmra.mrb[0].mxu0 %v4148
        %v4284 = vpop.f32.mrb[0].mxu0
        %v4285 = vadd.f32 0.0, %v4284
        %v4286 = vpop.f32.mrb[0].mxu0
        %v4287 = vpop.f32.mrb[0].mxu0
        %v4288 = vadd.f32 0.0, %v4287
        %v4289 = vpop.f32.mrb[0].mxu0
        %4290 = vmatprep.mubr.bf16.mxu0 0
        %4291 = vmatmul.mubr.bf16.gmra.mrb[0].mxu0 %v4151
        %v4292 = vpop.f32.mrb[0].mxu0
        %v4293 = vadd.f32 0.0, %v4292
        %v4294 = vpop.f32.mrb[0].mxu0
        %v4295 = vpop.f32.mrb[0].mxu0
        %v4296 = vadd.f32 0.0, %v4295
        %v4297 = vpop.f32.mrb[0].mxu0
        %4298 = vmatprep.mubr.bf16.mxu0 0
        %4299 = vmatmul.mubr.bf16.gmra.mrb[0].mxu0 %v4154
        %v4300 = vpop.f32.mrb[0].mxu0
        %v4301 = vadd.f32 0.0, %v4300
        %v4302 = vpop.f32.mrb[0].mxu0
        %v4303 = vpop.f32.mrb[0].mxu0
        %v4304 = vadd.f32 0.0, %v4303
        %v4305 = vpop.f32.mrb[0].mxu0
        %4306 = vmatprep.mubr.bf16.mxu0 0
        %4307 = vmatmul.mubr.bf16.gmra.mrb[0].mxu0 %v4157
        %v4308 = vpop.f32.mrb[0].mxu0
        %v4309 = vadd.f32 0.0, %v4308
        %v4310 = vpop.f32.mrb[0].mxu0
        %v4311 = vpop.f32.mrb[0].mxu0
        %v4312 = vadd.f32 0.0, %v4311
        %v4313 = vpop.f32.mrb[0].mxu0
        %4314 = vmatprep.mubr.bf16.mxu0 0
        %4315 = vmatmul.mubr.bf16.gmra.mrb[0].mxu0 %v4160
        %v4316 = vpop.f32.mrb[0].mxu0
        %v4317 = vadd.f32 0.0, %v4316
        %v4318 = vpop.f32.mrb[0].mxu0
        %v4319 = vpop.f32.mrb[0].mxu0
        %v4320 = vadd.f32 0.0, %v4319
        %v4321 = vpop.f32.mrb[0].mxu0
        %4322 = vdwg.mxu0
        %v4323 = vadd.f32 %v3593, %v4197
        %v4324 = vadd.f32 %v3594, %v4200
        %v4325 = vadd.f32 %v3595, %v4205
        %v4326 = vadd.f32 %v3596, %v4208
        %v4327 = vadd.f32 %v3597, %v4213
        %v4328 = vadd.f32 %v3598, %v4216
        %v4329 = vadd.f32 %v3599, %v4221
        %v4330 = vadd.f32 %v3600, %v4224
        %v4331 = vadd.f32 %v3601, %v4229
        %v4332 = vadd.f32 %v3602, %v4232
        %v4333 = vadd.f32 %v3603, %v4237
        %v4334 = vadd.f32 %v3604, %v4240
        %v4335 = vadd.f32 %v3605, %v4245
        %v4336 = vadd.f32 %v3606, %v4248
        %v4337 = vadd.f32 %v3607, %v4253
        %v4338 = vadd.f32 %v3608, %v4256
        %v4339 = vadd.f32 %v3609, %v4261
        %v4340 = vadd.f32 %v3610, %v4264
        %v4341 = vadd.f32 %v3611, %v4269
        %v4342 = vadd.f32 %v3612, %v4272
        %v4343 = vadd.f32 %v3613, %v4277
        %v4344 = vadd.f32 %v3614, %v4280
        %v4345 = vadd.f32 %v3615, %v4285
        %v4346 = vadd.f32 %v3616, %v4288
        %v4347 = vadd.f32 %v3617, %v4293
        %v4348 = vadd.f32 %v3618, %v4296
        %v4349 = vadd.f32 %v3619, %v4301
        %v4350 = vadd.f32 %v3620, %v4304
        %v4351 = vadd.f32 %v3621, %v4309
        %v4352 = vadd.f32 %v3622, %v4312
        %v4353 = vadd.f32 %v3623, %v4317
        %v4354 = vadd.f32 %v3624, %v4320
        %v4355 = vld [vmem:[%s3262] sm:$0xe]
        %v4356 = vld [vmem:[%s3262 + $0xc] sm:$0xe]
        %v4357 = vld [vmem:[%s3262 + $0x18] sm:$0xe]
        %v4358 = vld [vmem:[%s3262 + $0x24] sm:$0xe]
        %v4359 = vld [vmem:[%s3262 + $0x30] sm:$0xe]
        %v4360 = vld [vmem:[%s3262 + $0x3c] sm:$0xe]
        %v4361 = vld [vmem:[%s3262 + $0x48] sm:$0xe]
        %v4362 = vld [vmem:[%s3262 + $0x54] sm:$0xe]
        %v4363 = vld [vmem:[%s3262 + $0x60] sm:$0xe]
        %v4364 = vld [vmem:[%s3262 + $0x6c] sm:$0xe]
        %v4365 = vld [vmem:[%s3262 + $0x78] sm:$0xe]
        %v4366 = vld [vmem:[%s3262 + $0x84] sm:$0xe]
        %v4367 = vld [vmem:[%s3262 + $0x90] sm:$0xe]
        %v4368 = vld [vmem:[%s3262 + $0x9c] sm:$0xe]
        %v4369 = vld [vmem:[%s3262 + $0xa8] sm:$0xe]
        %v4370 = vld [vmem:[%s3262 + $0xb4] sm:$0xe]
        %v4419 = vrot.slane %v4355, 5
        %v4420 = vrot.slane %v4419, 4
        %v4421 = vrot.slane %v3626, 5
        %v4422 = vsel %vm1278, %v4420, %v4421
        %v4423 = vrot.slane %v4421, 4
        %v4424 = vrot.slane %v3627, 5
        %v4425 = vsel %vm1278, %v4423, %v4424
        %v4426 = vrot.slane %v4356, 5
        %v4427 = vrot.slane %v4426, 4
        %v4428 = vrot.slane %v3629, 5
        %v4429 = vsel %vm1278, %v4427, %v4428
        %v4430 = vrot.slane %v4428, 4
        %v4431 = vrot.slane %v3630, 5
        %v4432 = vsel %vm1278, %v4430, %v4431
        %v4433 = vrot.slane %v4357, 5
        %v4434 = vrot.slane %v4433, 4
        %v4435 = vrot.slane %v3632, 5
        %v4436 = vsel %vm1278, %v4434, %v4435
        %v4437 = vrot.slane %v4435, 4
        %v4438 = vrot.slane %v3633, 5
        %v4439 = vsel %vm1278, %v4437, %v4438
        %v4440 = vrot.slane %v4358, 5
        %v4441 = vrot.slane %v4440, 4
        %v4442 = vrot.slane %v3635, 5
        %v4443 = vsel %vm1278, %v4441, %v4442
        %v4444 = vrot.slane %v4442, 4
        %v4445 = vrot.slane %v3636, 5
        %v4446 = vsel %vm1278, %v4444, %v4445
        %v4447 = vrot.slane %v4359, 5
        %v4448 = vrot.slane %v4447, 4
        %v4449 = vrot.slane %v3638, 5
        %v4450 = vsel %vm1278, %v4448, %v4449
        %v4451 = vrot.slane %v4449, 4
        %v4452 = vrot.slane %v3639, 5
        %v4453 = vsel %vm1278, %v4451, %v4452
        %v4454 = vrot.slane %v4360, 5
        %v4455 = vrot.slane %v4454, 4
        %v4456 = vrot.slane %v3641, 5
        %v4457 = vsel %vm1278, %v4455, %v4456
        %v4458 = vrot.slane %v4456, 4
        %v4459 = vrot.slane %v3642, 5
        %v4460 = vsel %vm1278, %v4458, %v4459
        %v4461 = vrot.slane %v4361, 5
        %v4462 = vrot.slane %v4461, 4
        %v4463 = vrot.slane %v3644, 5
        %v4464 = vsel %vm1278, %v4462, %v4463
        %v4465 = vrot.slane %v4463, 4
        %v4466 = vrot.slane %v3645, 5
        %v4467 = vsel %vm1278, %v4465, %v4466
        %v4468 = vrot.slane %v4362, 5
        %v4469 = vrot.slane %v4468, 4
        %v4470 = vrot.slane %v3647, 5
        %v4471 = vsel %vm1278, %v4469, %v4470
        %v4472 = vrot.slane %v4470, 4
        %v4473 = vrot.slane %v3648, 5
        %v4474 = vsel %vm1278, %v4472, %v4473
        %v4475 = vrot.slane %v4363, 5
        %v4476 = vrot.slane %v4475, 4
        %v4477 = vrot.slane %v3650, 5
        %v4478 = vsel %vm1278, %v4476, %v4477
        %v4479 = vrot.slane %v4477, 4
        %v4480 = vrot.slane %v3651, 5
        %v4481 = vsel %vm1278, %v4479, %v4480
        %v4482 = vrot.slane %v4364, 5
        %v4483 = vrot.slane %v4482, 4
        %v4484 = vrot.slane %v3653, 5
        %v4485 = vsel %vm1278, %v4483, %v4484
        %v4486 = vrot.slane %v4484, 4
        %v4487 = vrot.slane %v3654, 5
        %v4488 = vsel %vm1278, %v4486, %v4487
        %v4489 = vrot.slane %v4365, 5
        %v4490 = vrot.slane %v4489, 4
        %v4491 = vrot.slane %v3656, 5
        %v4492 = vsel %vm1278, %v4490, %v4491
        %v4493 = vrot.slane %v4491, 4
        %v4494 = vrot.slane %v3657, 5
        %v4495 = vsel %vm1278, %v4493, %v4494
        %v4496 = vrot.slane %v4366, 5
        %v4497 = vrot.slane %v4496, 4
        %v4498 = vrot.slane %v3659, 5
        %v4499 = vsel %vm1278, %v4497, %v4498
        %v4500 = vrot.slane %v4498, 4
        %v4501 = vrot.slane %v3660, 5
        %v4502 = vsel %vm1278, %v4500, %v4501
        %v4503 = vrot.slane %v4367, 5
        %v4504 = vrot.slane %v4503, 4
        %v4505 = vrot.slane %v3662, 5
        %v4506 = vsel %vm1278, %v4504, %v4505
        %v4507 = vrot.slane %v4505, 4
        %v4508 = vrot.slane %v3663, 5
        %v4509 = vsel %vm1278, %v4507, %v4508
        %v4510 = vrot.slane %v4368, 5
        %v4511 = vrot.slane %v4510, 4
        %v4512 = vrot.slane %v3665, 5
        %v4513 = vsel %vm1278, %v4511, %v4512
        %v4514 = vrot.slane %v4512, 4
        %v4515 = vrot.slane %v3666, 5
        %v4516 = vsel %vm1278, %v4514, %v4515
        %v4517 = vrot.slane %v4369, 5
        %v4518 = vrot.slane %v4517, 4
        %v4519 = vrot.slane %v3668, 5
        %v4520 = vsel %vm1278, %v4518, %v4519
        %v4521 = vrot.slane %v4519, 4
        %v4522 = vrot.slane %v3669, 5
        %v4523 = vsel %vm1278, %v4521, %v4522
        %v4524 = vrot.slane %v4370, 5
        %v4525 = vrot.slane %v4524, 4
        %v4526 = vrot.slane %v3671, 5
        %v4527 = vsel %vm1278, %v4525, %v4526
        %v4528 = vrot.slane %v4526, 4
        %v4529 = vrot.slane %v3672, 5
        %v4530 = vsel %vm1278, %v4528, %v4529
        %s4531 = scalar_lea.vmem %s219, 64
        %v4532 = vld [vmem:[%s4531] sm:$0xf]
        %v4533 = vld [vmem:[%s4531 + $0x4] sm:$0xf]
        %v4534 = vunpack.c.l.b16 %v4422
        %v4535 = vunpack.c.l.b16 %v4425
        %v4536 = vunpack.c.l.b16 %v4429
        %v4537 = vunpack.c.l.b16 %v4432
        %v4538 = vunpack.c.l.b16 %v4436
        %v4539 = vunpack.c.l.b16 %v4439
        %v4540 = vunpack.c.l.b16 %v4443
        %v4541 = vunpack.c.l.b16 %v4446
        %v4542 = vunpack.c.l.b16 %v4450
        %v4543 = vunpack.c.l.b16 %v4453
        %v4544 = vunpack.c.l.b16 %v4457
        %v4545 = vunpack.c.l.b16 %v4460
        %v4546 = vunpack.c.l.b16 %v4464
        %v4547 = vunpack.c.l.b16 %v4467
        %v4548 = vunpack.c.l.b16 %v4471
        %v4549 = vunpack.c.l.b16 %v4474
        %v4550 = vunpack.c.l.b16 %v4478
        %v4551 = vunpack.c.l.b16 %v4481
        %v4552 = vunpack.c.l.b16 %v4485
        %v4553 = vunpack.c.l.b16 %v4488
        %v4554 = vunpack.c.l.b16 %v4492
        %v4555 = vunpack.c.l.b16 %v4495
        %v4556 = vunpack.c.l.b16 %v4499
        %v4557 = vunpack.c.l.b16 %v4502
        %v4558 = vunpack.c.l.b16 %v4506
        %v4559 = vunpack.c.l.b16 %v4509
        %v4560 = vunpack.c.l.b16 %v4513
        %v4561 = vunpack.c.l.b16 %v4516
        %v4562 = vunpack.c.l.b16 %v4520
        %v4563 = vunpack.c.l.b16 %v4523
        %v4564 = vunpack.c.l.b16 %v4527
        %v4565 = vunpack.c.l.b16 %v4530
        %v4566 = vpack.c.b16 %v4535, %v4534
        %v4567 = vpack.c.b16 %v4537, %v4536
        %v4568 = vpack.c.b16 %v4539, %v4538
        %v4569 = vpack.c.b16 %v4541, %v4540
        %v4570 = vpack.c.b16 %v4543, %v4542
        %v4571 = vpack.c.b16 %v4545, %v4544
        %v4572 = vpack.c.b16 %v4547, %v4546
        %v4573 = vpack.c.b16 %v4549, %v4548
        %v4574 = vpack.c.b16 %v4551, %v4550
        %v4575 = vpack.c.b16 %v4553, %v4552
        %v4576 = vpack.c.b16 %v4555, %v4554
        %v4577 = vpack.c.b16 %v4557, %v4556
        %v4578 = vpack.c.b16 %v4559, %v4558
        %v4579 = vpack.c.b16 %v4561, %v4560
        %v4580 = vpack.c.b16 %v4563, %v4562
        %v4581 = vpack.c.b16 %v4565, %v4564
        %v4584 = vunpack.c.l.b16 %v4532
        %v4585 = vunpack.c.l.b16 %v4533
        %v4586 = vpack.c.b16 %v4585, %v4584
        %v4589 = vsel %vm723, %v4566, 0
        %v4592 = vsel %vm723, %v4567, 0
        %v4595 = vsel %vm723, %v4568, 0
        %v4598 = vsel %vm723, %v4569, 0
        %v4601 = vsel %vm723, %v4570, 0
        %v4604 = vsel %vm723, %v4571, 0
        %v4607 = vsel %vm723, %v4572, 0
        %v4610 = vsel %vm723, %v4573, 0
        %v4613 = vsel %vm723, %v4574, 0
        %v4616 = vsel %vm723, %v4575, 0
        %v4619 = vsel %vm723, %v4576, 0
        %v4622 = vsel %vm723, %v4577, 0
        %v4625 = vsel %vm723, %v4578, 0
        %v4628 = vsel %vm723, %v4579, 0
        %v4631 = vsel %vm723, %v4580, 0
        %v4634 = vsel %vm723, %v4581, 0
        %4636 = vmatprep.subr.bf16.mxu0 0
        %4637 = vmatpush1.bf16.msra.mxu0 %v4586
        %4638 = vmatprep.subr.bf16.mxu0 0
        %4639 = vmatpush1.bf16.msra.mxu0 0
        %4640 = vmatprep.subr.bf16.mxu0 0
        %4641 = vmatpush1.bf16.msra.mxu0 0
        %4642 = vmatprep.subr.bf16.mxu0 0
        %4643 = vmatpush1.bf16.msra.mxu0 0
        %4644 = vmatprep.subr.bf16.mxu0 0
        %4645 = vmatpush1.bf16.msra.mxu0 0
        %4646 = vmatprep.subr.bf16.mxu0 0
        %4647 = vmatpush1.bf16.msra.mxu0 0
        %4648 = vmatprep.subr.bf16.mxu0 0
        %4649 = vmatpush1.bf16.msra.mxu0 0
        %4650 = vmatprep.subr.bf16.mxu0 0
        %4651 = vmatpush1.bf16.msra.mxu0 0
        %4652 = vmatprep.subr.bf16.mxu0 0
        %4653 = vmatpush1.bf16.msra.mxu0 0
        %4654 = vmatprep.subr.bf16.mxu0 0
        %4655 = vmatpush1.bf16.msra.mxu0 0
        %4656 = vmatprep.subr.bf16.mxu0 0
        %4657 = vmatpush1.bf16.msra.mxu0 0
        %4658 = vmatprep.subr.bf16.mxu0 0
        %4659 = vmatpush1.bf16.msra.mxu0 0
        %4660 = vmatprep.subr.bf16.mxu0 0
        %4661 = vmatpush1.bf16.msra.mxu0 0
        %4662 = vmatprep.subr.bf16.mxu0 0
        %4663 = vmatpush1.bf16.msra.mxu0 0
        %4664 = vmatprep.subr.bf16.mxu0 0
        %4665 = vmatpush1.bf16.msra.mxu0 0
        %4666 = vmatprep.subr.bf16.mxu0 0
        %4667 = vmatpush1.bf16.msra.mxu0 0
        %4668 = vmatprep.mubr.bf16.mxu0 0
        %4669 = vmatmul.mubr.bf16.gmra.mrb[0].mxu0 %v4589
        %v4670 = vpop.f32.mrb[0].mxu0
        %v4671 = vadd.f32 0.0, %v4670
        %v4672 = vpop.f32.mrb[0].mxu0
        %v4673 = vpop.f32.mrb[0].mxu0
        %v4674 = vadd.f32 0.0, %v4673
        %v4675 = vpop.f32.mrb[0].mxu0
        %4676 = vmatprep.mubr.bf16.mxu0 0
        %4677 = vmatmul.mubr.bf16.gmra.mrb[0].mxu0 %v4592
        %v4678 = vpop.f32.mrb[0].mxu0
        %v4679 = vadd.f32 0.0, %v4678
        %v4680 = vpop.f32.mrb[0].mxu0
        %v4681 = vpop.f32.mrb[0].mxu0
        %v4682 = vadd.f32 0.0, %v4681
        %v4683 = vpop.f32.mrb[0].mxu0
        %4684 = vmatprep.mubr.bf16.mxu0 0
        %4685 = vmatmul.mubr.bf16.gmra.mrb[0].mxu0 %v4595
        %v4686 = vpop.f32.mrb[0].mxu0
        %v4687 = vadd.f32 0.0, %v4686
        %v4688 = vpop.f32.mrb[0].mxu0
        %v4689 = vpop.f32.mrb[0].mxu0
        %v4690 = vadd.f32 0.0, %v4689
        %v4691 = vpop.f32.mrb[0].mxu0
        %4692 = vmatprep.mubr.bf16.mxu0 0
        %4693 = vmatmul.mubr.bf16.gmra.mrb[0].mxu0 %v4598
        %v4694 = vpop.f32.mrb[0].mxu0
        %v4695 = vadd.f32 0.0, %v4694
        %v4696 = vpop.f32.mrb[0].mxu0
        %v4697 = vpop.f32.mrb[0].mxu0
        %v4698 = vadd.f32 0.0, %v4697
        %v4699 = vpop.f32.mrb[0].mxu0
        %4700 = vmatprep.mubr.bf16.mxu0 0
        %4701 = vmatmul.mubr.bf16.gmra.mrb[0].mxu0 %v4601
        %v4702 = vpop.f32.mrb[0].mxu0
        %v4703 = vadd.f32 0.0, %v4702
        %v4704 = vpop.f32.mrb[0].mxu0
        %v4705 = vpop.f32.mrb[0].mxu0
        %v4706 = vadd.f32 0.0, %v4705
        %v4707 = vpop.f32.mrb[0].mxu0
        %4708 = vmatprep.mubr.bf16.mxu0 0
        %4709 = vmatmul.mubr.bf16.gmra.mrb[0].mxu0 %v4604
        %v4710 = vpop.f32.mrb[0].mxu0
        %v4711 = vadd.f32 0.0, %v4710
        %v4712 = vpop.f32.mrb[0].mxu0
        %v4713 = vpop.f32.mrb[0].mxu0
        %v4714 = vadd.f32 0.0, %v4713
        %v4715 = vpop.f32.mrb[0].mxu0
        %4716 = vmatprep.mubr.bf16.mxu0 0
        %4717 = vmatmul.mubr.bf16.gmra.mrb[0].mxu0 %v4607
        %v4718 = vpop.f32.mrb[0].mxu0
        %v4719 = vadd.f32 0.0, %v4718
        %v4720 = vpop.f32.mrb[0].mxu0
        %v4721 = vpop.f32.mrb[0].mxu0
        %v4722 = vadd.f32 0.0, %v4721
        %v4723 = vpop.f32.mrb[0].mxu0
        %4724 = vmatprep.mubr.bf16.mxu0 0
        %4725 = vmatmul.mubr.bf16.gmra.mrb[0].mxu0 %v4610
        %v4726 = vpop.f32.mrb[0].mxu0
        %v4727 = vadd.f32 0.0, %v4726
        %v4728 = vpop.f32.mrb[0].mxu0
        %v4729 = vpop.f32.mrb[0].mxu0
        %v4730 = vadd.f32 0.0, %v4729
        %v4731 = vpop.f32.mrb[0].mxu0
        %4732 = vmatprep.mubr.bf16.mxu0 0
        %4733 = vmatmul.mubr.bf16.gmra.mrb[0].mxu0 %v4613
        %v4734 = vpop.f32.mrb[0].mxu0
        %v4735 = vadd.f32 0.0, %v4734
        %v4736 = vpop.f32.mrb[0].mxu0
        %v4737 = vpop.f32.mrb[0].mxu0
        %v4738 = vadd.f32 0.0, %v4737
        %v4739 = vpop.f32.mrb[0].mxu0
        %4740 = vmatprep.mubr.bf16.mxu0 0
        %4741 = vmatmul.mubr.bf16.gmra.mrb[0].mxu0 %v4616
        %v4742 = vpop.f32.mrb[0].mxu0
        %v4743 = vadd.f32 0.0, %v4742
        %v4744 = vpop.f32.mrb[0].mxu0
        %v4745 = vpop.f32.mrb[0].mxu0
        %v4746 = vadd.f32 0.0, %v4745
        %v4747 = vpop.f32.mrb[0].mxu0
        %4748 = vmatprep.mubr.bf16.mxu0 0
        %4749 = vmatmul.mubr.bf16.gmra.mrb[0].mxu0 %v4619
        %v4750 = vpop.f32.mrb[0].mxu0
        %v4751 = vadd.f32 0.0, %v4750
        %v4752 = vpop.f32.mrb[0].mxu0
        %v4753 = vpop.f32.mrb[0].mxu0
        %v4754 = vadd.f32 0.0, %v4753
        %v4755 = vpop.f32.mrb[0].mxu0
        %4756 = vmatprep.mubr.bf16.mxu0 0
        %4757 = vmatmul.mubr.bf16.gmra.mrb[0].mxu0 %v4622
        %v4758 = vpop.f32.mrb[0].mxu0
        %v4759 = vadd.f32 0.0, %v4758
        %v4760 = vpop.f32.mrb[0].mxu0
        %v4761 = vpop.f32.mrb[0].mxu0
        %v4762 = vadd.f32 0.0, %v4761
        %v4763 = vpop.f32.mrb[0].mxu0
        %4764 = vmatprep.mubr.bf16.mxu0 0
        %4765 = vmatmul.mubr.bf16.gmra.mrb[0].mxu0 %v4625
        %v4766 = vpop.f32.mrb[0].mxu0
        %v4767 = vadd.f32 0.0, %v4766
        %v4768 = vpop.f32.mrb[0].mxu0
        %v4769 = vpop.f32.mrb[0].mxu0
        %v4770 = vadd.f32 0.0, %v4769
        %v4771 = vpop.f32.mrb[0].mxu0
        %4772 = vmatprep.mubr.bf16.mxu0 0
        %4773 = vmatmul.mubr.bf16.gmra.mrb[0].mxu0 %v4628
        %v4774 = vpop.f32.mrb[0].mxu0
        %v4775 = vadd.f32 0.0, %v4774
        %v4776 = vpop.f32.mrb[0].mxu0
        %v4777 = vpop.f32.mrb[0].mxu0
        %v4778 = vadd.f32 0.0, %v4777
        %v4779 = vpop.f32.mrb[0].mxu0
        %4780 = vmatprep.mubr.bf16.mxu0 0
        %4781 = vmatmul.mubr.bf16.gmra.mrb[0].mxu0 %v4631
        %v4782 = vpop.f32.mrb[0].mxu0
        %v4783 = vadd.f32 0.0, %v4782
        %v4784 = vpop.f32.mrb[0].mxu0
        %v4785 = vpop.f32.mrb[0].mxu0
        %v4786 = vadd.f32 0.0, %v4785
        %v4787 = vpop.f32.mrb[0].mxu0
        %4788 = vmatprep.mubr.bf16.mxu0 0
        %4789 = vmatmul.mubr.bf16.gmra.mrb[0].mxu0 %v4634
        %v4790 = vpop.f32.mrb[0].mxu0
        %v4791 = vadd.f32 0.0, %v4790
        %v4792 = vpop.f32.mrb[0].mxu0
        %v4793 = vpop.f32.mrb[0].mxu0
        %v4794 = vadd.f32 0.0, %v4793
        %v4795 = vpop.f32.mrb[0].mxu0
        %4796 = vdwg.mxu0
        %v4797 = vadd.f32 %v4323, %v4671
        %v4798 = vadd.f32 %v4324, %v4674
        %v4799 = vadd.f32 %v4325, %v4679
        %v4800 = vadd.f32 %v4326, %v4682
        %v4801 = vadd.f32 %v4327, %v4687
        %v4802 = vadd.f32 %v4328, %v4690
        %v4803 = vadd.f32 %v4329, %v4695
        %v4804 = vadd.f32 %v4330, %v4698
        %v4805 = vadd.f32 %v4331, %v4703
        %v4806 = vadd.f32 %v4332, %v4706
        %v4807 = vadd.f32 %v4333, %v4711
        %v4808 = vadd.f32 %v4334, %v4714
        %v4809 = vadd.f32 %v4335, %v4719
        %v4810 = vadd.f32 %v4336, %v4722
        %v4811 = vadd.f32 %v4337, %v4727
        %v4812 = vadd.f32 %v4338, %v4730
        %v4813 = vadd.f32 %v4339, %v4735
        %v4814 = vadd.f32 %v4340, %v4738
        %v4815 = vadd.f32 %v4341, %v4743
        %v4816 = vadd.f32 %v4342, %v4746
        %v4817 = vadd.f32 %v4343, %v4751
        %v4818 = vadd.f32 %v4344, %v4754
        %v4819 = vadd.f32 %v4345, %v4759
        %v4820 = vadd.f32 %v4346, %v4762
        %v4821 = vadd.f32 %v4347, %v4767
        %v4822 = vadd.f32 %v4348, %v4770
        %v4823 = vadd.f32 %v4349, %v4775
        %v4824 = vadd.f32 %v4350, %v4778
        %v4825 = vadd.f32 %v4351, %v4783
        %v4826 = vadd.f32 %v4352, %v4786
        %v4827 = vadd.f32 %v4353, %v4791
        %v4828 = vadd.f32 %v4354, %v4794
        %v4829 = vld [vmem:[%s222] sm:$0x1]
        %v4831 = vlaneseq
        %v4832 = vshrl.u32 %v4831, 7
        %v4833 = vsub.s32 0, %v4832
        %v4834 = vrot.slane %v4829, %v4833
        %v4836 = vadd.f32 %v4797, %v4834
        %v4837 = vadd.f32 %v4798, %v4834
        %v4838 = vadd.f32 %v4799, %v4834
        %v4839 = vadd.f32 %v4800, %v4834
        %v4840 = vadd.f32 %v4801, %v4834
        %v4841 = vadd.f32 %v4802, %v4834
        %v4842 = vadd.f32 %v4803, %v4834
        %v4843 = vadd.f32 %v4804, %v4834
        %v4844 = vadd.f32 %v4805, %v4834
        %v4845 = vadd.f32 %v4806, %v4834
        %v4846 = vadd.f32 %v4807, %v4834
        %v4847 = vadd.f32 %v4808, %v4834
        %v4848 = vadd.f32 %v4809, %v4834
        %v4849 = vadd.f32 %v4810, %v4834
        %v4850 = vadd.f32 %v4811, %v4834
        %v4851 = vadd.f32 %v4812, %v4834
        %v4852 = vadd.f32 %v4813, %v4834
        %v4853 = vadd.f32 %v4814, %v4834
        %v4854 = vadd.f32 %v4815, %v4834
        %v4855 = vadd.f32 %v4816, %v4834
        %v4856 = vadd.f32 %v4817, %v4834
        %v4857 = vadd.f32 %v4818, %v4834
        %v4858 = vadd.f32 %v4819, %v4834
        %v4859 = vadd.f32 %v4820, %v4834
        %v4860 = vadd.f32 %v4821, %v4834
        %v4861 = vadd.f32 %v4822, %v4834
        %v4862 = vadd.f32 %v4823, %v4834
        %v4863 = vadd.f32 %v4824, %v4834
        %v4864 = vadd.f32 %v4825, %v4834
        %v4865 = vadd.f32 %v4826, %v4834
        %v4866 = vadd.f32 %v4827, %v4834
        %v4867 = vadd.f32 %v4828, %v4834
        %v4868 = vmax.f32 %v4836, 0.0
        %v4869 = vmax.f32 %v4837, 0.0
        %v4870 = vmax.f32 %v4838, 0.0
        %v4871 = vmax.f32 %v4839, 0.0
        %v4872 = vmax.f32 %v4840, 0.0
        %v4873 = vmax.f32 %v4841, 0.0
        %v4874 = vmax.f32 %v4842, 0.0
        %v4875 = vmax.f32 %v4843, 0.0
        %v4876 = vmax.f32 %v4844, 0.0
        %v4877 = vmax.f32 %v4845, 0.0
        %v4878 = vmax.f32 %v4846, 0.0
        %v4879 = vmax.f32 %v4847, 0.0
        %v4880 = vmax.f32 %v4848, 0.0
        %v4881 = vmax.f32 %v4849, 0.0
        %v4882 = vmax.f32 %v4850, 0.0
        %v4883 = vmax.f32 %v4851, 0.0
        %v4884 = vmax.f32 %v4852, 0.0
        %v4885 = vmax.f32 %v4853, 0.0
        %v4886 = vmax.f32 %v4854, 0.0
        %v4887 = vmax.f32 %v4855, 0.0
        %v4888 = vmax.f32 %v4856, 0.0
        %v4889 = vmax.f32 %v4857, 0.0
        %v4890 = vmax.f32 %v4858, 0.0
        %v4891 = vmax.f32 %v4859, 0.0
        %v4892 = vmax.f32 %v4860, 0.0
        %v4893 = vmax.f32 %v4861, 0.0
        %v4894 = vmax.f32 %v4862, 0.0
        %v4895 = vmax.f32 %v4863, 0.0
        %v4896 = vmax.f32 %v4864, 0.0
        %v4897 = vmax.f32 %v4865, 0.0
        %v4898 = vmax.f32 %v4866, 0.0
        %v4899 = vmax.f32 %v4867, 0.0
        %4900 = vst [vmem:[%s210] sm:$0xff] %v4868
        %4901 = vst [vmem:[%s210 + $0x8] sm:$0xff] %v4869
        %4902 = vst [vmem:[%s210 + $0x10] sm:$0xff] %v4870
        %4903 = vst [vmem:[%s210 + $0x18] sm:$0xff] %v4871
        %4904 = vst [vmem:[%s210 + $0x20] sm:$0xff] %v4872
        %4905 = vst [vmem:[%s210 + $0x28] sm:$0xff] %v4873
        %4906 = vst [vmem:[%s210 + $0x30] sm:$0xff] %v4874
        %4907 = vst [vmem:[%s210 + $0x38] sm:$0xff] %v4875
        %4908 = vst [vmem:[%s210 + $0x40] sm:$0xff] %v4876
        %4909 = vst [vmem:[%s210 + $0x48] sm:$0xff] %v4877
        %4910 = vst [vmem:[%s210 + $0x50] sm:$0xff] %v4878
        %4911 = vst [vmem:[%s210 + $0x58] sm:$0xff] %v4879
        %4912 = vst [vmem:[%s210 + $0x60] sm:$0xff] %v4880
        %4913 = vst [vmem:[%s210 + $0x68] sm:$0xff] %v4881
        %4914 = vst [vmem:[%s210 + $0x70] sm:$0xff] %v4882
        %4915 = vst [vmem:[%s210 + $0x78] sm:$0xff] %v4883
        %4916 = vst [vmem:[%s210 + $0x80] sm:$0xff] %v4884
        %4917 = vst [vmem:[%s210 + $0x88] sm:$0xff] %v4885
        %4918 = vst [vmem:[%s210 + $0x90] sm:$0xff] %v4886
        %4919 = vst [vmem:[%s210 + $0x98] sm:$0xff] %v4887
        %4920 = vst [vmem:[%s210 + $0xa0] sm:$0xff] %v4888
        %4921 = vst [vmem:[%s210 + $0xa8] sm:$0xff] %v4889
        %4922 = vst [vmem:[%s210 + $0xb0] sm:$0xff] %v4890
        %4923 = vst [vmem:[%s210 + $0xb8] sm:$0xff] %v4891
        %4924 = vst [vmem:[%s210 + $0xc0] sm:$0xff] %v4892
        %4925 = vst [vmem:[%s210 + $0xc8] sm:$0xff] %v4893
        %4926 = vst [vmem:[%s210 + $0xd0] sm:$0xff] %v4894
        %4927 = vst [vmem:[%s210 + $0xd8] sm:$0xff] %v4895
        %4928 = vst [vmem:[%s210 + $0xe0] sm:$0xff] %v4896
        %4929 = vst [vmem:[%s210 + $0xe8] sm:$0xff] %v4897
        %4930 = vst [vmem:[%s210 + $0xf0] sm:$0xff] %v4898
        %4931 = vst [vmem:[%s210 + $0xf8] sm:$0xff] %v4899
        %s4932 = sand.u32 %s126, 1
        %s4933 = scalar_lea.sflag [#allocation3], %s4932
        %s4934 = sand.u32 %s126, 1
        %s4935 = smul.addr %s4934, 256
        %s4936 = scalar_lea.vmem [#allocation2], %s4935
        // Predicated region
        $region33: #{tpu_custom_call.1} parent=31 // pred_check
          %p4937 = pneg %p136
        $region34: #{tpu_custom_call.1} parent=31 // pred_check_branch
          %4939 = sbr.rel (%p4937) target = $region36
        $region35: #{tpu_custom_call.1} parent=31 // pred_region
          %s4940 = smul.u32 16, %s24
          %s4942 = ssub.s32 4096, 4096
          %4943 = vsyncadd %s4933, %s4942
          %s4944 = smul.addr %s4940, 2
          %s4945 = sadd.s32 %s23, %s4944
          %s4946 = smul.addr %s22, 32
          %s4947 = sadd.s32 %s4945, %s4946
          %s4948 = smul.addr %s4947, 128
          %s4949 = scalar_lea.hbm %s3, %s4948
          %s4950 = sshll.u32 %s4936, 4
          %s4951 = int_to_ptr.vmem [resolvable:$true] %s4950
          %4956 = dma.vmem_to_hbm [thread:$0]  %s4951, 4096, %s4949, %s4933, 128, 128, 8
        $region36: #{tpu_custom_call.1} parent=31 // pred_fallthru
          _
      $region32: #{tpu_custom_call.1} parent=5 // pred_fallthru
        _
      %p4957 = scmp.le.s32.totalorder 2, %s12
      // Predicated region
      $region37: #{tpu_custom_call.1} parent=5 // pred_check
        %p4958 = pneg %p4957
      $region38: #{tpu_custom_call.1} parent=5 // pred_check_branch
        %4960 = sbr.rel (%p4958) target = $region40
      $region39: #{tpu_custom_call.1} parent=5 // pred_region
        %s4961 = ssub.s32 %s12, 2
        // Predicated region
        $region41: #{tpu_custom_call.1} parent=39 // pred_check
          %p4962 = pneg %p142
        $region42: #{tpu_custom_call.1} parent=39 // pred_check_branch
          %4964 = sbr.rel (%p4962) target = $region44
        $region43: #{tpu_custom_call.1} parent=39 // pred_region
          %s4965 = sand.u32 %s127, 1
          %s4966 = scalar_lea.sflag [#allocation3], %s4965
          %s4967 = sand.u32 %s127, 1
          %s4968 = smul.addr %s4967, 256
          %s4969 = scalar_lea.vmem [#allocation2], %s4968
          %4970 = dma.done %s4966, 4096
        $region44: #{tpu_custom_call.1} parent=39 // pred_fallthru
          _
      $region40: #{tpu_custom_call.1} parent=5 // pred_fallthru
        _
    $region6: #{tpu_custom_call.1} parent=1 // loop_footer
      %s16 = sadd.s32 1, %s12
    $region7: #{tpu_custom_call.1} parent=1 // loop_footer_branch
      %11 = sbr.rel target = $region3
    $region8: #{tpu_custom_call.1} parent=1 // loop_exit
      _
    %4971 = vsyncpa [#allocation3], 1
    %s4972 = scalar_lea.sflag [#allocation3], 1
    %4973 = vsyncpa %s4972, 1

</llo_original>
